<compile_context>
chip_gen: v5e
topology: v5e:2x2
jax: 0.10.0
libtpu: 0.0.40
codegen_flags: <defaults>
</compile_context>

<pallas_src>
import functools

import jax
import jax.numpy as jnp
from jax.experimental import pallas as pl
from jax.experimental.pallas import tpu as pltpu


def _round_up(x, m):
    return ((x + m - 1) // m) * m


# ---------------------------------------------------------------------------
# Kernel 1: streamed fused conv-as-matmul + GLU gate + running max-pool.
# ---------------------------------------------------------------------------
def stream_kernel(xw_ref, wc_ref, bc_ref, part_ref, acc_ref, *,
                  channels, windows, win_tile, wt_per_split, mask_pad):
    """One (split, batch, window-tile) grid step.

    xw_ref  : (1, TW, KE)   bf16  windowed embeddings for this tile (streamed)
    wc_ref  : (KE, 2*C)     bf16  [conv1_w | conv2_w] fused RHS (resident)
    bc_ref  : (1, 2*C)      f32   [conv1_b | conv2_b]
    part_ref: (1, 1, 8, C)  f32   per-(split, batch) partial max (8 sublanes)
    acc_ref : (8, C)        f32   per-sublane running max (VMEM scratch)
    """
    s = pl.program_id(0)
    t = pl.program_id(2)
    n_t = pl.num_programs(2)

    @pl.when(t == 0)
    def _():
        acc_ref[...] = jnp.full(acc_ref.shape, -jnp.inf, acc_ref.dtype)

    xw = xw_ref[0]                                                   # (TW, KE) bf16

    # Both convs in one MXU pass (N = 2*C = 256 fills the 256-wide MXU),
    # f32 accumulation.  K = KE = 4000 is ragged; Mosaic masks the tail.
    c = jnp.dot(xw, wc_ref[...], preferred_element_type=jnp.float32) + bc_ref[...]
    c1 = c[:, :channels]                                             # conv_1
    c2 = c[:, channels:]                                             # conv_2

    # Gated linear unit: cnn_value * sigmoid(gating_weight)  (VPU/EUP, f32).
    gated = c1 * jax.nn.sigmoid(c2)                                  # (TW, C)

    # Mask window-padding rows (only traced when padding exists; static flag).
    if mask_pad:
        base = (s * wt_per_split + t) * win_tile
        win_ids = base + jax.lax.broadcasted_iota(jnp.int32, gated.shape, 0)
        gated = jnp.where(win_ids < windows, gated, -jnp.inf)

    # Per-sublane running max: (TW, C) -> (TW//8, 8, C) is a pure vreg
    # regrouping, and the axis-0 max is elementwise (VPU only).  The
    # cross-sublane collapse is deferred to the tiny head kernel.
    g8 = gated.reshape(win_tile // 8, 8, channels)
    acc_ref[...] = jnp.maximum(acc_ref[...], jnp.max(g8, axis=0))

    @pl.when(t == n_t - 1)
    def _():
        part_ref[0, 0] = acc_ref[...]                                # (8, C)


# ---------------------------------------------------------------------------
# Kernel 2: combine split/sublane partial maxima + fc1 + fc2 (all-f32 head).
# ---------------------------------------------------------------------------
def head_kernel(part_ref, wf1_ref, bf1_ref, wf2_ref, bf2_ref, out_ref):
    part = part_ref[...]                              # (S, B, 8, C) f32
    pooled = jnp.max(jnp.max(part, axis=2), axis=0)   # sublane reduce, then split
    h = jnp.dot(pooled, wf1_ref[...],
                preferred_element_type=jnp.float32) + bf1_ref[...]
    out_ref[...] = (jnp.dot(h, wf2_ref[...],
                            preferred_element_type=jnp.float32) + bf2_ref[...])


def malconv_forward(x_bytes, params, *, window_size, nclass,
                    win_tile=512, n_split=2, vmem_limit_mb=48):
    """x_bytes: (B, L) int32 byte values in [0, 255]."""
    B, L = x_bytes.shape
    assert L % window_size == 0
    W = L // window_size
    E = params["embedding"].shape[1]                    # 8
    C = params["conv1_w"].shape[0]                      # 128
    KE = window_size * E                                # 4000
    NCLS_P = _round_up(max(nclass, 128), 128)           # lane-dense class dim
    n_split = max(1, n_split)

    # Window-tile size: multiple of 16 (bf16 sublane packing), capped by W.
    win_tile = min(win_tile, _round_up(W, 16))
    win_tile = _round_up(win_tile, 16)
    W_pad = _round_up(W, win_tile * n_split)
    wt_per_split = (W_pad // win_tile) // n_split

    # --- glue: embedding lookup (single bf16 materialization) -------------
    tab = params["embedding"].astype(jnp.bfloat16)
    xw = jnp.take(tab, x_bytes, axis=0).reshape(B, W, KE)   # (B, W, KE) bf16
    if W_pad != W:   # only when win_tile*n_split does not divide W
        xw = jnp.pad(xw, ((0, 0), (0, W_pad - W), (0, 0)))

    # --- glue: fuse conv weights into one 256-wide RHS --------------------
    # conv weight (out, E, K) -> (K, E, out) -> (K*E, out): matches xw's
    # (k, e) flattening order.
    w1f = params["conv1_w"].transpose(2, 1, 0).reshape(KE, C)
    w2f = params["conv2_w"].transpose(2, 1, 0).reshape(KE, C)
    wcat = jnp.concatenate([w1f, w2f], axis=1).astype(jnp.bfloat16)    # (KE, 2C)
    bcat = jnp.concatenate([params["conv1_b"], params["conv2_b"]]
                           ).reshape(1, 2 * C).astype(jnp.float32)

    kernel = functools.partial(stream_kernel, channels=C, windows=W,
                               win_tile=win_tile, wt_per_split=wt_per_split,
                               mask_pad=(W_pad != W))

    part = pl.pallas_call(
        kernel,
        out_shape=jax.ShapeDtypeStruct((n_split, B, 8, C), jnp.float32),
        grid=(n_split, B, wt_per_split),
        in_specs=[
            pl.BlockSpec((1, win_tile, KE),
                         lambda s, b, t: (b, s * wt_per_split + t, 0)),  # streamed
            pl.BlockSpec((KE, 2 * C), lambda s, b, t: (0, 0)),           # resident
            pl.BlockSpec((1, 2 * C), lambda s, b, t: (0, 0)),
        ],
        out_specs=pl.BlockSpec((1, 1, 8, C), lambda s, b, t: (s, b, 0, 0)),
        scratch_shapes=[pltpu.VMEM((8, C), jnp.float32)],                # running max
        compiler_params=pltpu.CompilerParams(
            dimension_semantics=("parallel", "parallel", "arbitrary"),
            vmem_limit_bytes=vmem_limit_mb * 1024 * 1024),
    )(xw, wcat, bcat)

    # --- head: combine partial maxima + fc1 + fc2, kept in f32 ------------
    wf1 = params["fc1_w"].T.astype(jnp.float32)                         # (C, C)
    bf1 = params["fc1_b"].reshape(1, C).astype(jnp.float32)
    wf2 = jnp.pad(params["fc2_w"].T,
                  ((0, 0), (0, NCLS_P - nclass))).astype(jnp.float32)   # (C, NCLS_P)
    bf2 = jnp.pad(params["fc2_b"], (0, NCLS_P - nclass)
                  ).reshape(1, NCLS_P).astype(jnp.float32)

    logits = pl.pallas_call(
        head_kernel,
        out_shape=jax.ShapeDtypeStruct((B, NCLS_P), jnp.float32),
    )(part, wf1, bf1, wf2, bf2)

    return logits[:, :nclass]


def init_params(key, *, nclass, window_size, emb_dim=8, channels=128):
    ks = jax.random.split(key, 8)
    emb = 0.1 * jax.random.normal(ks[0], (256, emb_dim), jnp.float32)
    emb = emb.at[0].set(0.0)                                            # padding_idx=0
    return {
        "embedding": emb,
        "conv1_w": 0.05 * jax.random.normal(ks[1], (channels, emb_dim, window_size), jnp.float32),
        "conv1_b": 0.05 * jax.random.normal(ks[2], (channels,), jnp.float32),
        "conv2_w": 0.05 * jax.random.normal(ks[3], (channels, emb_dim, window_size), jnp.float32),
        "conv2_b": 0.05 * jax.random.normal(ks[4], (channels,), jnp.float32),
        "fc1_w": 0.1 * jax.random.normal(ks[5], (channels, channels), jnp.float32),
        "fc1_b": jnp.zeros((channels,), jnp.float32),
        "fc2_w": 0.1 * jax.random.normal(ks[6], (nclass, channels), jnp.float32),
        "fc2_b": jnp.zeros((nclass,), jnp.float32),
    }


def malconv_reference(x_bytes, params, *, window_size):
    """Pure-JAX f32 reference mirroring the PyTorch forward exactly."""
    B, L = x_bytes.shape
    W = L // window_size
    E = params["embedding"].shape[1]
    emb = jnp.take(params["embedding"], x_bytes, axis=0)                # (B, L, E)
    xw = emb.reshape(B, W, window_size, E)
    c1 = jnp.einsum("bwke,oek->bwo", xw, params["conv1_w"]) + params["conv1_b"]
    c2 = jnp.einsum("bwke,oek->bwo", xw, params["conv2_w"]) + params["conv2_b"]
    gated = c1 * jax.nn.sigmoid(c2)                                     # (B, W, 128)
    pooled = jnp.max(gated, axis=1)                                     # (B, 128)
    h = pooled @ params["fc1_w"].T + params["fc1_b"]
    return h @ params["fc2_w"].T + params["fc2_b"]


if __name__ == "__main__":
    # window_size stays 500 (fixed by the module); small W keeps shapes tiny
    # while exercising the full init / accumulate / finalize / combine paths.
    WINDOW = 500
    NCLASS = 8
    BATCH = 2

    key = jax.random.PRNGKey(0)
    k_param, k_data = jax.random.split(key)
    params = init_params(k_param, nclass=NCLASS, window_size=WINDOW)

    fwd = jax.jit(functools.partial(malconv_forward, window_size=WINDOW,
                                    nclass=NCLASS, win_tile=16, n_split=2))

    # Case 0: W=64 (L=32000): 2 window tiles per (split, batch) -> exercises
    #         the running-max accumulator and the split combine.
    # Case 1: W=30 (L=15000): W_pad=32 -> exercises the -inf window mask and
    #         the single-tile (t==0 == t==last) path.
    for case, n_windows in enumerate((64, 30)):
        L = n_windows * WINDOW
        x_bytes = jax.random.randint(jax.random.fold_in(k_data, case),
                                     (BATCH, L), 0, 256, dtype=jnp.int32)
        out = fwd(x_bytes, params)
        out = jax.block_until_ready(out)

        ref = malconv_reference(x_bytes, params, window_size=WINDOW)
        assert out.shape == (BATCH, NCLASS)
        # bf16 streamed embeddings / conv weights with f32 accumulation and an
        # all-f32 head -> small error budget.
        assert jnp.allclose(out, ref, atol=5e-2, rtol=5e-2), (case, out, ref)

    print("KERNEL_OK")
</pallas_src>

<mosaic_0001>
module attributes {stable_mosaic.version = 11 : i64} {
  func.func @stream_kernel(%arg0: i32, %arg1: i32, %arg2: i32, %arg3: memref<1x16x4000xbf16, #tpu.memory_space<vmem>>, %arg4: memref<4000x256xbf16, #tpu.memory_space<vmem>>, %arg5: memref<1x256xf32, #tpu.memory_space<vmem>>, %arg6: memref<1x1x8x128xf32, #tpu.memory_space<vmem>>, %arg7: memref<8x128xf32, #tpu.memory_space<vmem>>) attributes {dimension_semantics = [#tpu.dimension_semantics<parallel>, #tpu.dimension_semantics<parallel>, #tpu.dimension_semantics<arbitrary>], iteration_bounds = array<i64: 2, 2, 2>, scalar_prefetch = 0 : i64, scratch_operands = 1 : i64, tpu.core_type = #tpu.core_type<tc>, window_params = [{transform_indices = @transform_0, window_bounds = array<i64: 1, 16, 4000>}, {pipeline_mode = #tpu.pipeline_mode<synchronous>, transform_indices = @transform_1, window_bounds = array<i64: 4000, 256>}, {pipeline_mode = #tpu.pipeline_mode<synchronous>, transform_indices = @transform_2, window_bounds = array<i64: 1, 256>}, {transform_indices = @transform_3, window_bounds = array<i64: 1, 1, 8, 128>}]} {
    %c0_i32 = arith.constant 0 : i32
    %0 = arith.cmpi eq, %arg2, %c0_i32 : i32
    %1 = arith.extui %0 : i1 to i32
    %c0_i32_0 = arith.constant 0 : i32
    %2 = arith.cmpi ne, %1, %c0_i32_0 : i32
    scf.if %2 {
      %cst_14 = arith.constant 0xFF800000 : f32
      %26 = vector.broadcast %cst_14 : f32 to vector<8x128xf32>
      %c0_15 = arith.constant 0 : index
      %c0_16 = arith.constant 0 : index
      %27 = vector.load %arg7[%c0_15, %c0_16] : memref<8x128xf32, #tpu.memory_space<vmem>>, vector<8x128xf32>
      tpu.vector_store %arg7[%c0_15, %c0_16], %26 {strides = array<i32>} : memref<8x128xf32, #tpu.memory_space<vmem>>, vector<8x128xf32>,
    } else {
    }
    %c0 = arith.constant 0 : index
    %c0_1 = arith.constant 0 : index
    %c0_2 = arith.constant 0 : index
    %3 = vector.load %arg3[%c0, %c0_1, %c0_2] : memref<1x16x4000xbf16, #tpu.memory_space<vmem>>, vector<1x16x4000xbf16>
    %4 = vector.shape_cast %3 : vector<1x16x4000xbf16> to vector<16x4000xbf16>
    %c0_3 = arith.constant 0 : index
    %c0_4 = arith.constant 0 : index
    %5 = vector.load %arg4[%c0_3, %c0_4] : memref<4000x256xbf16, #tpu.memory_space<vmem>>, vector<4000x256xbf16>
    %cst = arith.constant dense<0.000000e+00> : vector<16x256xf32>
    %6 = tpu.matmul %4, %5, %cst {dimension_numbers = #tpu.dot_dimension_numbers<[1], [0], [0], [1], [0, 0, 1, 1], [], []>} : vector<16x4000xbf16>, vector<4000x256xbf16>, vector<16x256xf32> -> vector<16x256xf32>
    %c0_5 = arith.constant 0 : index
    %c0_6 = arith.constant 0 : index
    %7 = vector.load %arg5[%c0_5, %c0_6] : memref<1x256xf32, #tpu.memory_space<vmem>>, vector<1x256xf32>
    %8 = vector.broadcast %7 : vector<1x256xf32> to vector<16x256xf32>
    %9 = arith.addf %6, %8 : vector<16x256xf32>
    %10 = vector.extract_strided_slice %9 {offsets = [0, 0], sizes = [16, 128], strides = [1, 1]} : vector<16x256xf32> to vector<16x128xf32>
    %11 = vector.extract_strided_slice %9 {offsets = [0, 128], sizes = [16, 128], strides = [1, 1]} : vector<16x256xf32> to vector<16x128xf32>
    %12 = arith.negf %11 : vector<16x128xf32>
    %13 = math.exp %12 : vector<16x128xf32>
    %cst_7 = arith.constant 1.000000e+00 : f32
    %14 = vector.broadcast %cst_7 : f32 to vector<16x128xf32>
    %15 = arith.addf %14, %13 : vector<16x128xf32>
    %16 = arith.divf %14, %15 : vector<16x128xf32>
    %17 = arith.mulf %10, %16 : vector<16x128xf32>
    %18 = vector.shape_cast %17 : vector<16x128xf32> to vector<2x8x128xf32>
    %c0_8 = arith.constant 0 : index
    %c0_9 = arith.constant 0 : index
    %19 = vector.load %arg7[%c0_8, %c0_9] : memref<8x128xf32, #tpu.memory_space<vmem>>, vector<8x128xf32>
    %cst_10 = arith.constant dense<0xFF800000> : vector<8x128xf32>
    %20 = vector.multi_reduction <maximumf>, %18, %cst_10 [0] : vector<2x8x128xf32> to vector<8x128xf32>
    %21 = arith.maximumf %19, %20 : vector<8x128xf32>
    %c0_11 = arith.constant 0 : index
    %c0_12 = arith.constant 0 : index
    %22 = vector.load %arg7[%c0_11, %c0_12] : memref<8x128xf32, #tpu.memory_space<vmem>>, vector<8x128xf32>
    tpu.vector_store %arg7[%c0_11, %c0_12], %21 {strides = array<i32>} : memref<8x128xf32, #tpu.memory_space<vmem>>, vector<8x128xf32>,
    %c1_i32 = arith.constant 1 : i32
    %23 = arith.cmpi eq, %arg2, %c1_i32 : i32
    %24 = arith.extui %23 : i1 to i32
    %c0_i32_13 = arith.constant 0 : i32
    %25 = arith.cmpi ne, %24, %c0_i32_13 : i32
    scf.if %25 {
      %c0_14 = arith.constant 0 : index
      %c0_15 = arith.constant 0 : index
      %26 = vector.load %arg7[%c0_14, %c0_15] : memref<8x128xf32, #tpu.memory_space<vmem>>, vector<8x128xf32>
      %c0_16 = arith.constant 0 : index
      %c0_17 = arith.constant 0 : index
      %c0_18 = arith.constant 0 : index
      %c0_19 = arith.constant 0 : index
      %27 = vector.load %arg6[%c0_16, %c0_17, %c0_18, %c0_19] : memref<1x1x8x128xf32, #tpu.memory_space<vmem>>, vector<1x1x8x128xf32>
      %28 = vector.shape_cast %27 : vector<1x1x8x128xf32> to vector<8x128xf32>
      %29 = vector.shape_cast %26 : vector<8x128xf32> to vector<1x1x8x128xf32>
      tpu.vector_store %arg6[%c0_16, %c0_17, %c0_18, %c0_19], %29 {strides = array<i32>} : memref<1x1x8x128xf32, #tpu.memory_space<vmem>>, vector<1x1x8x128xf32>,
    } else {
    }
    return
  }
  func.func @transform_0(%arg0: i32, %arg1: i32, %arg2: i32) -> (i32, i32, i32) {
    %c2_i32 = arith.constant 2 : i32
    %0 = arith.muli %arg0, %c2_i32 : i32
    %1 = arith.addi %0, %arg2 : i32
    %c0_i32 = arith.constant 0 : i32
    %c0_i32_0 = arith.constant 0 : i32
    return %arg1, %1, %c0_i32 : i32, i32, i32
  }
  func.func @transform_1(%arg0: i32, %arg1: i32, %arg2: i32) -> (i32, i32) {
    %c0_i32 = arith.constant 0 : i32
    %c0_i32_0 = arith.constant 0 : i32
    %c0_i32_1 = arith.constant 0 : i32
    return %c0_i32, %c0_i32_0 : i32, i32
  }
  func.func @transform_2(%arg0: i32, %arg1: i32, %arg2: i32) -> (i32, i32) {
    %c0_i32 = arith.constant 0 : i32
    %c0_i32_0 = arith.constant 0 : i32
    %c0_i32_1 = arith.constant 0 : i32
    return %c0_i32, %c0_i32_0 : i32, i32
  }
  func.func @transform_3(%arg0: i32, %arg1: i32, %arg2: i32) -> (i32, i32, i32, i32) {
    %c0_i32 = arith.constant 0 : i32
    %c0_i32_0 = arith.constant 0 : i32
    %c0_i32_1 = arith.constant 0 : i32
    return %arg0, %arg1, %c0_i32, %c0_i32_0 : i32, i32, i32, i32
  }
}

module attributes {stable_mosaic.version = 11 : i64} {
  func.func @head_kernel(%arg0: memref<2x2x8x128xf32, #tpu.memory_space<vmem>>, %arg1: memref<128x128xf32, #tpu.memory_space<vmem>>, %arg2: memref<1x128xf32, #tpu.memory_space<vmem>>, %arg3: memref<128x128xf32, #tpu.memory_space<vmem>>, %arg4: memref<1x128xf32, #tpu.memory_space<vmem>>, %arg5: memref<2x128xf32, #tpu.memory_space<vmem>>) attributes {dimension_semantics = [], scalar_prefetch = 0 : i64, scratch_operands = 0 : i64, tpu.core_type = #tpu.core_type<tc>} {
    %c0 = arith.constant 0 : index
    %c0_0 = arith.constant 0 : index
    %c0_1 = arith.constant 0 : index
    %c0_2 = arith.constant 0 : index
    %0 = vector.load %arg0[%c0, %c0_0, %c0_1, %c0_2] : memref<2x2x8x128xf32, #tpu.memory_space<vmem>>, vector<2x2x8x128xf32>
    %cst = arith.constant dense<0xFF800000> : vector<2x2x128xf32>
    %1 = vector.multi_reduction <maximumf>, %0, %cst [2] : vector<2x2x8x128xf32> to vector<2x2x128xf32>
    %cst_3 = arith.constant dense<0xFF800000> : vector<2x128xf32>
    %2 = vector.multi_reduction <maximumf>, %1, %cst_3 [0] : vector<2x2x128xf32> to vector<2x128xf32>
    %c0_4 = arith.constant 0 : index
    %c0_5 = arith.constant 0 : index
    %3 = vector.load %arg1[%c0_4, %c0_5] : memref<128x128xf32, #tpu.memory_space<vmem>>, vector<128x128xf32>
    %cst_6 = arith.constant dense<0.000000e+00> : vector<2x128xf32>
    %4 = tpu.matmul %2, %3, %cst_6 {dimension_numbers = #tpu.dot_dimension_numbers<[1], [0], [0], [1], [0, 0, 1, 1], [], []>} : vector<2x128xf32>, vector<128x128xf32>, vector<2x128xf32> -> vector<2x128xf32>
    %c0_7 = arith.constant 0 : index
    %c0_8 = arith.constant 0 : index
    %5 = vector.load %arg2[%c0_7, %c0_8] : memref<1x128xf32, #tpu.memory_space<vmem>>, vector<1x128xf32>
    %6 = vector.broadcast %5 : vector<1x128xf32> to vector<2x128xf32>
    %7 = arith.addf %4, %6 : vector<2x128xf32>
    %c0_9 = arith.constant 0 : index
    %c0_10 = arith.constant 0 : index
    %8 = vector.load %arg3[%c0_9, %c0_10] : memref<128x128xf32, #tpu.memory_space<vmem>>, vector<128x128xf32>
    %cst_11 = arith.constant dense<0.000000e+00> : vector<2x128xf32>
    %9 = tpu.matmul %7, %8, %cst_11 {dimension_numbers = #tpu.dot_dimension_numbers<[1], [0], [0], [1], [0, 0, 1, 1], [], []>} : vector<2x128xf32>, vector<128x128xf32>, vector<2x128xf32> -> vector<2x128xf32>
    %c0_12 = arith.constant 0 : index
    %c0_13 = arith.constant 0 : index
    %10 = vector.load %arg4[%c0_12, %c0_13] : memref<1x128xf32, #tpu.memory_space<vmem>>, vector<1x128xf32>
    %11 = vector.broadcast %10 : vector<1x128xf32> to vector<2x128xf32>
    %12 = arith.addf %9, %11 : vector<2x128xf32>
    %c0_14 = arith.constant 0 : index
    %c0_15 = arith.constant 0 : index
    %13 = vector.load %arg5[%c0_14, %c0_15] : memref<2x128xf32, #tpu.memory_space<vmem>>, vector<2x128xf32>
    tpu.vector_store %arg5[%c0_14, %c0_15], %12 {strides = array<i32>} : memref<2x128xf32, #tpu.memory_space<vmem>>, vector<2x128xf32>,
    return
  }
}

</mosaic_0001>

<llo_original>
// kernel: malconv_forward.3
$region0: #{malconv_forward.3}
  #allocation0 [shape = 'u32[]', space=smem, size = 0x4, offset = 0x4, fixed_abs, tag = 'smem constant byte address 0x4 - core index']
  #allocation1 [shape = 'u32[72,128]{1,0:T(1,128)}', space=vmem, size = 0x9000, scoped, tag = 'internal scratch']
  %s0 = inlined_call_operand.vmem [shape: f32[2,2,8,128], index: 0, kind: input, shape index: {}]
  %s1 = inlined_call_operand.vmem [shape: f32[128,128], index: 1, kind: input, shape index: {}]
  %s2 = inlined_call_operand.vmem [shape: f32[1,128], index: 2, kind: input, shape index: {}]
  %s3 = inlined_call_operand.vmem [shape: f32[128,128], index: 3, kind: input, shape index: {}]
  %s4 = inlined_call_operand.vmem [shape: f32[1,128], index: 4, kind: input, shape index: {}]
  %s5 = inlined_call_operand.hbm [shape: f32[2,128], index: 5, kind: output, shape index: {}]
  %s6 = sld [smem:[#allocation0]]
  $region30: #{malconv_forward.3} parent=0
    _
  %s8 = ssub.s32 1, %s6
  %s9 = scalar_select 0, %s8, %s6
  $region1: #{malconv_forward.3} parent=0
    #allocation2 [shape = 'u8[1024]{0}', space=vmem, size = 0x400, scoped, tag = 'output window, operand 0, single buffered']
    #allocation3 [shape = 's32[1]{0}', space=sflag, size = 0x4, scoped, tag = 'scoped memory for malconv_forward.3']
    %10 = vsyncpa [#allocation3], 0
    // Predicated region
    $region2: #{malconv_forward.3} parent=1 // pred_check
      _
    $region3: #{malconv_forward.3} parent=1 // pred_check_branch
      %12 = sbr.rel (0) target = $region5
    $region4: #{malconv_forward.3} parent=1 // pred_region
      _
    $region5: #{malconv_forward.3} parent=1 // pred_fallthru
      _
    // Predicated region
    $region6: #{malconv_forward.3} parent=1 // pred_check
      _
    $region7: #{malconv_forward.3} parent=1 // pred_check_branch
      %14 = sbr.rel (0) target = $region9
    $region8: #{malconv_forward.3} parent=1 // pred_region
      _
    $region9: #{malconv_forward.3} parent=1 // pred_fallthru
      _
    // Predicated region
    $region10: #{malconv_forward.3} parent=1 // pred_check
      _
    $region11: #{malconv_forward.3} parent=1 // pred_check_branch
      %16 = sbr.rel (0) target = $region13
    $region12: #{malconv_forward.3} parent=1 // pred_region
      _
    $region13: #{malconv_forward.3} parent=1 // pred_fallthru
      _
    // Predicated region
    $region14: #{malconv_forward.3} parent=1 // pred_check
      _
    $region15: #{malconv_forward.3} parent=1 // pred_check_branch
      %18 = sbr.rel (0) target = $region17
    $region16: #{malconv_forward.3} parent=1 // pred_region
      _
    $region17: #{malconv_forward.3} parent=1 // pred_fallthru
      _
    // Predicated region
    $region18: #{malconv_forward.3} parent=1 // pred_check
      _
    $region19: #{malconv_forward.3} parent=1 // pred_check_branch
      %20 = sbr.rel (0) target = $region21
    $region20: #{malconv_forward.3} parent=1 // pred_region
      _
    $region21: #{malconv_forward.3} parent=1 // pred_fallthru
      _
    %v21 = vld [vmem:[%s0] sm:$0xff]
    %v22 = vld [vmem:[%s0 + $0x8] sm:$0xff]
    %v23 = vld [vmem:[%s0 + $0x10] sm:$0xff]
    %v24 = vld [vmem:[%s0 + $0x18] sm:$0xff]
    %v25 = vrot.slane %v21, 4
    %v26 = vmax.f32 %v21, %v25
    %v27 = vrot.slane %v26, 2
    %v28 = vmax.f32 %v26, %v27
    %v29 = vrot.slane %v28, 1
    %v30 = vmax.f32 %v28, %v29
    %v31 = vrot.slane %v22, 4
    %v32 = vmax.f32 %v22, %v31
    %v33 = vrot.slane %v32, 2
    %v34 = vmax.f32 %v32, %v33
    %v35 = vrot.slane %v34, 1
    %v36 = vmax.f32 %v34, %v35
    %v37 = vrot.slane %v23, 4
    %v38 = vmax.f32 %v23, %v37
    %v39 = vrot.slane %v38, 2
    %v40 = vmax.f32 %v38, %v39
    %v41 = vrot.slane %v40, 1
    %v42 = vmax.f32 %v40, %v41
    %v43 = vrot.slane %v24, 4
    %v44 = vmax.f32 %v24, %v43
    %v45 = vrot.slane %v44, 2
    %v46 = vmax.f32 %v44, %v45
    %v47 = vrot.slane %v46, 1
    %v48 = vmax.f32 %v46, %v47
    %v49 = vmax.f32 %v30, %v42
    %v50 = vmax.f32 %v36, %v48
    %v51 = vld [vmem:[%s1] sm:$0xff]
    %v52 = vld [vmem:[%s1 + $0x8] sm:$0xff]
    %v53 = vld [vmem:[%s1 + $0x10] sm:$0xff]
    %v54 = vld [vmem:[%s1 + $0x18] sm:$0xff]
    %v55 = vld [vmem:[%s1 + $0x20] sm:$0xff]
    %v56 = vld [vmem:[%s1 + $0x28] sm:$0xff]
    %v57 = vld [vmem:[%s1 + $0x30] sm:$0xff]
    %v58 = vld [vmem:[%s1 + $0x38] sm:$0xff]
    %v59 = vld [vmem:[%s1 + $0x40] sm:$0xff]
    %v60 = vld [vmem:[%s1 + $0x48] sm:$0xff]
    %v61 = vld [vmem:[%s1 + $0x50] sm:$0xff]
    %v62 = vld [vmem:[%s1 + $0x58] sm:$0xff]
    %v63 = vld [vmem:[%s1 + $0x60] sm:$0xff]
    %v64 = vld [vmem:[%s1 + $0x68] sm:$0xff]
    %v65 = vld [vmem:[%s1 + $0x70] sm:$0xff]
    %v66 = vld [vmem:[%s1 + $0x78] sm:$0xff]
    %v67 = vld [vmem:[%s2] sm:$0x1]
    %v69 = vperm.slane %v67, 0
    %vm73 = vcmask 1041409
    %v74 = vsel %vm73, %v50, %v49
    %76 = vmatpush.msra.mxu0 %v66
    %77 = vmatpush.msra.mxu0 %v65
    %78 = vmatpush.msra.mxu0 %v64
    %79 = vmatpush.msra.mxu0 %v63
    %80 = vmatpush.msra.mxu0 %v62
    %81 = vmatpush.msra.mxu0 %v61
    %82 = vmatpush.msra.mxu0 %v60
    %83 = vmatpush.msra.mxu0 %v59
    %84 = vmatpush.msra.mxu0 %v58
    %85 = vmatpush.msra.mxu0 %v57
    %86 = vmatpush.msra.mxu0 %v56
    %87 = vmatpush.msra.mxu0 %v55
    %88 = vmatpush.msra.mxu0 %v54
    %89 = vmatpush.msra.mxu0 %v53
    %90 = vmatpush.msra.mxu0 %v52
    %91 = vmatpush.msra.mxu0 %v51
    %92 = vmatmul.f32.gmra.mxu0 %v74
    %v93 = vpop.f32.mrf.mxu0
    %v94 = vadd.f32 %v69, %v93
    %95 = vdwg.mxu0
    %v96 = vld [vmem:[%s3] sm:$0xff]
    %v97 = vld [vmem:[%s3 + $0x8] sm:$0xff]
    %v98 = vld [vmem:[%s3 + $0x10] sm:$0xff]
    %v99 = vld [vmem:[%s3 + $0x18] sm:$0xff]
    %v100 = vld [vmem:[%s3 + $0x20] sm:$0xff]
    %v101 = vld [vmem:[%s3 + $0x28] sm:$0xff]
    %v102 = vld [vmem:[%s3 + $0x30] sm:$0xff]
    %v103 = vld [vmem:[%s3 + $0x38] sm:$0xff]
    %v104 = vld [vmem:[%s3 + $0x40] sm:$0xff]
    %v105 = vld [vmem:[%s3 + $0x48] sm:$0xff]
    %v106 = vld [vmem:[%s3 + $0x50] sm:$0xff]
    %v107 = vld [vmem:[%s3 + $0x58] sm:$0xff]
    %v108 = vld [vmem:[%s3 + $0x60] sm:$0xff]
    %v109 = vld [vmem:[%s3 + $0x68] sm:$0xff]
    %v110 = vld [vmem:[%s3 + $0x70] sm:$0xff]
    %v111 = vld [vmem:[%s3 + $0x78] sm:$0xff]
    %v112 = vld [vmem:[%s4] sm:$0x1]
    %v114 = vperm.slane %v112, 0
    %116 = vmatpush.msra.mxu0 %v111
    %117 = vmatpush.msra.mxu0 %v110
    %118 = vmatpush.msra.mxu0 %v109
    %119 = vmatpush.msra.mxu0 %v108
    %120 = vmatpush.msra.mxu0 %v107
    %121 = vmatpush.msra.mxu0 %v106
    %122 = vmatpush.msra.mxu0 %v105
    %123 = vmatpush.msra.mxu0 %v104
    %124 = vmatpush.msra.mxu0 %v103
    %125 = vmatpush.msra.mxu0 %v102
    %126 = vmatpush.msra.mxu0 %v101
    %127 = vmatpush.msra.mxu0 %v100
    %128 = vmatpush.msra.mxu0 %v99
    %129 = vmatpush.msra.mxu0 %v98
    %130 = vmatpush.msra.mxu0 %v97
    %131 = vmatpush.msra.mxu0 %v96
    %132 = vmatmul.f32.gmra.mxu0 %v94
    %v133 = vpop.f32.mrf.mxu0
    %v134 = vadd.f32 %v114, %v133
    %135 = vdwg.mxu0
    %136 = vst [vmem:[#allocation2] sm:$0x3] %v134
    // Predicated region
    $region22: #{malconv_forward.3} parent=1 // pred_check
      _
    $region23: #{malconv_forward.3} parent=1 // pred_check_branch
      %138 = sbr.rel (0) target = $region25
    $region24: #{malconv_forward.3} parent=1 // pred_region
      %140 = vsyncadd [#allocation3], 0
      %s142 = sshll.u32 [#allocation2], 4
      %s143 = int_to_ptr.vmem [resolvable:$true] %s142
      %s144 = sshll.u32 %s5, 4
      %s145 = int_to_ptr.hbm [resolvable:$true] %s144
      %147 = dma.vmem_to_hbm [thread:$0]  %s143, 32, %s145, [#allocation3]
    $region25: #{malconv_forward.3} parent=1 // pred_fallthru
      _
    // Predicated region
    $region26: #{malconv_forward.3} parent=1 // pred_check
      _
    $region27: #{malconv_forward.3} parent=1 // pred_check_branch
      %149 = sbr.rel (0) target = $region29
    $region28: #{malconv_forward.3} parent=1 // pred_region
      %151 = dma.done [#allocation3], 32
    $region29: #{malconv_forward.3} parent=1 // pred_fallthru
      _
    %152 = vsyncpa [#allocation3], 1

// kernel: malconv_forward.2
$region0: #{malconv_forward.2}
  #allocation0 [shape = 'u32[]', space=smem, size = 0x4, offset = 0x4, fixed_abs, tag = 'smem constant byte address 0x4 - core index']
  #allocation1 [shape = 'u32[72,128]{1,0:T(1,128)}', space=vmem, size = 0x9000, scoped, tag = 'internal scratch']
  #allocation2 [shape = 'f32[8,128]{1,0:T(8,128)}', space=vmem, size = 0x1000, scoped, tag = 'scratch operand']
  %s0 = inlined_call_operand.vmem [shape: bf16[2,64,4000], index: 0, kind: input, shape index: {}]
  %s1 = inlined_call_operand.vmem [shape: bf16[4000,256], index: 1, kind: input, shape index: {}]
  %s2 = inlined_call_operand.vmem [shape: f32[1,256], index: 2, kind: input, shape index: {}]
  %s3 = inlined_call_operand.vmem [shape: f32[2,2,8,128], index: 3, kind: output, shape index: {}]
  %s4 = sld [smem:[#allocation0]]
  $region53: #{malconv_forward.2} parent=0
    _
  %s6 = ssub.s32 1, %s4
  %s7 = scalar_select 0, %s6, %s4
  loop: start=0, step=1, limit=10
  $region2: #{malconv_forward.2} parent=0 // loop_pre_header
    _
  $region3: #{malconv_forward.2} parent=0 // loop_header
    %s9 = sphi 0, %s13
    %p10 = scmp.ge.s32.totalorder %s9, 10
    %s16 = sphi 0, %s35
    %s17 = sphi 0, %s31
    %s18 = sphi 0, %s27
    %s19 = sphi 0, %s16
    %s20 = sphi 0, %s17
    %s21 = sphi 0, %s18
    %s22 = sphi 0, %s19
    %s23 = sphi 0, %s20
    %s24 = sphi 0, %s21
    %s44 = sphi 0, %s46
    %s47 = sphi 0, %s44
    %s48 = sphi 0, %s47
    %s64 = sphi 0, %s48
    %s68 = sphi 0, %s68
    %s70 = sphi 0, %s68
    %s71 = sphi 0, %s70
    %s85 = sphi 0, %s71
    %s89 = sphi 0, %s89
    %s91 = sphi 0, %s89
    %s92 = sphi 0, %s91
    %s106 = sphi 0, %s92
    %s114 = sphi 0, %s116
    %s117 = sphi 0, %s114
    %s118 = sphi 0, %s117
    %s134 = sphi 0, %s118
  $region4: #{malconv_forward.2} parent=0 // loop_header_branch
    %12 = sbr.rel (%p10) target = $region8
  $region5: #{malconv_forward.2} parent=0 // loop_body
    %s14 = ssub.s32 %s9, 1
    %s15 = ssub.s32 %s9, 2
    %s25 = sadd.s32 1, %s18
    %p26 = scmp.ge.s32.totalorder %s25, 2
    %s27 = scalar_select %p26, 0, %s25
    %s28 = sadd.s32 1, %s17
    %s29 = scalar_select %p26, %s28, %s17
    %p30 = scmp.ge.s32.totalorder %s29, 2
    %s31 = scalar_select %p30, 0, %s29
    %s32 = sadd.s32 1, %s16
    %s33 = scalar_select %p30, %s32, %s16
    %p34 = scmp.ge.s32.totalorder %s33, 2
    %s35 = scalar_select %p34, 0, %s33
    %s36 = smul.u32 %s16, 2
    %s37 = sadd.s32 %s36, %s18
    %s38 = smul.u32 %s35, 2
    %s39 = sadd.s32 %s38, %s27
    %s40 = ssub.s32 %s17, %s31
    %s41 = ssub.s32 %s37, %s39
    %s42 = sor.u32 %s40, %s41
    %p43 = scmp.eq.s32.totalorder %s42, 0
    %s45 = sadd.s32 %s44, 1
    %s46 = scalar_select %p43, %s44, %s45
    %p49 = pneg %p43
    %p50 = scmp.eq.s32.totalorder %s9, 7
    %p51 = por %p49, %p50
    %p52 = scmp.ne.s32.totalorder %s44, %s47
    %p53 = scmp.eq.s32.totalorder %s9, 0
    %p54 = por %p52, %p53
    %p55 = scmp.ne.s32.totalorder %s44, %s47
    %p56 = scmp.eq.s32.totalorder %s14, 7
    %p57 = por %p55, %p56
    %p58 = scmp.ne.s32.totalorder %s47, %s48
    %p59 = scmp.eq.s32.totalorder %s14, 0
    %p60 = por %p58, %p59
    %p61 = scmp.ne.s32.totalorder %s47, %s48
    %p62 = scmp.eq.s32.totalorder %s15, 7
    %p63 = por %p61, %p62
    %p65 = scmp.ne.s32.totalorder %s48, %s64
    %p66 = scmp.eq.s32.totalorder %s15, 0
    %p67 = por %p65, %p66
    %s69 = sadd.s32 %s68, 1
    %p72 = scmp.eq.s32.totalorder %s9, 7
    %p73 = scmp.ne.s32.totalorder %s68, %s70
    %p74 = scmp.eq.s32.totalorder %s9, 0
    %p75 = por %p73, %p74
    %p76 = scmp.ne.s32.totalorder %s68, %s70
    %p77 = scmp.eq.s32.totalorder %s14, 7
    %p78 = por %p76, %p77
    %p79 = scmp.ne.s32.totalorder %s70, %s71
    %p80 = scmp.eq.s32.totalorder %s14, 0
    %p81 = por %p79, %p80
    %p82 = scmp.ne.s32.totalorder %s70, %s71
    %p83 = scmp.eq.s32.totalorder %s15, 7
    %p84 = por %p82, %p83
    %p86 = scmp.ne.s32.totalorder %s71, %s85
    %p87 = scmp.eq.s32.totalorder %s15, 0
    %p88 = por %p86, %p87
    %s90 = sadd.s32 %s89, 1
    %p93 = scmp.eq.s32.totalorder %s9, 7
    %p94 = scmp.ne.s32.totalorder %s89, %s91
    %p95 = scmp.eq.s32.totalorder %s9, 0
    %p96 = por %p94, %p95
    %p97 = scmp.ne.s32.totalorder %s89, %s91
    %p98 = scmp.eq.s32.totalorder %s14, 7
    %p99 = por %p97, %p98
    %p100 = scmp.ne.s32.totalorder %s91, %s92
    %p101 = scmp.eq.s32.totalorder %s14, 0
    %p102 = por %p100, %p101
    %p103 = scmp.ne.s32.totalorder %s91, %s92
    %p104 = scmp.eq.s32.totalorder %s15, 7
    %p105 = por %p103, %p104
    %p107 = scmp.ne.s32.totalorder %s92, %s106
    %p108 = scmp.eq.s32.totalorder %s15, 0
    %p109 = por %p107, %p108
    %s110 = ssub.s32 %s16, %s35
    %s111 = ssub.s32 %s17, %s31
    %s112 = sor.u32 %s110, %s111
    %p113 = scmp.eq.s32.totalorder %s112, 0
    %s115 = sadd.s32 %s114, 1
    %s116 = scalar_select %p113, %s114, %s115
    %p119 = pneg %p113
    %p120 = scmp.eq.s32.totalorder %s9, 7
    %p121 = por %p119, %p120
    %p122 = scmp.ne.s32.totalorder %s114, %s117
    %p123 = scmp.eq.s32.totalorder %s9, 0
    %p124 = por %p122, %p123
    %p125 = scmp.ne.s32.totalorder %s114, %s117
    %p126 = scmp.eq.s32.totalorder %s14, 7
    %p127 = por %p125, %p126
    %p128 = scmp.ne.s32.totalorder %s117, %s118
    %p129 = scmp.eq.s32.totalorder %s14, 0
    %p130 = por %p128, %p129
    %p131 = scmp.ne.s32.totalorder %s117, %s118
    %p132 = scmp.eq.s32.totalorder %s15, 7
    %p133 = por %p131, %p132
    %p135 = scmp.ne.s32.totalorder %s118, %s134
    %p136 = scmp.eq.s32.totalorder %s15, 0
    %p137 = por %p135, %p136
    %p138 = scmp.le.s32.totalorder 1, %s9
    %p139 = scmp.lt.s32.totalorder %s9, 9
    %p140 = pnand %p138, %p139
    %p141 = pneg %p140
    // Predicated region
    $region9: #{malconv_forward.2} parent=5 // pred_check
      _
    $region10: #{malconv_forward.2} parent=5 // pred_check_branch
      %143 = sbr.rel (%p140) target = $region12
    $region11: #{malconv_forward.2} parent=5 // pred_region
      %s144 = ssub.s32 %s9, 1
      // Predicated region
      $region13: #{malconv_forward.2} parent=11 // pred_check
        %p145 = pneg %p81
      $region14: #{malconv_forward.2} parent=11 // pred_check_branch
        %147 = sbr.rel (%p145) target = $region16
      $region15: #{malconv_forward.2} parent=11 // pred_region
        _
      $region16: #{malconv_forward.2} parent=11 // pred_fallthru
        _
      // Predicated region
      $region17: #{malconv_forward.2} parent=11 // pred_check
        %p148 = pneg %p102
      $region18: #{malconv_forward.2} parent=11 // pred_check_branch
        %150 = sbr.rel (%p148) target = $region20
      $region19: #{malconv_forward.2} parent=11 // pred_region
        _
      $region20: #{malconv_forward.2} parent=11 // pred_fallthru
        _
    $region12: #{malconv_forward.2} parent=5 // pred_fallthru
      _
    %p151 = scmp.lt.s32.totalorder %s9, 8
    // Predicated region
    $region21: #{malconv_forward.2} parent=5 // pred_check
      %p152 = pneg %p151
    $region22: #{malconv_forward.2} parent=5 // pred_check_branch
      %154 = sbr.rel (%p152) target = $region24
    $region23: #{malconv_forward.2} parent=5 // pred_region
      // Predicated region
      $region25: #{malconv_forward.2} parent=23 // pred_check
        %p155 = pneg %p54
      $region26: #{malconv_forward.2} parent=23 // pred_check_branch
        %157 = sbr.rel (%p155) target = $region28
      $region27: #{malconv_forward.2} parent=23 // pred_region
        %s158 = smul.u32 %s16, 2
        %s159 = sadd.s32 %s158, %s18
        %s160 = smul.u32 2, %s159
        %p161 = scmp.lt.s32.totalorder %s17, 1
        %s162 = scalar_select %p161, %s17, 1
        %p163 = scmp.lt.s32.totalorder %s160, 7
        %s164 = scalar_select %p163, %s160, 7
        %s165 = smul.addr %s164, 32
        %s166 = smul.addr %s162, 256
        %s167 = sadd.s32 %s165, %s166
        %s168 = smul.addr %s167, 4
        %s169 = scalar_lea.vmem %s0, %s168
        %s170 = smul.u32 %s16, 2
        %s171 = sadd.s32 %s170, %s18
        %s172 = smul.u32 2, %s171
      $region28: #{malconv_forward.2} parent=23 // pred_fallthru
        _
    $region24: #{malconv_forward.2} parent=5 // pred_fallthru
      _
    %p173 = scmp.le.s32.totalorder 1, %s9
    %p174 = scmp.lt.s32.totalorder %s9, 9
    %p175 = pnand %p173, %p174
    %p176 = pneg %p175
    // Predicated region
    $region29: #{malconv_forward.2} parent=5 // pred_check
      _
    $region30: #{malconv_forward.2} parent=5 // pred_check_branch
      %178 = sbr.rel (%p175) target = $region32
    $region31: #{malconv_forward.2} parent=5 // pred_region
      %s179 = ssub.s32 %s9, 1
      %s180 = smul.u32 %s19, 2
      %s181 = sadd.s32 %s180, %s21
      %s182 = smul.u32 2, %s181
      %p183 = scmp.lt.s32.totalorder %s20, 1
      %s184 = scalar_select %p183, %s20, 1
      %p185 = scmp.lt.s32.totalorder %s182, 7
      %s186 = scalar_select %p185, %s182, 7
      %s187 = smul.addr %s186, 32
      %s188 = smul.addr %s184, 256
      %s189 = sadd.s32 %s187, %s188
      %s190 = smul.addr %s189, 4
      %s191 = scalar_lea.vmem %s0, %s190
      %p192 = pneg %p60
      %p193 = pneg %p57
      %p194 = pneg %p81
      %p195 = pneg %p78
      %p196 = pneg %p102
      %p197 = pneg %p99
      %p198 = pneg %p130
      %p199 = pneg %p127
      %p200 = scmp.lt.s32.totalorder %s19, 1
      %s201 = scalar_select %p200, %s19, 1
      %p202 = scmp.lt.s32.totalorder %s20, 1
      %s203 = scalar_select %p202, %s20, 1
      %s204 = smul.addr %s201, 2
      %s205 = sadd.s32 %s203, %s204
      %s206 = smul.addr %s205, 8
      %s207 = scalar_lea.vmem %s3, %s206
      %s208 = smul.u32 %s19, 2
      %s209 = sadd.s32 %s208, %s21
      %s210 = smul.u32 2, %s209
      %p211 = scmp.lt.s32.totalorder %s20, 1
      %s212 = scalar_select %p211, %s20, 1
      %p213 = scmp.lt.s32.totalorder %s210, 7
      %s214 = scalar_select %p213, %s210, 7
      %s215 = smul.addr %s214, 32
      %s216 = smul.addr %s212, 256
      %s217 = sadd.s32 %s215, %s216
      %s218 = smul.addr %s217, 4
      %s219 = scalar_lea.vmem %s0, %s218
      %s220 = smul.u32 %s19, 2
      %s221 = sadd.s32 %s220, %s21
      %s222 = smul.u32 2, %s221
      %p223 = scmp.lt.s32.totalorder %s19, 1
      %s224 = scalar_select %p223, %s19, 1
      %p225 = scmp.lt.s32.totalorder %s20, 1
      %s226 = scalar_select %p225, %s20, 1
      %s227 = smul.addr %s224, 2
      %s228 = sadd.s32 %s226, %s227
      %s229 = smul.addr %s228, 8
      %s230 = scalar_lea.vmem %s3, %s229
      %p232 = scmp.eq.s32.totalorder %s21, 0
      // Predicated region
      $region33: #{malconv_forward.2} parent=31 // pred_check
        %p233 = pneg %p232
      $region34: #{malconv_forward.2} parent=31 // pred_check_branch
        %235 = sbr.rel (%p233) target = $region36
      $region35: #{malconv_forward.2} parent=31 // pred_region
        %236 = vst [vmem:[#allocation2] sm:$0xff] -inf
      $region36: #{malconv_forward.2} parent=31 // pred_fallthru
        _
      %v237 = vld [vmem:[%s219] sm:$0xff]
      %v238 = vld [vmem:[%s219 + $0x8] sm:$0xff]
      %v239 = vld [vmem:[%s219 + $0x10] sm:$0xff]
      %v240 = vld [vmem:[%s219 + $0x18] sm:$0xff]
      %v241 = vld [vmem:[%s219 + $0x20] sm:$0xff]
      %v242 = vld [vmem:[%s219 + $0x28] sm:$0xff]
      %v243 = vld [vmem:[%s219 + $0x30] sm:$0xff]
      %v244 = vld [vmem:[%s219 + $0x38] sm:$0xff]
      %v245 = vld [vmem:[%s219 + $0x40] sm:$0xff]
      %v246 = vld [vmem:[%s219 + $0x48] sm:$0xff]
      %v247 = vld [vmem:[%s219 + $0x50] sm:$0xff]
      %v248 = vld [vmem:[%s219 + $0x58] sm:$0xff]
      %v249 = vld [vmem:[%s219 + $0x60] sm:$0xff]
      %v250 = vld [vmem:[%s219 + $0x68] sm:$0xff]
      %v251 = vld [vmem:[%s219 + $0x70] sm:$0xff]
      %v252 = vld [vmem:[%s219 + $0x78] sm:$0xff]
      %v253 = vld [vmem:[%s219 + $0x80] sm:$0xff]
      %v254 = vld [vmem:[%s219 + $0x88] sm:$0xff]
      %v255 = vld [vmem:[%s219 + $0x90] sm:$0xff]
      %v256 = vld [vmem:[%s219 + $0x98] sm:$0xff]
      %v257 = vld [vmem:[%s219 + $0xa0] sm:$0xff]
      %v258 = vld [vmem:[%s219 + $0xa8] sm:$0xff]
      %v259 = vld [vmem:[%s219 + $0xb0] sm:$0xff]
      %v260 = vld [vmem:[%s219 + $0xb8] sm:$0xff]
      %v261 = vld [vmem:[%s219 + $0xc0] sm:$0xff]
      %v262 = vld [vmem:[%s219 + $0xc8] sm:$0xff]
      %v263 = vld [vmem:[%s219 + $0xd0] sm:$0xff]
      %v264 = vld [vmem:[%s219 + $0xd8] sm:$0xff]
      %v265 = vld [vmem:[%s219 + $0xe0] sm:$0xff]
      %v266 = vld [vmem:[%s219 + $0xe8] sm:$0xff]
      %v267 = vld [vmem:[%s219 + $0xf0] sm:$0xff]
      %v268 = vld [vmem:[%s219 + $0xf8] sm:$0xff]
      %v269 = vld [vmem:[%s1] sm:$0xff]
      %v270 = vld [vmem:[%s1 + $0x8] sm:$0xff]
      %v271 = vld [vmem:[%s1 + $0x10] sm:$0xff]
      %v272 = vld [vmem:[%s1 + $0x18] sm:$0xff]
      %v273 = vld [vmem:[%s1 + $0x20] sm:$0xff]
      %v274 = vld [vmem:[%s1 + $0x28] sm:$0xff]
      %v275 = vld [vmem:[%s1 + $0x30] sm:$0xff]
      %v276 = vld [vmem:[%s1 + $0x38] sm:$0xff]
      %v277 = vld [vmem:[%s1 + $0x40] sm:$0xff]
      %v278 = vld [vmem:[%s1 + $0x48] sm:$0xff]
      %v279 = vld [vmem:[%s1 + $0x50] sm:$0xff]
      %v280 = vld [vmem:[%s1 + $0x58] sm:$0xff]
      %v281 = vld [vmem:[%s1 + $0x60] sm:$0xff]
      %v282 = vld [vmem:[%s1 + $0x68] sm:$0xff]
      %v283 = vld [vmem:[%s1 + $0x70] sm:$0xff]
      %v284 = vld [vmem:[%s1 + $0x78] sm:$0xff]
      %v285 = vld [vmem:[%s1 + $0x80] sm:$0xff]
      %v286 = vld [vmem:[%s1 + $0x88] sm:$0xff]
      %v287 = vld [vmem:[%s1 + $0x90] sm:$0xff]
      %v288 = vld [vmem:[%s1 + $0x98] sm:$0xff]
      %v289 = vld [vmem:[%s1 + $0xa0] sm:$0xff]
      %v290 = vld [vmem:[%s1 + $0xa8] sm:$0xff]
      %v291 = vld [vmem:[%s1 + $0xb0] sm:$0xff]
      %v292 = vld [vmem:[%s1 + $0xb8] sm:$0xff]
      %v293 = vld [vmem:[%s1 + $0xc0] sm:$0xff]
      %v294 = vld [vmem:[%s1 + $0xc8] sm:$0xff]
      %v295 = vld [vmem:[%s1 + $0xd0] sm:$0xff]
      %v296 = vld [vmem:[%s1 + $0xd8] sm:$0xff]
      %v297 = vld [vmem:[%s1 + $0xe0] sm:$0xff]
      %v298 = vld [vmem:[%s1 + $0xe8] sm:$0xff]
      %v299 = vld [vmem:[%s1 + $0xf0] sm:$0xff]
      %v300 = vld [vmem:[%s1 + $0xf8] sm:$0xff]
      %v301 = vld [vmem:[%s1 + $0x100] sm:$0xff]
      %v302 = vld [vmem:[%s1 + $0x108] sm:$0xff]
      %v303 = vld [vmem:[%s1 + $0x110] sm:$0xff]
      %v304 = vld [vmem:[%s1 + $0x118] sm:$0xff]
      %v305 = vld [vmem:[%s1 + $0x120] sm:$0xff]
      %v306 = vld [vmem:[%s1 + $0x128] sm:$0xff]
      %v307 = vld [vmem:[%s1 + $0x130] sm:$0xff]
      %v308 = vld [vmem:[%s1 + $0x138] sm:$0xff]
      %v309 = vld [vmem:[%s1 + $0x140] sm:$0xff]
      %v310 = vld [vmem:[%s1 + $0x148] sm:$0xff]
      %v311 = vld [vmem:[%s1 + $0x150] sm:$0xff]
      %v312 = vld [vmem:[%s1 + $0x158] sm:$0xff]
      %v313 = vld [vmem:[%s1 + $0x160] sm:$0xff]
      %v314 = vld [vmem:[%s1 + $0x168] sm:$0xff]
      %v315 = vld [vmem:[%s1 + $0x170] sm:$0xff]
      %v316 = vld [vmem:[%s1 + $0x178] sm:$0xff]
      %v317 = vld [vmem:[%s1 + $0x180] sm:$0xff]
      %v318 = vld [vmem:[%s1 + $0x188] sm:$0xff]
      %v319 = vld [vmem:[%s1 + $0x190] sm:$0xff]
      %v320 = vld [vmem:[%s1 + $0x198] sm:$0xff]
      %v321 = vld [vmem:[%s1 + $0x1a0] sm:$0xff]
      %v322 = vld [vmem:[%s1 + $0x1a8] sm:$0xff]
      %v323 = vld [vmem:[%s1 + $0x1b0] sm:$0xff]
      %v324 = vld [vmem:[%s1 + $0x1b8] sm:$0xff]
      %v325 = vld [vmem:[%s1 + $0x1c0] sm:$0xff]
      %v326 = vld [vmem:[%s1 + $0x1c8] sm:$0xff]
      %v327 = vld [vmem:[%s1 + $0x1d0] sm:$0xff]
      %v328 = vld [vmem:[%s1 + $0x1d8] sm:$0xff]
      %v329 = vld [vmem:[%s1 + $0x1e0] sm:$0xff]
      %v330 = vld [vmem:[%s1 + $0x1e8] sm:$0xff]
      %v331 = vld [vmem:[%s1 + $0x1f0] sm:$0xff]
      %v332 = vld [vmem:[%s1 + $0x1f8] sm:$0xff]
      %v333 = vld [vmem:[%s1 + $0x200] sm:$0xff]
      %v334 = vld [vmem:[%s1 + $0x208] sm:$0xff]
      %v335 = vld [vmem:[%s1 + $0x210] sm:$0xff]
      %v336 = vld [vmem:[%s1 + $0x218] sm:$0xff]
      %v337 = vld [vmem:[%s1 + $0x220] sm:$0xff]
      %v338 = vld [vmem:[%s1 + $0x228] sm:$0xff]
      %v339 = vld [vmem:[%s1 + $0x230] sm:$0xff]
      %v340 = vld [vmem:[%s1 + $0x238] sm:$0xff]
      %v341 = vld [vmem:[%s1 + $0x240] sm:$0xff]
      %v342 = vld [vmem:[%s1 + $0x248] sm:$0xff]
      %v343 = vld [vmem:[%s1 + $0x250] sm:$0xff]
      %v344 = vld [vmem:[%s1 + $0x258] sm:$0xff]
      %v345 = vld [vmem:[%s1 + $0x260] sm:$0xff]
      %v346 = vld [vmem:[%s1 + $0x268] sm:$0xff]
      %v347 = vld [vmem:[%s1 + $0x270] sm:$0xff]
      %v348 = vld [vmem:[%s1 + $0x278] sm:$0xff]
      %v349 = vld [vmem:[%s1 + $0x280] sm:$0xff]
      %v350 = vld [vmem:[%s1 + $0x288] sm:$0xff]
      %v351 = vld [vmem:[%s1 + $0x290] sm:$0xff]
      %v352 = vld [vmem:[%s1 + $0x298] sm:$0xff]
      %v353 = vld [vmem:[%s1 + $0x2a0] sm:$0xff]
      %v354 = vld [vmem:[%s1 + $0x2a8] sm:$0xff]
      %v355 = vld [vmem:[%s1 + $0x2b0] sm:$0xff]
      %v356 = vld [vmem:[%s1 + $0x2b8] sm:$0xff]
      %v357 = vld [vmem:[%s1 + $0x2c0] sm:$0xff]
      %v358 = vld [vmem:[%s1 + $0x2c8] sm:$0xff]
      %v359 = vld [vmem:[%s1 + $0x2d0] sm:$0xff]
      %v360 = vld [vmem:[%s1 + $0x2d8] sm:$0xff]
      %v361 = vld [vmem:[%s1 + $0x2e0] sm:$0xff]
      %v362 = vld [vmem:[%s1 + $0x2e8] sm:$0xff]
      %v363 = vld [vmem:[%s1 + $0x2f0] sm:$0xff]
      %v364 = vld [vmem:[%s1 + $0x2f8] sm:$0xff]
      %v365 = vld [vmem:[%s1 + $0x300] sm:$0xff]
      %v366 = vld [vmem:[%s1 + $0x308] sm:$0xff]
      %v367 = vld [vmem:[%s1 + $0x310] sm:$0xff]
      %v368 = vld [vmem:[%s1 + $0x318] sm:$0xff]
      %v369 = vld [vmem:[%s1 + $0x320] sm:$0xff]
      %v370 = vld [vmem:[%s1 + $0x328] sm:$0xff]
      %v371 = vld [vmem:[%s1 + $0x330] sm:$0xff]
      %v372 = vld [vmem:[%s1 + $0x338] sm:$0xff]
      %v373 = vld [vmem:[%s1 + $0x340] sm:$0xff]
      %v374 = vld [vmem:[%s1 + $0x348] sm:$0xff]
      %v375 = vld [vmem:[%s1 + $0x350] sm:$0xff]
      %v376 = vld [vmem:[%s1 + $0x358] sm:$0xff]
      %v377 = vld [vmem:[%s1 + $0x360] sm:$0xff]
      %v378 = vld [vmem:[%s1 + $0x368] sm:$0xff]
      %v379 = vld [vmem:[%s1 + $0x370] sm:$0xff]
      %v380 = vld [vmem:[%s1 + $0x378] sm:$0xff]
      %v381 = vld [vmem:[%s1 + $0x380] sm:$0xff]
      %v382 = vld [vmem:[%s1 + $0x388] sm:$0xff]
      %v383 = vld [vmem:[%s1 + $0x390] sm:$0xff]
      %v384 = vld [vmem:[%s1 + $0x398] sm:$0xff]
      %v385 = vld [vmem:[%s1 + $0x3a0] sm:$0xff]
      %v386 = vld [vmem:[%s1 + $0x3a8] sm:$0xff]
      %v387 = vld [vmem:[%s1 + $0x3b0] sm:$0xff]
      %v388 = vld [vmem:[%s1 + $0x3b8] sm:$0xff]
      %v389 = vld [vmem:[%s1 + $0x3c0] sm:$0xff]
      %v390 = vld [vmem:[%s1 + $0x3c8] sm:$0xff]
      %v391 = vld [vmem:[%s1 + $0x3d0] sm:$0xff]
      %v392 = vld [vmem:[%s1 + $0x3d8] sm:$0xff]
      %v393 = vld [vmem:[%s1 + $0x3e0] sm:$0xff]
      %v394 = vld [vmem:[%s1 + $0x3e8] sm:$0xff]
      %v395 = vld [vmem:[%s1 + $0x3f0] sm:$0xff]
      %v396 = vld [vmem:[%s1 + $0x3f8] sm:$0xff]
      %v397 = vld [vmem:[%s1 + $0x400] sm:$0xff]
      %v398 = vld [vmem:[%s1 + $0x408] sm:$0xff]
      %v399 = vld [vmem:[%s1 + $0x410] sm:$0xff]
      %v400 = vld [vmem:[%s1 + $0x418] sm:$0xff]
      %v401 = vld [vmem:[%s1 + $0x420] sm:$0xff]
      %v402 = vld [vmem:[%s1 + $0x428] sm:$0xff]
      %v403 = vld [vmem:[%s1 + $0x430] sm:$0xff]
      %v404 = vld [vmem:[%s1 + $0x438] sm:$0xff]
      %v405 = vld [vmem:[%s1 + $0x440] sm:$0xff]
      %v406 = vld [vmem:[%s1 + $0x448] sm:$0xff]
      %v407 = vld [vmem:[%s1 + $0x450] sm:$0xff]
      %v408 = vld [vmem:[%s1 + $0x458] sm:$0xff]
      %v409 = vld [vmem:[%s1 + $0x460] sm:$0xff]
      %v410 = vld [vmem:[%s1 + $0x468] sm:$0xff]
      %v411 = vld [vmem:[%s1 + $0x470] sm:$0xff]
      %v412 = vld [vmem:[%s1 + $0x478] sm:$0xff]
      %v413 = vld [vmem:[%s1 + $0x480] sm:$0xff]
      %v414 = vld [vmem:[%s1 + $0x488] sm:$0xff]
      %v415 = vld [vmem:[%s1 + $0x490] sm:$0xff]
      %v416 = vld [vmem:[%s1 + $0x498] sm:$0xff]
      %v417 = vld [vmem:[%s1 + $0x4a0] sm:$0xff]
      %v418 = vld [vmem:[%s1 + $0x4a8] sm:$0xff]
      %v419 = vld [vmem:[%s1 + $0x4b0] sm:$0xff]
      %v420 = vld [vmem:[%s1 + $0x4b8] sm:$0xff]
      %v421 = vld [vmem:[%s1 + $0x4c0] sm:$0xff]
      %v422 = vld [vmem:[%s1 + $0x4c8] sm:$0xff]
      %v423 = vld [vmem:[%s1 + $0x4d0] sm:$0xff]
      %v424 = vld [vmem:[%s1 + $0x4d8] sm:$0xff]
      %v425 = vld [vmem:[%s1 + $0x4e0] sm:$0xff]
      %v426 = vld [vmem:[%s1 + $0x4e8] sm:$0xff]
      %v427 = vld [vmem:[%s1 + $0x4f0] sm:$0xff]
      %v428 = vld [vmem:[%s1 + $0x4f8] sm:$0xff]
      %v429 = vld [vmem:[%s1 + $0x500] sm:$0xff]
      %v430 = vld [vmem:[%s1 + $0x508] sm:$0xff]
      %v431 = vld [vmem:[%s1 + $0x510] sm:$0xff]
      %v432 = vld [vmem:[%s1 + $0x518] sm:$0xff]
      %v433 = vld [vmem:[%s1 + $0x520] sm:$0xff]
      %v434 = vld [vmem:[%s1 + $0x528] sm:$0xff]
      %v435 = vld [vmem:[%s1 + $0x530] sm:$0xff]
      %v436 = vld [vmem:[%s1 + $0x538] sm:$0xff]
      %v437 = vld [vmem:[%s1 + $0x540] sm:$0xff]
      %v438 = vld [vmem:[%s1 + $0x548] sm:$0xff]
      %v439 = vld [vmem:[%s1 + $0x550] sm:$0xff]
      %v440 = vld [vmem:[%s1 + $0x558] sm:$0xff]
      %v441 = vld [vmem:[%s1 + $0x560] sm:$0xff]
      %v442 = vld [vmem:[%s1 + $0x568] sm:$0xff]
      %v443 = vld [vmem:[%s1 + $0x570] sm:$0xff]
      %v444 = vld [vmem:[%s1 + $0x578] sm:$0xff]
      %v445 = vld [vmem:[%s1 + $0x580] sm:$0xff]
      %v446 = vld [vmem:[%s1 + $0x588] sm:$0xff]
      %v447 = vld [vmem:[%s1 + $0x590] sm:$0xff]
      %v448 = vld [vmem:[%s1 + $0x598] sm:$0xff]
      %v449 = vld [vmem:[%s1 + $0x5a0] sm:$0xff]
      %v450 = vld [vmem:[%s1 + $0x5a8] sm:$0xff]
      %v451 = vld [vmem:[%s1 + $0x5b0] sm:$0xff]
      %v452 = vld [vmem:[%s1 + $0x5b8] sm:$0xff]
      %v453 = vld [vmem:[%s1 + $0x5c0] sm:$0xff]
      %v454 = vld [vmem:[%s1 + $0x5c8] sm:$0xff]
      %v455 = vld [vmem:[%s1 + $0x5d0] sm:$0xff]
      %v456 = vld [vmem:[%s1 + $0x5d8] sm:$0xff]
      %v457 = vld [vmem:[%s1 + $0x5e0] sm:$0xff]
      %v458 = vld [vmem:[%s1 + $0x5e8] sm:$0xff]
      %v459 = vld [vmem:[%s1 + $0x5f0] sm:$0xff]
      %v460 = vld [vmem:[%s1 + $0x5f8] sm:$0xff]
      %v461 = vld [vmem:[%s1 + $0x600] sm:$0xff]
      %v462 = vld [vmem:[%s1 + $0x608] sm:$0xff]
      %v463 = vld [vmem:[%s1 + $0x610] sm:$0xff]
      %v464 = vld [vmem:[%s1 + $0x618] sm:$0xff]
      %v465 = vld [vmem:[%s1 + $0x620] sm:$0xff]
      %v466 = vld [vmem:[%s1 + $0x628] sm:$0xff]
      %v467 = vld [vmem:[%s1 + $0x630] sm:$0xff]
      %v468 = vld [vmem:[%s1 + $0x638] sm:$0xff]
      %v469 = vld [vmem:[%s1 + $0x640] sm:$0xff]
      %v470 = vld [vmem:[%s1 + $0x648] sm:$0xff]
      %v471 = vld [vmem:[%s1 + $0x650] sm:$0xff]
      %v472 = vld [vmem:[%s1 + $0x658] sm:$0xff]
      %v473 = vld [vmem:[%s1 + $0x660] sm:$0xff]
      %v474 = vld [vmem:[%s1 + $0x668] sm:$0xff]
      %v475 = vld [vmem:[%s1 + $0x670] sm:$0xff]
      %v476 = vld [vmem:[%s1 + $0x678] sm:$0xff]
      %v477 = vld [vmem:[%s1 + $0x680] sm:$0xff]
      %v478 = vld [vmem:[%s1 + $0x688] sm:$0xff]
      %v479 = vld [vmem:[%s1 + $0x690] sm:$0xff]
      %v480 = vld [vmem:[%s1 + $0x698] sm:$0xff]
      %v481 = vld [vmem:[%s1 + $0x6a0] sm:$0xff]
      %v482 = vld [vmem:[%s1 + $0x6a8] sm:$0xff]
      %v483 = vld [vmem:[%s1 + $0x6b0] sm:$0xff]
      %v484 = vld [vmem:[%s1 + $0x6b8] sm:$0xff]
      %v485 = vld [vmem:[%s1 + $0x6c0] sm:$0xff]
      %v486 = vld [vmem:[%s1 + $0x6c8] sm:$0xff]
      %v487 = vld [vmem:[%s1 + $0x6d0] sm:$0xff]
      %v488 = vld [vmem:[%s1 + $0x6d8] sm:$0xff]
      %v489 = vld [vmem:[%s1 + $0x6e0] sm:$0xff]
      %v490 = vld [vmem:[%s1 + $0x6e8] sm:$0xff]
      %v491 = vld [vmem:[%s1 + $0x6f0] sm:$0xff]
      %v492 = vld [vmem:[%s1 + $0x6f8] sm:$0xff]
      %v493 = vld [vmem:[%s1 + $0x700] sm:$0xff]
      %v494 = vld [vmem:[%s1 + $0x708] sm:$0xff]
      %v495 = vld [vmem:[%s1 + $0x710] sm:$0xff]
      %v496 = vld [vmem:[%s1 + $0x718] sm:$0xff]
      %v497 = vld [vmem:[%s1 + $0x720] sm:$0xff]
      %v498 = vld [vmem:[%s1 + $0x728] sm:$0xff]
      %v499 = vld [vmem:[%s1 + $0x730] sm:$0xff]
      %v500 = vld [vmem:[%s1 + $0x738] sm:$0xff]
      %v501 = vld [vmem:[%s1 + $0x740] sm:$0xff]
      %v502 = vld [vmem:[%s1 + $0x748] sm:$0xff]
      %v503 = vld [vmem:[%s1 + $0x750] sm:$0xff]
      %v504 = vld [vmem:[%s1 + $0x758] sm:$0xff]
      %v505 = vld [vmem:[%s1 + $0x760] sm:$0xff]
      %v506 = vld [vmem:[%s1 + $0x768] sm:$0xff]
      %v507 = vld [vmem:[%s1 + $0x770] sm:$0xff]
      %v508 = vld [vmem:[%s1 + $0x778] sm:$0xff]
      %v509 = vld [vmem:[%s1 + $0x780] sm:$0xff]
      %v510 = vld [vmem:[%s1 + $0x788] sm:$0xff]
      %v511 = vld [vmem:[%s1 + $0x790] sm:$0xff]
      %v512 = vld [vmem:[%s1 + $0x798] sm:$0xff]
      %v513 = vld [vmem:[%s1 + $0x7a0] sm:$0xff]
      %v514 = vld [vmem:[%s1 + $0x7a8] sm:$0xff]
      %v515 = vld [vmem:[%s1 + $0x7b0] sm:$0xff]
      %v516 = vld [vmem:[%s1 + $0x7b8] sm:$0xff]
      %v517 = vld [vmem:[%s1 + $0x7c0] sm:$0xff]
      %v518 = vld [vmem:[%s1 + $0x7c8] sm:$0xff]
      %v519 = vld [vmem:[%s1 + $0x7d0] sm:$0xff]
      %v520 = vld [vmem:[%s1 + $0x7d8] sm:$0xff]
      %v521 = vld [vmem:[%s1 + $0x7e0] sm:$0xff]
      %v522 = vld [vmem:[%s1 + $0x7e8] sm:$0xff]
      %v523 = vld [vmem:[%s1 + $0x7f0] sm:$0xff]
      %v524 = vld [vmem:[%s1 + $0x7f8] sm:$0xff]
      %v525 = vld [vmem:[%s1 + $0x800] sm:$0xff]
      %v526 = vld [vmem:[%s1 + $0x808] sm:$0xff]
      %v527 = vld [vmem:[%s1 + $0x810] sm:$0xff]
      %v528 = vld [vmem:[%s1 + $0x818] sm:$0xff]
      %v529 = vld [vmem:[%s1 + $0x820] sm:$0xff]
      %v530 = vld [vmem:[%s1 + $0x828] sm:$0xff]
      %v531 = vld [vmem:[%s1 + $0x830] sm:$0xff]
      %v532 = vld [vmem:[%s1 + $0x838] sm:$0xff]
      %v533 = vld [vmem:[%s1 + $0x840] sm:$0xff]
      %v534 = vld [vmem:[%s1 + $0x848] sm:$0xff]
      %v535 = vld [vmem:[%s1 + $0x850] sm:$0xff]
      %v536 = vld [vmem:[%s1 + $0x858] sm:$0xff]
      %v537 = vld [vmem:[%s1 + $0x860] sm:$0xff]
      %v538 = vld [vmem:[%s1 + $0x868] sm:$0xff]
      %v539 = vld [vmem:[%s1 + $0x870] sm:$0xff]
      %v540 = vld [vmem:[%s1 + $0x878] sm:$0xff]
      %v541 = vld [vmem:[%s1 + $0x880] sm:$0xff]
      %v542 = vld [vmem:[%s1 + $0x888] sm:$0xff]
      %v543 = vld [vmem:[%s1 + $0x890] sm:$0xff]
      %v544 = vld [vmem:[%s1 + $0x898] sm:$0xff]
      %v545 = vld [vmem:[%s1 + $0x8a0] sm:$0xff]
      %v546 = vld [vmem:[%s1 + $0x8a8] sm:$0xff]
      %v547 = vld [vmem:[%s1 + $0x8b0] sm:$0xff]
      %v548 = vld [vmem:[%s1 + $0x8b8] sm:$0xff]
      %v549 = vld [vmem:[%s1 + $0x8c0] sm:$0xff]
      %v550 = vld [vmem:[%s1 + $0x8c8] sm:$0xff]
      %v551 = vld [vmem:[%s1 + $0x8d0] sm:$0xff]
      %v552 = vld [vmem:[%s1 + $0x8d8] sm:$0xff]
      %v553 = vld [vmem:[%s1 + $0x8e0] sm:$0xff]
      %v554 = vld [vmem:[%s1 + $0x8e8] sm:$0xff]
      %v555 = vld [vmem:[%s1 + $0x8f0] sm:$0xff]
      %v556 = vld [vmem:[%s1 + $0x8f8] sm:$0xff]
      %v557 = vld [vmem:[%s1 + $0x900] sm:$0xff]
      %v558 = vld [vmem:[%s1 + $0x908] sm:$0xff]
      %v559 = vld [vmem:[%s1 + $0x910] sm:$0xff]
      %v560 = vld [vmem:[%s1 + $0x918] sm:$0xff]
      %v561 = vld [vmem:[%s1 + $0x920] sm:$0xff]
      %v562 = vld [vmem:[%s1 + $0x928] sm:$0xff]
      %v563 = vld [vmem:[%s1 + $0x930] sm:$0xff]
      %v564 = vld [vmem:[%s1 + $0x938] sm:$0xff]
      %v565 = vld [vmem:[%s1 + $0x940] sm:$0xff]
      %v566 = vld [vmem:[%s1 + $0x948] sm:$0xff]
      %v567 = vld [vmem:[%s1 + $0x950] sm:$0xff]
      %v568 = vld [vmem:[%s1 + $0x958] sm:$0xff]
      %v569 = vld [vmem:[%s1 + $0x960] sm:$0xff]
      %v570 = vld [vmem:[%s1 + $0x968] sm:$0xff]
      %v571 = vld [vmem:[%s1 + $0x970] sm:$0xff]
      %v572 = vld [vmem:[%s1 + $0x978] sm:$0xff]
      %v573 = vld [vmem:[%s1 + $0x980] sm:$0xff]
      %v574 = vld [vmem:[%s1 + $0x988] sm:$0xff]
      %v575 = vld [vmem:[%s1 + $0x990] sm:$0xff]
      %v576 = vld [vmem:[%s1 + $0x998] sm:$0xff]
      %v577 = vld [vmem:[%s1 + $0x9a0] sm:$0xff]
      %v578 = vld [vmem:[%s1 + $0x9a8] sm:$0xff]
      %v579 = vld [vmem:[%s1 + $0x9b0] sm:$0xff]
      %v580 = vld [vmem:[%s1 + $0x9b8] sm:$0xff]
      %v581 = vld [vmem:[%s1 + $0x9c0] sm:$0xff]
      %v582 = vld [vmem:[%s1 + $0x9c8] sm:$0xff]
      %v583 = vld [vmem:[%s1 + $0x9d0] sm:$0xff]
      %v584 = vld [vmem:[%s1 + $0x9d8] sm:$0xff]
      %v585 = vld [vmem:[%s1 + $0x9e0] sm:$0xff]
      %v586 = vld [vmem:[%s1 + $0x9e8] sm:$0xff]
      %v587 = vld [vmem:[%s1 + $0x9f0] sm:$0xff]
      %v588 = vld [vmem:[%s1 + $0x9f8] sm:$0xff]
      %v589 = vld [vmem:[%s1 + $0xa00] sm:$0xff]
      %v590 = vld [vmem:[%s1 + $0xa08] sm:$0xff]
      %v591 = vld [vmem:[%s1 + $0xa10] sm:$0xff]
      %v592 = vld [vmem:[%s1 + $0xa18] sm:$0xff]
      %v593 = vld [vmem:[%s1 + $0xa20] sm:$0xff]
      %v594 = vld [vmem:[%s1 + $0xa28] sm:$0xff]
      %v595 = vld [vmem:[%s1 + $0xa30] sm:$0xff]
      %v596 = vld [vmem:[%s1 + $0xa38] sm:$0xff]
      %v597 = vld [vmem:[%s1 + $0xa40] sm:$0xff]
      %v598 = vld [vmem:[%s1 + $0xa48] sm:$0xff]
      %v599 = vld [vmem:[%s1 + $0xa50] sm:$0xff]
      %v600 = vld [vmem:[%s1 + $0xa58] sm:$0xff]
      %v601 = vld [vmem:[%s1 + $0xa60] sm:$0xff]
      %v602 = vld [vmem:[%s1 + $0xa68] sm:$0xff]
      %v603 = vld [vmem:[%s1 + $0xa70] sm:$0xff]
      %v604 = vld [vmem:[%s1 + $0xa78] sm:$0xff]
      %v605 = vld [vmem:[%s1 + $0xa80] sm:$0xff]
      %v606 = vld [vmem:[%s1 + $0xa88] sm:$0xff]
      %v607 = vld [vmem:[%s1 + $0xa90] sm:$0xff]
      %v608 = vld [vmem:[%s1 + $0xa98] sm:$0xff]
      %v609 = vld [vmem:[%s1 + $0xaa0] sm:$0xff]
      %v610 = vld [vmem:[%s1 + $0xaa8] sm:$0xff]
      %v611 = vld [vmem:[%s1 + $0xab0] sm:$0xff]
      %v612 = vld [vmem:[%s1 + $0xab8] sm:$0xff]
      %v613 = vld [vmem:[%s1 + $0xac0] sm:$0xff]
      %v614 = vld [vmem:[%s1 + $0xac8] sm:$0xff]
      %v615 = vld [vmem:[%s1 + $0xad0] sm:$0xff]
      %v616 = vld [vmem:[%s1 + $0xad8] sm:$0xff]
      %v617 = vld [vmem:[%s1 + $0xae0] sm:$0xff]
      %v618 = vld [vmem:[%s1 + $0xae8] sm:$0xff]
      %v619 = vld [vmem:[%s1 + $0xaf0] sm:$0xff]
      %v620 = vld [vmem:[%s1 + $0xaf8] sm:$0xff]
      %v621 = vld [vmem:[%s1 + $0xb00] sm:$0xff]
      %v622 = vld [vmem:[%s1 + $0xb08] sm:$0xff]
      %v623 = vld [vmem:[%s1 + $0xb10] sm:$0xff]
      %v624 = vld [vmem:[%s1 + $0xb18] sm:$0xff]
      %v625 = vld [vmem:[%s1 + $0xb20] sm:$0xff]
      %v626 = vld [vmem:[%s1 + $0xb28] sm:$0xff]
      %v627 = vld [vmem:[%s1 + $0xb30] sm:$0xff]
      %v628 = vld [vmem:[%s1 + $0xb38] sm:$0xff]
      %v629 = vld [vmem:[%s1 + $0xb40] sm:$0xff]
      %v630 = vld [vmem:[%s1 + $0xb48] sm:$0xff]
      %v631 = vld [vmem:[%s1 + $0xb50] sm:$0xff]
      %v632 = vld [vmem:[%s1 + $0xb58] sm:$0xff]
      %v633 = vld [vmem:[%s1 + $0xb60] sm:$0xff]
      %v634 = vld [vmem:[%s1 + $0xb68] sm:$0xff]
      %v635 = vld [vmem:[%s1 + $0xb70] sm:$0xff]
      %v636 = vld [vmem:[%s1 + $0xb78] sm:$0xff]
      %v637 = vld [vmem:[%s1 + $0xb80] sm:$0xff]
      %v638 = vld [vmem:[%s1 + $0xb88] sm:$0xff]
      %v639 = vld [vmem:[%s1 + $0xb90] sm:$0xff]
      %v640 = vld [vmem:[%s1 + $0xb98] sm:$0xff]
      %v641 = vld [vmem:[%s1 + $0xba0] sm:$0xff]
      %v642 = vld [vmem:[%s1 + $0xba8] sm:$0xff]
      %v643 = vld [vmem:[%s1 + $0xbb0] sm:$0xff]
      %v644 = vld [vmem:[%s1 + $0xbb8] sm:$0xff]
      %v645 = vld [vmem:[%s1 + $0xbc0] sm:$0xff]
      %v646 = vld [vmem:[%s1 + $0xbc8] sm:$0xff]
      %v647 = vld [vmem:[%s1 + $0xbd0] sm:$0xff]
      %v648 = vld [vmem:[%s1 + $0xbd8] sm:$0xff]
      %v649 = vld [vmem:[%s1 + $0xbe0] sm:$0xff]
      %v650 = vld [vmem:[%s1 + $0xbe8] sm:$0xff]
      %v651 = vld [vmem:[%s1 + $0xbf0] sm:$0xff]
      %v652 = vld [vmem:[%s1 + $0xbf8] sm:$0xff]
      %v653 = vld [vmem:[%s1 + $0xc00] sm:$0xff]
      %v654 = vld [vmem:[%s1 + $0xc08] sm:$0xff]
      %v655 = vld [vmem:[%s1 + $0xc10] sm:$0xff]
      %v656 = vld [vmem:[%s1 + $0xc18] sm:$0xff]
      %v657 = vld [vmem:[%s1 + $0xc20] sm:$0xff]
      %v658 = vld [vmem:[%s1 + $0xc28] sm:$0xff]
      %v659 = vld [vmem:[%s1 + $0xc30] sm:$0xff]
      %v660 = vld [vmem:[%s1 + $0xc38] sm:$0xff]
      %v661 = vld [vmem:[%s1 + $0xc40] sm:$0xff]
      %v662 = vld [vmem:[%s1 + $0xc48] sm:$0xff]
      %v663 = vld [vmem:[%s1 + $0xc50] sm:$0xff]
      %v664 = vld [vmem:[%s1 + $0xc58] sm:$0xff]
      %v665 = vld [vmem:[%s1 + $0xc60] sm:$0xff]
      %v666 = vld [vmem:[%s1 + $0xc68] sm:$0xff]
      %v667 = vld [vmem:[%s1 + $0xc70] sm:$0xff]
      %v668 = vld [vmem:[%s1 + $0xc78] sm:$0xff]
      %v669 = vld [vmem:[%s1 + $0xc80] sm:$0xff]
      %v670 = vld [vmem:[%s1 + $0xc88] sm:$0xff]
      %v671 = vld [vmem:[%s1 + $0xc90] sm:$0xff]
      %v672 = vld [vmem:[%s1 + $0xc98] sm:$0xff]
      %v673 = vld [vmem:[%s1 + $0xca0] sm:$0xff]
      %v674 = vld [vmem:[%s1 + $0xca8] sm:$0xff]
      %v675 = vld [vmem:[%s1 + $0xcb0] sm:$0xff]
      %v676 = vld [vmem:[%s1 + $0xcb8] sm:$0xff]
      %v677 = vld [vmem:[%s1 + $0xcc0] sm:$0xff]
      %v678 = vld [vmem:[%s1 + $0xcc8] sm:$0xff]
      %v679 = vld [vmem:[%s1 + $0xcd0] sm:$0xff]
      %v680 = vld [vmem:[%s1 + $0xcd8] sm:$0xff]
      %v681 = vld [vmem:[%s1 + $0xce0] sm:$0xff]
      %v682 = vld [vmem:[%s1 + $0xce8] sm:$0xff]
      %v683 = vld [vmem:[%s1 + $0xcf0] sm:$0xff]
      %v684 = vld [vmem:[%s1 + $0xcf8] sm:$0xff]
      %v685 = vld [vmem:[%s1 + $0xd00] sm:$0xff]
      %v686 = vld [vmem:[%s1 + $0xd08] sm:$0xff]
      %v687 = vld [vmem:[%s1 + $0xd10] sm:$0xff]
      %v688 = vld [vmem:[%s1 + $0xd18] sm:$0xff]
      %v689 = vld [vmem:[%s1 + $0xd20] sm:$0xff]
      %v690 = vld [vmem:[%s1 + $0xd28] sm:$0xff]
      %v691 = vld [vmem:[%s1 + $0xd30] sm:$0xff]
      %v692 = vld [vmem:[%s1 + $0xd38] sm:$0xff]
      %v693 = vld [vmem:[%s1 + $0xd40] sm:$0xff]
      %v694 = vld [vmem:[%s1 + $0xd48] sm:$0xff]
      %v695 = vld [vmem:[%s1 + $0xd50] sm:$0xff]
      %v696 = vld [vmem:[%s1 + $0xd58] sm:$0xff]
      %v697 = vld [vmem:[%s1 + $0xd60] sm:$0xff]
      %v698 = vld [vmem:[%s1 + $0xd68] sm:$0xff]
      %v699 = vld [vmem:[%s1 + $0xd70] sm:$0xff]
      %v700 = vld [vmem:[%s1 + $0xd78] sm:$0xff]
      %v701 = vld [vmem:[%s1 + $0xd80] sm:$0xff]
      %v702 = vld [vmem:[%s1 + $0xd88] sm:$0xff]
      %v703 = vld [vmem:[%s1 + $0xd90] sm:$0xff]
      %v704 = vld [vmem:[%s1 + $0xd98] sm:$0xff]
      %v705 = vld [vmem:[%s1 + $0xda0] sm:$0xff]
      %v706 = vld [vmem:[%s1 + $0xda8] sm:$0xff]
      %v707 = vld [vmem:[%s1 + $0xdb0] sm:$0xff]
      %v708 = vld [vmem:[%s1 + $0xdb8] sm:$0xff]
      %v709 = vld [vmem:[%s1 + $0xdc0] sm:$0xff]
      %v710 = vld [vmem:[%s1 + $0xdc8] sm:$0xff]
      %v711 = vld [vmem:[%s1 + $0xdd0] sm:$0xff]
      %v712 = vld [vmem:[%s1 + $0xdd8] sm:$0xff]
      %v713 = vld [vmem:[%s1 + $0xde0] sm:$0xff]
      %v714 = vld [vmem:[%s1 + $0xde8] sm:$0xff]
      %v715 = vld [vmem:[%s1 + $0xdf0] sm:$0xff]
      %v716 = vld [vmem:[%s1 + $0xdf8] sm:$0xff]
      %v717 = vld [vmem:[%s1 + $0xe00] sm:$0xff]
      %v718 = vld [vmem:[%s1 + $0xe08] sm:$0xff]
      %v719 = vld [vmem:[%s1 + $0xe10] sm:$0xff]
      %v720 = vld [vmem:[%s1 + $0xe18] sm:$0xff]
      %v721 = vld [vmem:[%s1 + $0xe20] sm:$0xff]
      %v722 = vld [vmem:[%s1 + $0xe28] sm:$0xff]
      %v723 = vld [vmem:[%s1 + $0xe30] sm:$0xff]
      %v724 = vld [vmem:[%s1 + $0xe38] sm:$0xff]
      %v725 = vld [vmem:[%s1 + $0xe40] sm:$0xff]
      %v726 = vld [vmem:[%s1 + $0xe48] sm:$0xff]
      %v727 = vld [vmem:[%s1 + $0xe50] sm:$0xff]
      %v728 = vld [vmem:[%s1 + $0xe58] sm:$0xff]
      %v729 = vld [vmem:[%s1 + $0xe60] sm:$0xff]
      %v730 = vld [vmem:[%s1 + $0xe68] sm:$0xff]
      %v731 = vld [vmem:[%s1 + $0xe70] sm:$0xff]
      %v732 = vld [vmem:[%s1 + $0xe78] sm:$0xff]
      %v733 = vld [vmem:[%s1 + $0xe80] sm:$0xff]
      %v734 = vld [vmem:[%s1 + $0xe88] sm:$0xff]
      %v735 = vld [vmem:[%s1 + $0xe90] sm:$0xff]
      %v736 = vld [vmem:[%s1 + $0xe98] sm:$0xff]
      %v737 = vld [vmem:[%s1 + $0xea0] sm:$0xff]
      %v738 = vld [vmem:[%s1 + $0xea8] sm:$0xff]
      %v739 = vld [vmem:[%s1 + $0xeb0] sm:$0xff]
      %v740 = vld [vmem:[%s1 + $0xeb8] sm:$0xff]
      %v741 = vld [vmem:[%s1 + $0xec0] sm:$0xff]
      %v742 = vld [vmem:[%s1 + $0xec8] sm:$0xff]
      %v743 = vld [vmem:[%s1 + $0xed0] sm:$0xff]
      %v744 = vld [vmem:[%s1 + $0xed8] sm:$0xff]
      %v745 = vld [vmem:[%s1 + $0xee0] sm:$0xff]
      %v746 = vld [vmem:[%s1 + $0xee8] sm:$0xff]
      %v747 = vld [vmem:[%s1 + $0xef0] sm:$0xff]
      %v748 = vld [vmem:[%s1 + $0xef8] sm:$0xff]
      %v749 = vld [vmem:[%s1 + $0xf00] sm:$0xff]
      %v750 = vld [vmem:[%s1 + $0xf08] sm:$0xff]
      %v751 = vld [vmem:[%s1 + $0xf10] sm:$0xff]
      %v752 = vld [vmem:[%s1 + $0xf18] sm:$0xff]
      %v753 = vld [vmem:[%s1 + $0xf20] sm:$0xff]
      %v754 = vld [vmem:[%s1 + $0xf28] sm:$0xff]
      %v755 = vld [vmem:[%s1 + $0xf30] sm:$0xff]
      %v756 = vld [vmem:[%s1 + $0xf38] sm:$0xff]
      %v757 = vld [vmem:[%s1 + $0xf40] sm:$0xff]
      %v758 = vld [vmem:[%s1 + $0xf48] sm:$0xff]
      %v759 = vld [vmem:[%s1 + $0xf50] sm:$0xff]
      %v760 = vld [vmem:[%s1 + $0xf58] sm:$0xff]
      %v761 = vld [vmem:[%s1 + $0xf60] sm:$0xff]
      %v762 = vld [vmem:[%s1 + $0xf68] sm:$0xff]
      %v763 = vld [vmem:[%s1 + $0xf70] sm:$0xff]
      %v764 = vld [vmem:[%s1 + $0xf78] sm:$0xff]
      %v765 = vld [vmem:[%s1 + $0xf80] sm:$0xff]
      %v766 = vld [vmem:[%s1 + $0xf88] sm:$0xff]
      %v767 = vld [vmem:[%s1 + $0xf90] sm:$0xff]
      %v768 = vld [vmem:[%s1 + $0xf98] sm:$0xff]
      %v769 = vld [vmem:[%s2] sm:$0x3]
      %v771 = vperm.slane %v769, 0
      %v772 = vperm.slane %v769, 1
      %v807 = vunpack.c.l.b16 %v237
      %v808 = vunpack.c.h.b16 %v237
      %v809 = vunpack.c.l.b16 %v238
      %v810 = vunpack.c.h.b16 %v238
      %v811 = vunpack.c.l.b16 %v239
      %v812 = vunpack.c.h.b16 %v239
      %v813 = vunpack.c.l.b16 %v240
      %v814 = vunpack.c.h.b16 %v240
      %v815 = vunpack.c.l.b16 %v241
      %v816 = vunpack.c.h.b16 %v241
      %v817 = vunpack.c.l.b16 %v242
      %v818 = vunpack.c.h.b16 %v242
      %v819 = vunpack.c.l.b16 %v243
      %v820 = vunpack.c.h.b16 %v243
      %v821 = vunpack.c.l.b16 %v244
      %v822 = vunpack.c.h.b16 %v244
      %v823 = vunpack.c.l.b16 %v245
      %v824 = vunpack.c.h.b16 %v245
      %v825 = vunpack.c.l.b16 %v246
      %v826 = vunpack.c.h.b16 %v246
      %v827 = vunpack.c.l.b16 %v247
      %v828 = vunpack.c.h.b16 %v247
      %v829 = vunpack.c.l.b16 %v248
      %v830 = vunpack.c.h.b16 %v248
      %v831 = vunpack.c.l.b16 %v249
      %v832 = vunpack.c.h.b16 %v249
      %v833 = vunpack.c.l.b16 %v250
      %v834 = vunpack.c.h.b16 %v250
      %v835 = vunpack.c.l.b16 %v251
      %v836 = vunpack.c.h.b16 %v251
      %v837 = vunpack.c.l.b16 %v252
      %v838 = vunpack.c.h.b16 %v252
      %v839 = vunpack.c.l.b16 %v253
      %v840 = vunpack.c.h.b16 %v253
      %v841 = vunpack.c.l.b16 %v254
      %v842 = vunpack.c.h.b16 %v254
      %v843 = vunpack.c.l.b16 %v255
      %v844 = vunpack.c.h.b16 %v255
      %v845 = vunpack.c.l.b16 %v256
      %v846 = vunpack.c.h.b16 %v256
      %v847 = vunpack.c.l.b16 %v257
      %v848 = vunpack.c.h.b16 %v257
      %v849 = vunpack.c.l.b16 %v258
      %v850 = vunpack.c.h.b16 %v258
      %v851 = vunpack.c.l.b16 %v259
      %v852 = vunpack.c.h.b16 %v259
      %v853 = vunpack.c.l.b16 %v260
      %v854 = vunpack.c.h.b16 %v260
      %v855 = vunpack.c.l.b16 %v261
      %v856 = vunpack.c.h.b16 %v261
      %v857 = vunpack.c.l.b16 %v262
      %v858 = vunpack.c.h.b16 %v262
      %v859 = vunpack.c.l.b16 %v263
      %v860 = vunpack.c.h.b16 %v263
      %v861 = vunpack.c.l.b16 %v264
      %v862 = vunpack.c.h.b16 %v264
      %v863 = vunpack.c.l.b16 %v265
      %v864 = vunpack.c.h.b16 %v265
      %v865 = vunpack.c.l.b16 %v266
      %v866 = vunpack.c.h.b16 %v266
      %v867 = vunpack.c.l.b16 %v267
      %v868 = vunpack.c.h.b16 %v267
      %v869 = vunpack.c.l.b16 %v268
      %v870 = vunpack.c.h.b16 %v268
      %v871 = vpack.c.b16 %v839, %v807
      %v872 = vpack.c.b16 %v840, %v808
      %v873 = vpack.c.b16 %v841, %v809
      %v874 = vpack.c.b16 %v842, %v810
      %v875 = vpack.c.b16 %v843, %v811
      %v876 = vpack.c.b16 %v844, %v812
      %v877 = vpack.c.b16 %v845, %v813
      %v878 = vpack.c.b16 %v846, %v814
      %v879 = vpack.c.b16 %v847, %v815
      %v880 = vpack.c.b16 %v848, %v816
      %v881 = vpack.c.b16 %v849, %v817
      %v882 = vpack.c.b16 %v850, %v818
      %v883 = vpack.c.b16 %v851, %v819
      %v884 = vpack.c.b16 %v852, %v820
      %v885 = vpack.c.b16 %v853, %v821
      %v886 = vpack.c.b16 %v854, %v822
      %v887 = vpack.c.b16 %v855, %v823
      %v888 = vpack.c.b16 %v856, %v824
      %v889 = vpack.c.b16 %v857, %v825
      %v890 = vpack.c.b16 %v858, %v826
      %v891 = vpack.c.b16 %v859, %v827
      %v892 = vpack.c.b16 %v860, %v828
      %v893 = vpack.c.b16 %v861, %v829
      %v894 = vpack.c.b16 %v862, %v830
      %v895 = vpack.c.b16 %v863, %v831
      %v896 = vpack.c.b16 %v864, %v832
      %v897 = vpack.c.b16 %v865, %v833
      %v898 = vpack.c.b16 %v866, %v834
      %v899 = vpack.c.b16 %v867, %v835
      %v900 = vpack.c.b16 %v868, %v836
      %v901 = vpack.c.b16 %v869, %v837
      %v902 = vpack.c.b16 %v870, %v838
      %v1434 = vunpack.c.l.b16 %v269
      %v1435 = vunpack.c.h.b16 %v269
      %v1436 = vunpack.c.l.b16 %v270
      %v1437 = vunpack.c.h.b16 %v270
      %v1438 = vunpack.c.l.b16 %v271
      %v1439 = vunpack.c.h.b16 %v271
      %v1440 = vunpack.c.l.b16 %v272
      %v1441 = vunpack.c.h.b16 %v272
      %v1442 = vunpack.c.l.b16 %v273
      %v1443 = vunpack.c.h.b16 %v273
      %v1444 = vunpack.c.l.b16 %v274
      %v1445 = vunpack.c.h.b16 %v274
      %v1446 = vunpack.c.l.b16 %v275
      %v1447 = vunpack.c.h.b16 %v275
      %v1448 = vunpack.c.l.b16 %v276
      %v1449 = vunpack.c.h.b16 %v276
      %v1450 = vunpack.c.l.b16 %v277
      %v1451 = vunpack.c.h.b16 %v277
      %v1452 = vunpack.c.l.b16 %v278
      %v1453 = vunpack.c.h.b16 %v278
      %v1454 = vunpack.c.l.b16 %v279
      %v1455 = vunpack.c.h.b16 %v279
      %v1456 = vunpack.c.l.b16 %v280
      %v1457 = vunpack.c.h.b16 %v280
      %v1458 = vunpack.c.l.b16 %v281
      %v1459 = vunpack.c.h.b16 %v281
      %v1460 = vunpack.c.l.b16 %v282
      %v1461 = vunpack.c.h.b16 %v282
      %v1462 = vunpack.c.l.b16 %v283
      %v1463 = vunpack.c.h.b16 %v283
      %v1464 = vunpack.c.l.b16 %v284
      %v1465 = vunpack.c.h.b16 %v284
      %v1466 = vunpack.c.l.b16 %v285
      %v1467 = vunpack.c.h.b16 %v285
      %v1468 = vunpack.c.l.b16 %v286
      %v1469 = vunpack.c.h.b16 %v286
      %v1470 = vunpack.c.l.b16 %v287
      %v1471 = vunpack.c.h.b16 %v287
      %v1472 = vunpack.c.l.b16 %v288
      %v1473 = vunpack.c.h.b16 %v288
      %v1474 = vunpack.c.l.b16 %v289
      %v1475 = vunpack.c.h.b16 %v289
      %v1476 = vunpack.c.l.b16 %v290
      %v1477 = vunpack.c.h.b16 %v290
      %v1478 = vunpack.c.l.b16 %v291
      %v1479 = vunpack.c.h.b16 %v291
      %v1480 = vunpack.c.l.b16 %v292
      %v1481 = vunpack.c.h.b16 %v292
      %v1482 = vunpack.c.l.b16 %v293
      %v1483 = vunpack.c.h.b16 %v293
      %v1484 = vunpack.c.l.b16 %v294
      %v1485 = vunpack.c.h.b16 %v294
      %v1486 = vunpack.c.l.b16 %v295
      %v1487 = vunpack.c.h.b16 %v295
      %v1488 = vunpack.c.l.b16 %v296
      %v1489 = vunpack.c.h.b16 %v296
      %v1490 = vunpack.c.l.b16 %v297
      %v1491 = vunpack.c.h.b16 %v297
      %v1492 = vunpack.c.l.b16 %v298
      %v1493 = vunpack.c.h.b16 %v298
      %v1494 = vunpack.c.l.b16 %v299
      %v1495 = vunpack.c.h.b16 %v299
      %v1496 = vunpack.c.l.b16 %v300
      %v1497 = vunpack.c.h.b16 %v300
      %v1498 = vunpack.c.l.b16 %v301
      %v1499 = vunpack.c.h.b16 %v301
      %v1500 = vunpack.c.l.b16 %v302
      %v1501 = vunpack.c.h.b16 %v302
      %v1502 = vunpack.c.l.b16 %v303
      %v1503 = vunpack.c.h.b16 %v303
      %v1504 = vunpack.c.l.b16 %v304
      %v1505 = vunpack.c.h.b16 %v304
      %v1506 = vunpack.c.l.b16 %v305
      %v1507 = vunpack.c.h.b16 %v305
      %v1508 = vunpack.c.l.b16 %v306
      %v1509 = vunpack.c.h.b16 %v306
      %v1510 = vunpack.c.l.b16 %v307
      %v1511 = vunpack.c.h.b16 %v307
      %v1512 = vunpack.c.l.b16 %v308
      %v1513 = vunpack.c.h.b16 %v308
      %v1514 = vunpack.c.l.b16 %v309
      %v1515 = vunpack.c.h.b16 %v309
      %v1516 = vunpack.c.l.b16 %v310
      %v1517 = vunpack.c.h.b16 %v310
      %v1518 = vunpack.c.l.b16 %v311
      %v1519 = vunpack.c.h.b16 %v311
      %v1520 = vunpack.c.l.b16 %v312
      %v1521 = vunpack.c.h.b16 %v312
      %v1522 = vunpack.c.l.b16 %v313
      %v1523 = vunpack.c.h.b16 %v313
      %v1524 = vunpack.c.l.b16 %v314
      %v1525 = vunpack.c.h.b16 %v314
      %v1526 = vunpack.c.l.b16 %v315
      %v1527 = vunpack.c.h.b16 %v315
      %v1528 = vunpack.c.l.b16 %v316
      %v1529 = vunpack.c.h.b16 %v316
      %v1530 = vunpack.c.l.b16 %v317
      %v1531 = vunpack.c.h.b16 %v317
      %v1532 = vunpack.c.l.b16 %v318
      %v1533 = vunpack.c.h.b16 %v318
      %v1534 = vunpack.c.l.b16 %v319
      %v1535 = vunpack.c.h.b16 %v319
      %v1536 = vunpack.c.l.b16 %v320
      %v1537 = vunpack.c.h.b16 %v320
      %v1538 = vunpack.c.l.b16 %v321
      %v1539 = vunpack.c.h.b16 %v321
      %v1540 = vunpack.c.l.b16 %v322
      %v1541 = vunpack.c.h.b16 %v322
      %v1542 = vunpack.c.l.b16 %v323
      %v1543 = vunpack.c.h.b16 %v323
      %v1544 = vunpack.c.l.b16 %v324
      %v1545 = vunpack.c.h.b16 %v324
      %v1546 = vunpack.c.l.b16 %v325
      %v1547 = vunpack.c.h.b16 %v325
      %v1548 = vunpack.c.l.b16 %v326
      %v1549 = vunpack.c.h.b16 %v326
      %v1550 = vunpack.c.l.b16 %v327
      %v1551 = vunpack.c.h.b16 %v327
      %v1552 = vunpack.c.l.b16 %v328
      %v1553 = vunpack.c.h.b16 %v328
      %v1554 = vunpack.c.l.b16 %v329
      %v1555 = vunpack.c.h.b16 %v329
      %v1556 = vunpack.c.l.b16 %v330
      %v1557 = vunpack.c.h.b16 %v330
      %v1558 = vunpack.c.l.b16 %v331
      %v1559 = vunpack.c.h.b16 %v331
      %v1560 = vunpack.c.l.b16 %v332
      %v1561 = vunpack.c.h.b16 %v332
      %v1562 = vunpack.c.l.b16 %v333
      %v1563 = vunpack.c.h.b16 %v333
      %v1564 = vunpack.c.l.b16 %v334
      %v1565 = vunpack.c.h.b16 %v334
      %v1566 = vunpack.c.l.b16 %v335
      %v1567 = vunpack.c.h.b16 %v335
      %v1568 = vunpack.c.l.b16 %v336
      %v1569 = vunpack.c.h.b16 %v336
      %v1570 = vunpack.c.l.b16 %v337
      %v1571 = vunpack.c.h.b16 %v337
      %v1572 = vunpack.c.l.b16 %v338
      %v1573 = vunpack.c.h.b16 %v338
      %v1574 = vunpack.c.l.b16 %v339
      %v1575 = vunpack.c.h.b16 %v339
      %v1576 = vunpack.c.l.b16 %v340
      %v1577 = vunpack.c.h.b16 %v340
      %v1578 = vunpack.c.l.b16 %v341
      %v1579 = vunpack.c.h.b16 %v341
      %v1580 = vunpack.c.l.b16 %v342
      %v1581 = vunpack.c.h.b16 %v342
      %v1582 = vunpack.c.l.b16 %v343
      %v1583 = vunpack.c.h.b16 %v343
      %v1584 = vunpack.c.l.b16 %v344
      %v1585 = vunpack.c.h.b16 %v344
      %v1586 = vunpack.c.l.b16 %v345
      %v1587 = vunpack.c.h.b16 %v345
      %v1588 = vunpack.c.l.b16 %v346
      %v1589 = vunpack.c.h.b16 %v346
      %v1590 = vunpack.c.l.b16 %v347
      %v1591 = vunpack.c.h.b16 %v347
      %v1592 = vunpack.c.l.b16 %v348
      %v1593 = vunpack.c.h.b16 %v348
      %v1594 = vunpack.c.l.b16 %v349
      %v1595 = vunpack.c.h.b16 %v349
      %v1596 = vunpack.c.l.b16 %v350
      %v1597 = vunpack.c.h.b16 %v350
      %v1598 = vunpack.c.l.b16 %v351
      %v1599 = vunpack.c.h.b16 %v351
      %v1600 = vunpack.c.l.b16 %v352
      %v1601 = vunpack.c.h.b16 %v352
      %v1602 = vunpack.c.l.b16 %v353
      %v1603 = vunpack.c.h.b16 %v353
      %v1604 = vunpack.c.l.b16 %v354
      %v1605 = vunpack.c.h.b16 %v354
      %v1606 = vunpack.c.l.b16 %v355
      %v1607 = vunpack.c.h.b16 %v355
      %v1608 = vunpack.c.l.b16 %v356
      %v1609 = vunpack.c.h.b16 %v356
      %v1610 = vunpack.c.l.b16 %v357
      %v1611 = vunpack.c.h.b16 %v357
      %v1612 = vunpack.c.l.b16 %v358
      %v1613 = vunpack.c.h.b16 %v358
      %v1614 = vunpack.c.l.b16 %v359
      %v1615 = vunpack.c.h.b16 %v359
      %v1616 = vunpack.c.l.b16 %v360
      %v1617 = vunpack.c.h.b16 %v360
      %v1618 = vunpack.c.l.b16 %v361
      %v1619 = vunpack.c.h.b16 %v361
      %v1620 = vunpack.c.l.b16 %v362
      %v1621 = vunpack.c.h.b16 %v362
      %v1622 = vunpack.c.l.b16 %v363
      %v1623 = vunpack.c.h.b16 %v363
      %v1624 = vunpack.c.l.b16 %v364
      %v1625 = vunpack.c.h.b16 %v364
      %v1626 = vunpack.c.l.b16 %v365
      %v1627 = vunpack.c.h.b16 %v365
      %v1628 = vunpack.c.l.b16 %v366
      %v1629 = vunpack.c.h.b16 %v366
      %v1630 = vunpack.c.l.b16 %v367
      %v1631 = vunpack.c.h.b16 %v367
      %v1632 = vunpack.c.l.b16 %v368
      %v1633 = vunpack.c.h.b16 %v368
      %v1634 = vunpack.c.l.b16 %v369
      %v1635 = vunpack.c.h.b16 %v369
      %v1636 = vunpack.c.l.b16 %v370
      %v1637 = vunpack.c.h.b16 %v370
      %v1638 = vunpack.c.l.b16 %v371
      %v1639 = vunpack.c.h.b16 %v371
      %v1640 = vunpack.c.l.b16 %v372
      %v1641 = vunpack.c.h.b16 %v372
      %v1642 = vunpack.c.l.b16 %v373
      %v1643 = vunpack.c.h.b16 %v373
      %v1644 = vunpack.c.l.b16 %v374
      %v1645 = vunpack.c.h.b16 %v374
      %v1646 = vunpack.c.l.b16 %v375
      %v1647 = vunpack.c.h.b16 %v375
      %v1648 = vunpack.c.l.b16 %v376
      %v1649 = vunpack.c.h.b16 %v376
      %v1650 = vunpack.c.l.b16 %v377
      %v1651 = vunpack.c.h.b16 %v377
      %v1652 = vunpack.c.l.b16 %v378
      %v1653 = vunpack.c.h.b16 %v378
      %v1654 = vunpack.c.l.b16 %v379
      %v1655 = vunpack.c.h.b16 %v379
      %v1656 = vunpack.c.l.b16 %v380
      %v1657 = vunpack.c.h.b16 %v380
      %v1658 = vunpack.c.l.b16 %v381
      %v1659 = vunpack.c.h.b16 %v381
      %v1660 = vunpack.c.l.b16 %v382
      %v1661 = vunpack.c.h.b16 %v382
      %v1662 = vunpack.c.l.b16 %v383
      %v1663 = vunpack.c.h.b16 %v383
      %v1664 = vunpack.c.l.b16 %v384
      %v1665 = vunpack.c.h.b16 %v384
      %v1666 = vunpack.c.l.b16 %v385
      %v1667 = vunpack.c.h.b16 %v385
      %v1668 = vunpack.c.l.b16 %v386
      %v1669 = vunpack.c.h.b16 %v386
      %v1670 = vunpack.c.l.b16 %v387
      %v1671 = vunpack.c.h.b16 %v387
      %v1672 = vunpack.c.l.b16 %v388
      %v1673 = vunpack.c.h.b16 %v388
      %v1674 = vunpack.c.l.b16 %v389
      %v1675 = vunpack.c.h.b16 %v389
      %v1676 = vunpack.c.l.b16 %v390
      %v1677 = vunpack.c.h.b16 %v390
      %v1678 = vunpack.c.l.b16 %v391
      %v1679 = vunpack.c.h.b16 %v391
      %v1680 = vunpack.c.l.b16 %v392
      %v1681 = vunpack.c.h.b16 %v392
      %v1682 = vunpack.c.l.b16 %v393
      %v1683 = vunpack.c.h.b16 %v393
      %v1684 = vunpack.c.l.b16 %v394
      %v1685 = vunpack.c.h.b16 %v394
      %v1686 = vunpack.c.l.b16 %v395
      %v1687 = vunpack.c.h.b16 %v395
      %v1688 = vunpack.c.l.b16 %v396
      %v1689 = vunpack.c.h.b16 %v396
      %v1690 = vunpack.c.l.b16 %v397
      %v1691 = vunpack.c.h.b16 %v397
      %v1692 = vunpack.c.l.b16 %v398
      %v1693 = vunpack.c.h.b16 %v398
      %v1694 = vunpack.c.l.b16 %v399
      %v1695 = vunpack.c.h.b16 %v399
      %v1696 = vunpack.c.l.b16 %v400
      %v1697 = vunpack.c.h.b16 %v400
      %v1698 = vunpack.c.l.b16 %v401
      %v1699 = vunpack.c.h.b16 %v401
      %v1700 = vunpack.c.l.b16 %v402
      %v1701 = vunpack.c.h.b16 %v402
      %v1702 = vunpack.c.l.b16 %v403
      %v1703 = vunpack.c.h.b16 %v403
      %v1704 = vunpack.c.l.b16 %v404
      %v1705 = vunpack.c.h.b16 %v404
      %v1706 = vunpack.c.l.b16 %v405
      %v1707 = vunpack.c.h.b16 %v405
      %v1708 = vunpack.c.l.b16 %v406
      %v1709 = vunpack.c.h.b16 %v406
      %v1710 = vunpack.c.l.b16 %v407
      %v1711 = vunpack.c.h.b16 %v407
      %v1712 = vunpack.c.l.b16 %v408
      %v1713 = vunpack.c.h.b16 %v408
      %v1714 = vunpack.c.l.b16 %v409
      %v1715 = vunpack.c.h.b16 %v409
      %v1716 = vunpack.c.l.b16 %v410
      %v1717 = vunpack.c.h.b16 %v410
      %v1718 = vunpack.c.l.b16 %v411
      %v1719 = vunpack.c.h.b16 %v411
      %v1720 = vunpack.c.l.b16 %v412
      %v1721 = vunpack.c.h.b16 %v412
      %v1722 = vunpack.c.l.b16 %v413
      %v1723 = vunpack.c.h.b16 %v413
      %v1724 = vunpack.c.l.b16 %v414
      %v1725 = vunpack.c.h.b16 %v414
      %v1726 = vunpack.c.l.b16 %v415
      %v1727 = vunpack.c.h.b16 %v415
      %v1728 = vunpack.c.l.b16 %v416
      %v1729 = vunpack.c.h.b16 %v416
      %v1730 = vunpack.c.l.b16 %v417
      %v1731 = vunpack.c.h.b16 %v417
      %v1732 = vunpack.c.l.b16 %v418
      %v1733 = vunpack.c.h.b16 %v418
      %v1734 = vunpack.c.l.b16 %v419
      %v1735 = vunpack.c.h.b16 %v419
      %v1736 = vunpack.c.l.b16 %v420
      %v1737 = vunpack.c.h.b16 %v420
      %v1738 = vunpack.c.l.b16 %v421
      %v1739 = vunpack.c.h.b16 %v421
      %v1740 = vunpack.c.l.b16 %v422
      %v1741 = vunpack.c.h.b16 %v422
      %v1742 = vunpack.c.l.b16 %v423
      %v1743 = vunpack.c.h.b16 %v423
      %v1744 = vunpack.c.l.b16 %v424
      %v1745 = vunpack.c.h.b16 %v424
      %v1746 = vunpack.c.l.b16 %v425
      %v1747 = vunpack.c.h.b16 %v425
      %v1748 = vunpack.c.l.b16 %v426
      %v1749 = vunpack.c.h.b16 %v426
      %v1750 = vunpack.c.l.b16 %v427
      %v1751 = vunpack.c.h.b16 %v427
      %v1752 = vunpack.c.l.b16 %v428
      %v1753 = vunpack.c.h.b16 %v428
      %v1754 = vunpack.c.l.b16 %v429
      %v1755 = vunpack.c.h.b16 %v429
      %v1756 = vunpack.c.l.b16 %v430
      %v1757 = vunpack.c.h.b16 %v430
      %v1758 = vunpack.c.l.b16 %v431
      %v1759 = vunpack.c.h.b16 %v431
      %v1760 = vunpack.c.l.b16 %v432
      %v1761 = vunpack.c.h.b16 %v432
      %v1762 = vunpack.c.l.b16 %v433
      %v1763 = vunpack.c.h.b16 %v433
      %v1764 = vunpack.c.l.b16 %v434
      %v1765 = vunpack.c.h.b16 %v434
      %v1766 = vunpack.c.l.b16 %v435
      %v1767 = vunpack.c.h.b16 %v435
      %v1768 = vunpack.c.l.b16 %v436
      %v1769 = vunpack.c.h.b16 %v436
      %v1770 = vunpack.c.l.b16 %v437
      %v1771 = vunpack.c.h.b16 %v437
      %v1772 = vunpack.c.l.b16 %v438
      %v1773 = vunpack.c.h.b16 %v438
      %v1774 = vunpack.c.l.b16 %v439
      %v1775 = vunpack.c.h.b16 %v439
      %v1776 = vunpack.c.l.b16 %v440
      %v1777 = vunpack.c.h.b16 %v440
      %v1778 = vunpack.c.l.b16 %v441
      %v1779 = vunpack.c.h.b16 %v441
      %v1780 = vunpack.c.l.b16 %v442
      %v1781 = vunpack.c.h.b16 %v442
      %v1782 = vunpack.c.l.b16 %v443
      %v1783 = vunpack.c.h.b16 %v443
      %v1784 = vunpack.c.l.b16 %v444
      %v1785 = vunpack.c.h.b16 %v444
      %v1786 = vunpack.c.l.b16 %v445
      %v1787 = vunpack.c.h.b16 %v445
      %v1788 = vunpack.c.l.b16 %v446
      %v1789 = vunpack.c.h.b16 %v446
      %v1790 = vunpack.c.l.b16 %v447
      %v1791 = vunpack.c.h.b16 %v447
      %v1792 = vunpack.c.l.b16 %v448
      %v1793 = vunpack.c.h.b16 %v448
      %v1794 = vunpack.c.l.b16 %v449
      %v1795 = vunpack.c.h.b16 %v449
      %v1796 = vunpack.c.l.b16 %v450
      %v1797 = vunpack.c.h.b16 %v450
      %v1798 = vunpack.c.l.b16 %v451
      %v1799 = vunpack.c.h.b16 %v451
      %v1800 = vunpack.c.l.b16 %v452
      %v1801 = vunpack.c.h.b16 %v452
      %v1802 = vunpack.c.l.b16 %v453
      %v1803 = vunpack.c.h.b16 %v453
      %v1804 = vunpack.c.l.b16 %v454
      %v1805 = vunpack.c.h.b16 %v454
      %v1806 = vunpack.c.l.b16 %v455
      %v1807 = vunpack.c.h.b16 %v455
      %v1808 = vunpack.c.l.b16 %v456
      %v1809 = vunpack.c.h.b16 %v456
      %v1810 = vunpack.c.l.b16 %v457
      %v1811 = vunpack.c.h.b16 %v457
      %v1812 = vunpack.c.l.b16 %v458
      %v1813 = vunpack.c.h.b16 %v458
      %v1814 = vunpack.c.l.b16 %v459
      %v1815 = vunpack.c.h.b16 %v459
      %v1816 = vunpack.c.l.b16 %v460
      %v1817 = vunpack.c.h.b16 %v460
      %v1818 = vunpack.c.l.b16 %v461
      %v1819 = vunpack.c.h.b16 %v461
      %v1820 = vunpack.c.l.b16 %v462
      %v1821 = vunpack.c.h.b16 %v462
      %v1822 = vunpack.c.l.b16 %v463
      %v1823 = vunpack.c.h.b16 %v463
      %v1824 = vunpack.c.l.b16 %v464
      %v1825 = vunpack.c.h.b16 %v464
      %v1826 = vunpack.c.l.b16 %v465
      %v1827 = vunpack.c.h.b16 %v465
      %v1828 = vunpack.c.l.b16 %v466
      %v1829 = vunpack.c.h.b16 %v466
      %v1830 = vunpack.c.l.b16 %v467
      %v1831 = vunpack.c.h.b16 %v467
      %v1832 = vunpack.c.l.b16 %v468
      %v1833 = vunpack.c.h.b16 %v468
      %v1834 = vunpack.c.l.b16 %v469
      %v1835 = vunpack.c.h.b16 %v469
      %v1836 = vunpack.c.l.b16 %v470
      %v1837 = vunpack.c.h.b16 %v470
      %v1838 = vunpack.c.l.b16 %v471
      %v1839 = vunpack.c.h.b16 %v471
      %v1840 = vunpack.c.l.b16 %v472
      %v1841 = vunpack.c.h.b16 %v472
      %v1842 = vunpack.c.l.b16 %v473
      %v1843 = vunpack.c.h.b16 %v473
      %v1844 = vunpack.c.l.b16 %v474
      %v1845 = vunpack.c.h.b16 %v474
      %v1846 = vunpack.c.l.b16 %v475
      %v1847 = vunpack.c.h.b16 %v475
      %v1848 = vunpack.c.l.b16 %v476
      %v1849 = vunpack.c.h.b16 %v476
      %v1850 = vunpack.c.l.b16 %v477
      %v1851 = vunpack.c.h.b16 %v477
      %v1852 = vunpack.c.l.b16 %v478
      %v1853 = vunpack.c.h.b16 %v478
      %v1854 = vunpack.c.l.b16 %v479
      %v1855 = vunpack.c.h.b16 %v479
      %v1856 = vunpack.c.l.b16 %v480
      %v1857 = vunpack.c.h.b16 %v480
      %v1858 = vunpack.c.l.b16 %v481
      %v1859 = vunpack.c.h.b16 %v481
      %v1860 = vunpack.c.l.b16 %v482
      %v1861 = vunpack.c.h.b16 %v482
      %v1862 = vunpack.c.l.b16 %v483
      %v1863 = vunpack.c.h.b16 %v483
      %v1864 = vunpack.c.l.b16 %v484
      %v1865 = vunpack.c.h.b16 %v484
      %v1866 = vunpack.c.l.b16 %v485
      %v1867 = vunpack.c.h.b16 %v485
      %v1868 = vunpack.c.l.b16 %v486
      %v1869 = vunpack.c.h.b16 %v486
      %v1870 = vunpack.c.l.b16 %v487
      %v1871 = vunpack.c.h.b16 %v487
      %v1872 = vunpack.c.l.b16 %v488
      %v1873 = vunpack.c.h.b16 %v488
      %v1874 = vunpack.c.l.b16 %v489
      %v1875 = vunpack.c.h.b16 %v489
      %v1876 = vunpack.c.l.b16 %v490
      %v1877 = vunpack.c.h.b16 %v490
      %v1878 = vunpack.c.l.b16 %v491
      %v1879 = vunpack.c.h.b16 %v491
      %v1880 = vunpack.c.l.b16 %v492
      %v1881 = vunpack.c.h.b16 %v492
      %v1882 = vunpack.c.l.b16 %v493
      %v1883 = vunpack.c.h.b16 %v493
      %v1884 = vunpack.c.l.b16 %v494
      %v1885 = vunpack.c.h.b16 %v494
      %v1886 = vunpack.c.l.b16 %v495
      %v1887 = vunpack.c.h.b16 %v495
      %v1888 = vunpack.c.l.b16 %v496
      %v1889 = vunpack.c.h.b16 %v496
      %v1890 = vunpack.c.l.b16 %v497
      %v1891 = vunpack.c.h.b16 %v497
      %v1892 = vunpack.c.l.b16 %v498
      %v1893 = vunpack.c.h.b16 %v498
      %v1894 = vunpack.c.l.b16 %v499
      %v1895 = vunpack.c.h.b16 %v499
      %v1896 = vunpack.c.l.b16 %v500
      %v1897 = vunpack.c.h.b16 %v500
      %v1898 = vunpack.c.l.b16 %v501
      %v1899 = vunpack.c.h.b16 %v501
      %v1900 = vunpack.c.l.b16 %v502
      %v1901 = vunpack.c.h.b16 %v502
      %v1902 = vunpack.c.l.b16 %v503
      %v1903 = vunpack.c.h.b16 %v503
      %v1904 = vunpack.c.l.b16 %v504
      %v1905 = vunpack.c.h.b16 %v504
      %v1906 = vunpack.c.l.b16 %v505
      %v1907 = vunpack.c.h.b16 %v505
      %v1908 = vunpack.c.l.b16 %v506
      %v1909 = vunpack.c.h.b16 %v506
      %v1910 = vunpack.c.l.b16 %v507
      %v1911 = vunpack.c.h.b16 %v507
      %v1912 = vunpack.c.l.b16 %v508
      %v1913 = vunpack.c.h.b16 %v508
      %v1914 = vunpack.c.l.b16 %v509
      %v1915 = vunpack.c.h.b16 %v509
      %v1916 = vunpack.c.l.b16 %v510
      %v1917 = vunpack.c.h.b16 %v510
      %v1918 = vunpack.c.l.b16 %v511
      %v1919 = vunpack.c.h.b16 %v511
      %v1920 = vunpack.c.l.b16 %v512
      %v1921 = vunpack.c.h.b16 %v512
      %v1922 = vunpack.c.l.b16 %v513
      %v1923 = vunpack.c.h.b16 %v513
      %v1924 = vunpack.c.l.b16 %v514
      %v1925 = vunpack.c.h.b16 %v514
      %v1926 = vunpack.c.l.b16 %v515
      %v1927 = vunpack.c.h.b16 %v515
      %v1928 = vunpack.c.l.b16 %v516
      %v1929 = vunpack.c.h.b16 %v516
      %v1930 = vunpack.c.l.b16 %v517
      %v1931 = vunpack.c.h.b16 %v517
      %v1932 = vunpack.c.l.b16 %v518
      %v1933 = vunpack.c.h.b16 %v518
      %v1934 = vunpack.c.l.b16 %v519
      %v1935 = vunpack.c.h.b16 %v519
      %v1936 = vunpack.c.l.b16 %v520
      %v1937 = vunpack.c.h.b16 %v520
      %v1938 = vunpack.c.l.b16 %v521
      %v1939 = vunpack.c.h.b16 %v521
      %v1940 = vunpack.c.l.b16 %v522
      %v1941 = vunpack.c.h.b16 %v522
      %v1942 = vunpack.c.l.b16 %v523
      %v1943 = vunpack.c.h.b16 %v523
      %v1944 = vunpack.c.l.b16 %v524
      %v1945 = vunpack.c.h.b16 %v524
      %v1946 = vunpack.c.l.b16 %v525
      %v1947 = vunpack.c.h.b16 %v525
      %v1948 = vunpack.c.l.b16 %v526
      %v1949 = vunpack.c.h.b16 %v526
      %v1950 = vunpack.c.l.b16 %v527
      %v1951 = vunpack.c.h.b16 %v527
      %v1952 = vunpack.c.l.b16 %v528
      %v1953 = vunpack.c.h.b16 %v528
      %v1954 = vunpack.c.l.b16 %v529
      %v1955 = vunpack.c.h.b16 %v529
      %v1956 = vunpack.c.l.b16 %v530
      %v1957 = vunpack.c.h.b16 %v530
      %v1958 = vunpack.c.l.b16 %v531
      %v1959 = vunpack.c.h.b16 %v531
      %v1960 = vunpack.c.l.b16 %v532
      %v1961 = vunpack.c.h.b16 %v532
      %v1962 = vunpack.c.l.b16 %v533
      %v1963 = vunpack.c.h.b16 %v533
      %v1964 = vunpack.c.l.b16 %v534
      %v1965 = vunpack.c.h.b16 %v534
      %v1966 = vunpack.c.l.b16 %v535
      %v1967 = vunpack.c.h.b16 %v535
      %v1968 = vunpack.c.l.b16 %v536
      %v1969 = vunpack.c.h.b16 %v536
      %v1970 = vunpack.c.l.b16 %v537
      %v1971 = vunpack.c.h.b16 %v537
      %v1972 = vunpack.c.l.b16 %v538
      %v1973 = vunpack.c.h.b16 %v538
      %v1974 = vunpack.c.l.b16 %v539
      %v1975 = vunpack.c.h.b16 %v539
      %v1976 = vunpack.c.l.b16 %v540
      %v1977 = vunpack.c.h.b16 %v540
      %v1978 = vunpack.c.l.b16 %v541
      %v1979 = vunpack.c.h.b16 %v541
      %v1980 = vunpack.c.l.b16 %v542
      %v1981 = vunpack.c.h.b16 %v542
      %v1982 = vunpack.c.l.b16 %v543
      %v1983 = vunpack.c.h.b16 %v543
      %v1984 = vunpack.c.l.b16 %v544
      %v1985 = vunpack.c.h.b16 %v544
      %v1986 = vunpack.c.l.b16 %v545
      %v1987 = vunpack.c.h.b16 %v545
      %v1988 = vunpack.c.l.b16 %v546
      %v1989 = vunpack.c.h.b16 %v546
      %v1990 = vunpack.c.l.b16 %v547
      %v1991 = vunpack.c.h.b16 %v547
      %v1992 = vunpack.c.l.b16 %v548
      %v1993 = vunpack.c.h.b16 %v548
      %v1994 = vunpack.c.l.b16 %v549
      %v1995 = vunpack.c.h.b16 %v549
      %v1996 = vunpack.c.l.b16 %v550
      %v1997 = vunpack.c.h.b16 %v550
      %v1998 = vunpack.c.l.b16 %v551
      %v1999 = vunpack.c.h.b16 %v551
      %v2000 = vunpack.c.l.b16 %v552
      %v2001 = vunpack.c.h.b16 %v552
      %v2002 = vunpack.c.l.b16 %v553
      %v2003 = vunpack.c.h.b16 %v553
      %v2004 = vunpack.c.l.b16 %v554
      %v2005 = vunpack.c.h.b16 %v554
      %v2006 = vunpack.c.l.b16 %v555
      %v2007 = vunpack.c.h.b16 %v555
      %v2008 = vunpack.c.l.b16 %v556
      %v2009 = vunpack.c.h.b16 %v556
      %v2010 = vunpack.c.l.b16 %v557
      %v2011 = vunpack.c.h.b16 %v557
      %v2012 = vunpack.c.l.b16 %v558
      %v2013 = vunpack.c.h.b16 %v558
      %v2014 = vunpack.c.l.b16 %v559
      %v2015 = vunpack.c.h.b16 %v559
      %v2016 = vunpack.c.l.b16 %v560
      %v2017 = vunpack.c.h.b16 %v560
      %v2018 = vunpack.c.l.b16 %v561
      %v2019 = vunpack.c.h.b16 %v561
      %v2020 = vunpack.c.l.b16 %v562
      %v2021 = vunpack.c.h.b16 %v562
      %v2022 = vunpack.c.l.b16 %v563
      %v2023 = vunpack.c.h.b16 %v563
      %v2024 = vunpack.c.l.b16 %v564
      %v2025 = vunpack.c.h.b16 %v564
      %v2026 = vunpack.c.l.b16 %v565
      %v2027 = vunpack.c.h.b16 %v565
      %v2028 = vunpack.c.l.b16 %v566
      %v2029 = vunpack.c.h.b16 %v566
      %v2030 = vunpack.c.l.b16 %v567
      %v2031 = vunpack.c.h.b16 %v567
      %v2032 = vunpack.c.l.b16 %v568
      %v2033 = vunpack.c.h.b16 %v568
      %v2034 = vunpack.c.l.b16 %v569
      %v2035 = vunpack.c.h.b16 %v569
      %v2036 = vunpack.c.l.b16 %v570
      %v2037 = vunpack.c.h.b16 %v570
      %v2038 = vunpack.c.l.b16 %v571
      %v2039 = vunpack.c.h.b16 %v571
      %v2040 = vunpack.c.l.b16 %v572
      %v2041 = vunpack.c.h.b16 %v572
      %v2042 = vunpack.c.l.b16 %v573
      %v2043 = vunpack.c.h.b16 %v573
      %v2044 = vunpack.c.l.b16 %v574
      %v2045 = vunpack.c.h.b16 %v574
      %v2046 = vunpack.c.l.b16 %v575
      %v2047 = vunpack.c.h.b16 %v575
      %v2048 = vunpack.c.l.b16 %v576
      %v2049 = vunpack.c.h.b16 %v576
      %v2050 = vunpack.c.l.b16 %v577
      %v2051 = vunpack.c.h.b16 %v577
      %v2052 = vunpack.c.l.b16 %v578
      %v2053 = vunpack.c.h.b16 %v578
      %v2054 = vunpack.c.l.b16 %v579
      %v2055 = vunpack.c.h.b16 %v579
      %v2056 = vunpack.c.l.b16 %v580
      %v2057 = vunpack.c.h.b16 %v580
      %v2058 = vunpack.c.l.b16 %v581
      %v2059 = vunpack.c.h.b16 %v581
      %v2060 = vunpack.c.l.b16 %v582
      %v2061 = vunpack.c.h.b16 %v582
      %v2062 = vunpack.c.l.b16 %v583
      %v2063 = vunpack.c.h.b16 %v583
      %v2064 = vunpack.c.l.b16 %v584
      %v2065 = vunpack.c.h.b16 %v584
      %v2066 = vunpack.c.l.b16 %v585
      %v2067 = vunpack.c.h.b16 %v585
      %v2068 = vunpack.c.l.b16 %v586
      %v2069 = vunpack.c.h.b16 %v586
      %v2070 = vunpack.c.l.b16 %v587
      %v2071 = vunpack.c.h.b16 %v587
      %v2072 = vunpack.c.l.b16 %v588
      %v2073 = vunpack.c.h.b16 %v588
      %v2074 = vunpack.c.l.b16 %v589
      %v2075 = vunpack.c.h.b16 %v589
      %v2076 = vunpack.c.l.b16 %v590
      %v2077 = vunpack.c.h.b16 %v590
      %v2078 = vunpack.c.l.b16 %v591
      %v2079 = vunpack.c.h.b16 %v591
      %v2080 = vunpack.c.l.b16 %v592
      %v2081 = vunpack.c.h.b16 %v592
      %v2082 = vunpack.c.l.b16 %v593
      %v2083 = vunpack.c.h.b16 %v593
      %v2084 = vunpack.c.l.b16 %v594
      %v2085 = vunpack.c.h.b16 %v594
      %v2086 = vunpack.c.l.b16 %v595
      %v2087 = vunpack.c.h.b16 %v595
      %v2088 = vunpack.c.l.b16 %v596
      %v2089 = vunpack.c.h.b16 %v596
      %v2090 = vunpack.c.l.b16 %v597
      %v2091 = vunpack.c.h.b16 %v597
      %v2092 = vunpack.c.l.b16 %v598
      %v2093 = vunpack.c.h.b16 %v598
      %v2094 = vunpack.c.l.b16 %v599
      %v2095 = vunpack.c.h.b16 %v599
      %v2096 = vunpack.c.l.b16 %v600
      %v2097 = vunpack.c.h.b16 %v600
      %v2098 = vunpack.c.l.b16 %v601
      %v2099 = vunpack.c.h.b16 %v601
      %v2100 = vunpack.c.l.b16 %v602
      %v2101 = vunpack.c.h.b16 %v602
      %v2102 = vunpack.c.l.b16 %v603
      %v2103 = vunpack.c.h.b16 %v603
      %v2104 = vunpack.c.l.b16 %v604
      %v2105 = vunpack.c.h.b16 %v604
      %v2106 = vunpack.c.l.b16 %v605
      %v2107 = vunpack.c.h.b16 %v605
      %v2108 = vunpack.c.l.b16 %v606
      %v2109 = vunpack.c.h.b16 %v606
      %v2110 = vunpack.c.l.b16 %v607
      %v2111 = vunpack.c.h.b16 %v607
      %v2112 = vunpack.c.l.b16 %v608
      %v2113 = vunpack.c.h.b16 %v608
      %v2114 = vunpack.c.l.b16 %v609
      %v2115 = vunpack.c.h.b16 %v609
      %v2116 = vunpack.c.l.b16 %v610
      %v2117 = vunpack.c.h.b16 %v610
      %v2118 = vunpack.c.l.b16 %v611
      %v2119 = vunpack.c.h.b16 %v611
      %v2120 = vunpack.c.l.b16 %v612
      %v2121 = vunpack.c.h.b16 %v612
      %v2122 = vunpack.c.l.b16 %v613
      %v2123 = vunpack.c.h.b16 %v613
      %v2124 = vunpack.c.l.b16 %v614
      %v2125 = vunpack.c.h.b16 %v614
      %v2126 = vunpack.c.l.b16 %v615
      %v2127 = vunpack.c.h.b16 %v615
      %v2128 = vunpack.c.l.b16 %v616
      %v2129 = vunpack.c.h.b16 %v616
      %v2130 = vunpack.c.l.b16 %v617
      %v2131 = vunpack.c.h.b16 %v617
      %v2132 = vunpack.c.l.b16 %v618
      %v2133 = vunpack.c.h.b16 %v618
      %v2134 = vunpack.c.l.b16 %v619
      %v2135 = vunpack.c.h.b16 %v619
      %v2136 = vunpack.c.l.b16 %v620
      %v2137 = vunpack.c.h.b16 %v620
      %v2138 = vunpack.c.l.b16 %v621
      %v2139 = vunpack.c.h.b16 %v621
      %v2140 = vunpack.c.l.b16 %v622
      %v2141 = vunpack.c.h.b16 %v622
      %v2142 = vunpack.c.l.b16 %v623
      %v2143 = vunpack.c.h.b16 %v623
      %v2144 = vunpack.c.l.b16 %v624
      %v2145 = vunpack.c.h.b16 %v624
      %v2146 = vunpack.c.l.b16 %v625
      %v2147 = vunpack.c.h.b16 %v625
      %v2148 = vunpack.c.l.b16 %v626
      %v2149 = vunpack.c.h.b16 %v626
      %v2150 = vunpack.c.l.b16 %v627
      %v2151 = vunpack.c.h.b16 %v627
      %v2152 = vunpack.c.l.b16 %v628
      %v2153 = vunpack.c.h.b16 %v628
      %v2154 = vunpack.c.l.b16 %v629
      %v2155 = vunpack.c.h.b16 %v629
      %v2156 = vunpack.c.l.b16 %v630
      %v2157 = vunpack.c.h.b16 %v630
      %v2158 = vunpack.c.l.b16 %v631
      %v2159 = vunpack.c.h.b16 %v631
      %v2160 = vunpack.c.l.b16 %v632
      %v2161 = vunpack.c.h.b16 %v632
      %v2162 = vunpack.c.l.b16 %v633
      %v2163 = vunpack.c.h.b16 %v633
      %v2164 = vunpack.c.l.b16 %v634
      %v2165 = vunpack.c.h.b16 %v634
      %v2166 = vunpack.c.l.b16 %v635
      %v2167 = vunpack.c.h.b16 %v635
      %v2168 = vunpack.c.l.b16 %v636
      %v2169 = vunpack.c.h.b16 %v636
      %v2170 = vunpack.c.l.b16 %v637
      %v2171 = vunpack.c.h.b16 %v637
      %v2172 = vunpack.c.l.b16 %v638
      %v2173 = vunpack.c.h.b16 %v638
      %v2174 = vunpack.c.l.b16 %v639
      %v2175 = vunpack.c.h.b16 %v639
      %v2176 = vunpack.c.l.b16 %v640
      %v2177 = vunpack.c.h.b16 %v640
      %v2178 = vunpack.c.l.b16 %v641
      %v2179 = vunpack.c.h.b16 %v641
      %v2180 = vunpack.c.l.b16 %v642
      %v2181 = vunpack.c.h.b16 %v642
      %v2182 = vunpack.c.l.b16 %v643
      %v2183 = vunpack.c.h.b16 %v643
      %v2184 = vunpack.c.l.b16 %v644
      %v2185 = vunpack.c.h.b16 %v644
      %v2186 = vunpack.c.l.b16 %v645
      %v2187 = vunpack.c.h.b16 %v645
      %v2188 = vunpack.c.l.b16 %v646
      %v2189 = vunpack.c.h.b16 %v646
      %v2190 = vunpack.c.l.b16 %v647
      %v2191 = vunpack.c.h.b16 %v647
      %v2192 = vunpack.c.l.b16 %v648
      %v2193 = vunpack.c.h.b16 %v648
      %v2194 = vunpack.c.l.b16 %v649
      %v2195 = vunpack.c.h.b16 %v649
      %v2196 = vunpack.c.l.b16 %v650
      %v2197 = vunpack.c.h.b16 %v650
      %v2198 = vunpack.c.l.b16 %v651
      %v2199 = vunpack.c.h.b16 %v651
      %v2200 = vunpack.c.l.b16 %v652
      %v2201 = vunpack.c.h.b16 %v652
      %v2202 = vunpack.c.l.b16 %v653
      %v2203 = vunpack.c.h.b16 %v653
      %v2204 = vunpack.c.l.b16 %v654
      %v2205 = vunpack.c.h.b16 %v654
      %v2206 = vunpack.c.l.b16 %v655
      %v2207 = vunpack.c.h.b16 %v655
      %v2208 = vunpack.c.l.b16 %v656
      %v2209 = vunpack.c.h.b16 %v656
      %v2210 = vunpack.c.l.b16 %v657
      %v2211 = vunpack.c.h.b16 %v657
      %v2212 = vunpack.c.l.b16 %v658
      %v2213 = vunpack.c.h.b16 %v658
      %v2214 = vunpack.c.l.b16 %v659
      %v2215 = vunpack.c.h.b16 %v659
      %v2216 = vunpack.c.l.b16 %v660
      %v2217 = vunpack.c.h.b16 %v660
      %v2218 = vunpack.c.l.b16 %v661
      %v2219 = vunpack.c.h.b16 %v661
      %v2220 = vunpack.c.l.b16 %v662
      %v2221 = vunpack.c.h.b16 %v662
      %v2222 = vunpack.c.l.b16 %v663
      %v2223 = vunpack.c.h.b16 %v663
      %v2224 = vunpack.c.l.b16 %v664
      %v2225 = vunpack.c.h.b16 %v664
      %v2226 = vunpack.c.l.b16 %v665
      %v2227 = vunpack.c.h.b16 %v665
      %v2228 = vunpack.c.l.b16 %v666
      %v2229 = vunpack.c.h.b16 %v666
      %v2230 = vunpack.c.l.b16 %v667
      %v2231 = vunpack.c.h.b16 %v667
      %v2232 = vunpack.c.l.b16 %v668
      %v2233 = vunpack.c.h.b16 %v668
      %v2234 = vunpack.c.l.b16 %v669
      %v2235 = vunpack.c.h.b16 %v669
      %v2236 = vunpack.c.l.b16 %v670
      %v2237 = vunpack.c.h.b16 %v670
      %v2238 = vunpack.c.l.b16 %v671
      %v2239 = vunpack.c.h.b16 %v671
      %v2240 = vunpack.c.l.b16 %v672
      %v2241 = vunpack.c.h.b16 %v672
      %v2242 = vunpack.c.l.b16 %v673
      %v2243 = vunpack.c.h.b16 %v673
      %v2244 = vunpack.c.l.b16 %v674
      %v2245 = vunpack.c.h.b16 %v674
      %v2246 = vunpack.c.l.b16 %v675
      %v2247 = vunpack.c.h.b16 %v675
      %v2248 = vunpack.c.l.b16 %v676
      %v2249 = vunpack.c.h.b16 %v676
      %v2250 = vunpack.c.l.b16 %v677
      %v2251 = vunpack.c.h.b16 %v677
      %v2252 = vunpack.c.l.b16 %v678
      %v2253 = vunpack.c.h.b16 %v678
      %v2254 = vunpack.c.l.b16 %v679
      %v2255 = vunpack.c.h.b16 %v679
      %v2256 = vunpack.c.l.b16 %v680
      %v2257 = vunpack.c.h.b16 %v680
      %v2258 = vunpack.c.l.b16 %v681
      %v2259 = vunpack.c.h.b16 %v681
      %v2260 = vunpack.c.l.b16 %v682
      %v2261 = vunpack.c.h.b16 %v682
      %v2262 = vunpack.c.l.b16 %v683
      %v2263 = vunpack.c.h.b16 %v683
      %v2264 = vunpack.c.l.b16 %v684
      %v2265 = vunpack.c.h.b16 %v684
      %v2266 = vunpack.c.l.b16 %v685
      %v2267 = vunpack.c.h.b16 %v685
      %v2268 = vunpack.c.l.b16 %v686
      %v2269 = vunpack.c.h.b16 %v686
      %v2270 = vunpack.c.l.b16 %v687
      %v2271 = vunpack.c.h.b16 %v687
      %v2272 = vunpack.c.l.b16 %v688
      %v2273 = vunpack.c.h.b16 %v688
      %v2274 = vunpack.c.l.b16 %v689
      %v2275 = vunpack.c.h.b16 %v689
      %v2276 = vunpack.c.l.b16 %v690
      %v2277 = vunpack.c.h.b16 %v690
      %v2278 = vunpack.c.l.b16 %v691
      %v2279 = vunpack.c.h.b16 %v691
      %v2280 = vunpack.c.l.b16 %v692
      %v2281 = vunpack.c.h.b16 %v692
      %v2282 = vunpack.c.l.b16 %v693
      %v2283 = vunpack.c.h.b16 %v693
      %v2284 = vunpack.c.l.b16 %v694
      %v2285 = vunpack.c.h.b16 %v694
      %v2286 = vunpack.c.l.b16 %v695
      %v2287 = vunpack.c.h.b16 %v695
      %v2288 = vunpack.c.l.b16 %v696
      %v2289 = vunpack.c.h.b16 %v696
      %v2290 = vunpack.c.l.b16 %v697
      %v2291 = vunpack.c.h.b16 %v697
      %v2292 = vunpack.c.l.b16 %v698
      %v2293 = vunpack.c.h.b16 %v698
      %v2294 = vunpack.c.l.b16 %v699
      %v2295 = vunpack.c.h.b16 %v699
      %v2296 = vunpack.c.l.b16 %v700
      %v2297 = vunpack.c.h.b16 %v700
      %v2298 = vunpack.c.l.b16 %v701
      %v2299 = vunpack.c.h.b16 %v701
      %v2300 = vunpack.c.l.b16 %v702
      %v2301 = vunpack.c.h.b16 %v702
      %v2302 = vunpack.c.l.b16 %v703
      %v2303 = vunpack.c.h.b16 %v703
      %v2304 = vunpack.c.l.b16 %v704
      %v2305 = vunpack.c.h.b16 %v704
      %v2306 = vunpack.c.l.b16 %v705
      %v2307 = vunpack.c.h.b16 %v705
      %v2308 = vunpack.c.l.b16 %v706
      %v2309 = vunpack.c.h.b16 %v706
      %v2310 = vunpack.c.l.b16 %v707
      %v2311 = vunpack.c.h.b16 %v707
      %v2312 = vunpack.c.l.b16 %v708
      %v2313 = vunpack.c.h.b16 %v708
      %v2314 = vunpack.c.l.b16 %v709
      %v2315 = vunpack.c.h.b16 %v709
      %v2316 = vunpack.c.l.b16 %v710
      %v2317 = vunpack.c.h.b16 %v710
      %v2318 = vunpack.c.l.b16 %v711
      %v2319 = vunpack.c.h.b16 %v711
      %v2320 = vunpack.c.l.b16 %v712
      %v2321 = vunpack.c.h.b16 %v712
      %v2322 = vunpack.c.l.b16 %v713
      %v2323 = vunpack.c.h.b16 %v713
      %v2324 = vunpack.c.l.b16 %v714
      %v2325 = vunpack.c.h.b16 %v714
      %v2326 = vunpack.c.l.b16 %v715
      %v2327 = vunpack.c.h.b16 %v715
      %v2328 = vunpack.c.l.b16 %v716
      %v2329 = vunpack.c.h.b16 %v716
      %v2330 = vunpack.c.l.b16 %v717
      %v2331 = vunpack.c.h.b16 %v717
      %v2332 = vunpack.c.l.b16 %v718
      %v2333 = vunpack.c.h.b16 %v718
      %v2334 = vunpack.c.l.b16 %v719
      %v2335 = vunpack.c.h.b16 %v719
      %v2336 = vunpack.c.l.b16 %v720
      %v2337 = vunpack.c.h.b16 %v720
      %v2338 = vunpack.c.l.b16 %v721
      %v2339 = vunpack.c.h.b16 %v721
      %v2340 = vunpack.c.l.b16 %v722
      %v2341 = vunpack.c.h.b16 %v722
      %v2342 = vunpack.c.l.b16 %v723
      %v2343 = vunpack.c.h.b16 %v723
      %v2344 = vunpack.c.l.b16 %v724
      %v2345 = vunpack.c.h.b16 %v724
      %v2346 = vunpack.c.l.b16 %v725
      %v2347 = vunpack.c.h.b16 %v725
      %v2348 = vunpack.c.l.b16 %v726
      %v2349 = vunpack.c.h.b16 %v726
      %v2350 = vunpack.c.l.b16 %v727
      %v2351 = vunpack.c.h.b16 %v727
      %v2352 = vunpack.c.l.b16 %v728
      %v2353 = vunpack.c.h.b16 %v728
      %v2354 = vunpack.c.l.b16 %v729
      %v2355 = vunpack.c.h.b16 %v729
      %v2356 = vunpack.c.l.b16 %v730
      %v2357 = vunpack.c.h.b16 %v730
      %v2358 = vunpack.c.l.b16 %v731
      %v2359 = vunpack.c.h.b16 %v731
      %v2360 = vunpack.c.l.b16 %v732
      %v2361 = vunpack.c.h.b16 %v732
      %v2362 = vunpack.c.l.b16 %v733
      %v2363 = vunpack.c.h.b16 %v733
      %v2364 = vunpack.c.l.b16 %v734
      %v2365 = vunpack.c.h.b16 %v734
      %v2366 = vunpack.c.l.b16 %v735
      %v2367 = vunpack.c.h.b16 %v735
      %v2368 = vunpack.c.l.b16 %v736
      %v2369 = vunpack.c.h.b16 %v736
      %v2370 = vunpack.c.l.b16 %v737
      %v2371 = vunpack.c.h.b16 %v737
      %v2372 = vunpack.c.l.b16 %v738
      %v2373 = vunpack.c.h.b16 %v738
      %v2374 = vunpack.c.l.b16 %v739
      %v2375 = vunpack.c.h.b16 %v739
      %v2376 = vunpack.c.l.b16 %v740
      %v2377 = vunpack.c.h.b16 %v740
      %v2378 = vunpack.c.l.b16 %v741
      %v2379 = vunpack.c.h.b16 %v741
      %v2380 = vunpack.c.l.b16 %v742
      %v2381 = vunpack.c.h.b16 %v742
      %v2382 = vunpack.c.l.b16 %v743
      %v2383 = vunpack.c.h.b16 %v743
      %v2384 = vunpack.c.l.b16 %v744
      %v2385 = vunpack.c.h.b16 %v744
      %v2386 = vunpack.c.l.b16 %v745
      %v2387 = vunpack.c.h.b16 %v745
      %v2388 = vunpack.c.l.b16 %v746
      %v2389 = vunpack.c.h.b16 %v746
      %v2390 = vunpack.c.l.b16 %v747
      %v2391 = vunpack.c.h.b16 %v747
      %v2392 = vunpack.c.l.b16 %v748
      %v2393 = vunpack.c.h.b16 %v748
      %v2394 = vunpack.c.l.b16 %v749
      %v2395 = vunpack.c.h.b16 %v749
      %v2396 = vunpack.c.l.b16 %v750
      %v2397 = vunpack.c.h.b16 %v750
      %v2398 = vunpack.c.l.b16 %v751
      %v2399 = vunpack.c.h.b16 %v751
      %v2400 = vunpack.c.l.b16 %v752
      %v2401 = vunpack.c.h.b16 %v752
      %v2402 = vunpack.c.l.b16 %v753
      %v2403 = vunpack.c.h.b16 %v753
      %v2404 = vunpack.c.l.b16 %v754
      %v2405 = vunpack.c.h.b16 %v754
      %v2406 = vunpack.c.l.b16 %v755
      %v2407 = vunpack.c.h.b16 %v755
      %v2408 = vunpack.c.l.b16 %v756
      %v2409 = vunpack.c.h.b16 %v756
      %v2410 = vunpack.c.l.b16 %v757
      %v2411 = vunpack.c.h.b16 %v757
      %v2412 = vunpack.c.l.b16 %v758
      %v2413 = vunpack.c.h.b16 %v758
      %v2414 = vunpack.c.l.b16 %v759
      %v2415 = vunpack.c.h.b16 %v759
      %v2416 = vunpack.c.l.b16 %v760
      %v2417 = vunpack.c.h.b16 %v760
      %v2418 = vunpack.c.l.b16 %v761
      %v2419 = vunpack.c.h.b16 %v761
      %v2420 = vunpack.c.l.b16 %v762
      %v2421 = vunpack.c.h.b16 %v762
      %v2422 = vunpack.c.l.b16 %v763
      %v2423 = vunpack.c.h.b16 %v763
      %v2424 = vunpack.c.l.b16 %v764
      %v2425 = vunpack.c.h.b16 %v764
      %v2426 = vunpack.c.l.b16 %v765
      %v2427 = vunpack.c.h.b16 %v765
      %v2428 = vunpack.c.l.b16 %v766
      %v2429 = vunpack.c.h.b16 %v766
      %v2430 = vunpack.c.l.b16 %v767
      %v2431 = vunpack.c.h.b16 %v767
      %v2432 = vunpack.c.l.b16 %v768
      %v2433 = vunpack.c.h.b16 %v768
      %v2434 = vpack.c.b16 %v1436, %v1434
      %v2435 = vpack.c.b16 %v1437, %v1435
      %v2436 = vpack.c.b16 %v1440, %v1438
      %v2437 = vpack.c.b16 %v1441, %v1439
      %v2438 = vpack.c.b16 %v1444, %v1442
      %v2439 = vpack.c.b16 %v1445, %v1443
      %v2440 = vpack.c.b16 %v1448, %v1446
      %v2441 = vpack.c.b16 %v1449, %v1447
      %v2442 = vpack.c.b16 %v1452, %v1450
      %v2443 = vpack.c.b16 %v1453, %v1451
      %v2444 = vpack.c.b16 %v1456, %v1454
      %v2445 = vpack.c.b16 %v1457, %v1455
      %v2446 = vpack.c.b16 %v1460, %v1458
      %v2447 = vpack.c.b16 %v1461, %v1459
      %v2448 = vpack.c.b16 %v1464, %v1462
      %v2449 = vpack.c.b16 %v1465, %v1463
      %v2450 = vpack.c.b16 %v1468, %v1466
      %v2451 = vpack.c.b16 %v1469, %v1467
      %v2452 = vpack.c.b16 %v1472, %v1470
      %v2453 = vpack.c.b16 %v1473, %v1471
      %v2454 = vpack.c.b16 %v1476, %v1474
      %v2455 = vpack.c.b16 %v1477, %v1475
      %v2456 = vpack.c.b16 %v1480, %v1478
      %v2457 = vpack.c.b16 %v1481, %v1479
      %v2458 = vpack.c.b16 %v1484, %v1482
      %v2459 = vpack.c.b16 %v1485, %v1483
      %v2460 = vpack.c.b16 %v1488, %v1486
      %v2461 = vpack.c.b16 %v1489, %v1487
      %v2462 = vpack.c.b16 %v1492, %v1490
      %v2463 = vpack.c.b16 %v1493, %v1491
      %v2464 = vpack.c.b16 %v1496, %v1494
      %v2465 = vpack.c.b16 %v1497, %v1495
      %v2466 = vpack.c.b16 %v1500, %v1498
      %v2467 = vpack.c.b16 %v1501, %v1499
      %v2468 = vpack.c.b16 %v1504, %v1502
      %v2469 = vpack.c.b16 %v1505, %v1503
      %v2470 = vpack.c.b16 %v1508, %v1506
      %v2471 = vpack.c.b16 %v1509, %v1507
      %v2472 = vpack.c.b16 %v1512, %v1510
      %v2473 = vpack.c.b16 %v1513, %v1511
      %v2474 = vpack.c.b16 %v1516, %v1514
      %v2475 = vpack.c.b16 %v1517, %v1515
      %v2476 = vpack.c.b16 %v1520, %v1518
      %v2477 = vpack.c.b16 %v1521, %v1519
      %v2478 = vpack.c.b16 %v1524, %v1522
      %v2479 = vpack.c.b16 %v1525, %v1523
      %v2480 = vpack.c.b16 %v1528, %v1526
      %v2481 = vpack.c.b16 %v1529, %v1527
      %v2482 = vpack.c.b16 %v1532, %v1530
      %v2483 = vpack.c.b16 %v1533, %v1531
      %v2484 = vpack.c.b16 %v1536, %v1534
      %v2485 = vpack.c.b16 %v1537, %v1535
      %v2486 = vpack.c.b16 %v1540, %v1538
      %v2487 = vpack.c.b16 %v1541, %v1539
      %v2488 = vpack.c.b16 %v1544, %v1542
      %v2489 = vpack.c.b16 %v1545, %v1543
      %v2490 = vpack.c.b16 %v1548, %v1546
      %v2491 = vpack.c.b16 %v1549, %v1547
      %v2492 = vpack.c.b16 %v1552, %v1550
      %v2493 = vpack.c.b16 %v1553, %v1551
      %v2494 = vpack.c.b16 %v1556, %v1554
      %v2495 = vpack.c.b16 %v1557, %v1555
      %v2496 = vpack.c.b16 %v1560, %v1558
      %v2497 = vpack.c.b16 %v1561, %v1559
      %v2498 = vpack.c.b16 %v1564, %v1562
      %v2499 = vpack.c.b16 %v1565, %v1563
      %v2500 = vpack.c.b16 %v1568, %v1566
      %v2501 = vpack.c.b16 %v1569, %v1567
      %v2502 = vpack.c.b16 %v1572, %v1570
      %v2503 = vpack.c.b16 %v1573, %v1571
      %v2504 = vpack.c.b16 %v1576, %v1574
      %v2505 = vpack.c.b16 %v1577, %v1575
      %v2506 = vpack.c.b16 %v1580, %v1578
      %v2507 = vpack.c.b16 %v1581, %v1579
      %v2508 = vpack.c.b16 %v1584, %v1582
      %v2509 = vpack.c.b16 %v1585, %v1583
      %v2510 = vpack.c.b16 %v1588, %v1586
      %v2511 = vpack.c.b16 %v1589, %v1587
      %v2512 = vpack.c.b16 %v1592, %v1590
      %v2513 = vpack.c.b16 %v1593, %v1591
      %v2514 = vpack.c.b16 %v1596, %v1594
      %v2515 = vpack.c.b16 %v1597, %v1595
      %v2516 = vpack.c.b16 %v1600, %v1598
      %v2517 = vpack.c.b16 %v1601, %v1599
      %v2518 = vpack.c.b16 %v1604, %v1602
      %v2519 = vpack.c.b16 %v1605, %v1603
      %v2520 = vpack.c.b16 %v1608, %v1606
      %v2521 = vpack.c.b16 %v1609, %v1607
      %v2522 = vpack.c.b16 %v1612, %v1610
      %v2523 = vpack.c.b16 %v1613, %v1611
      %v2524 = vpack.c.b16 %v1616, %v1614
      %v2525 = vpack.c.b16 %v1617, %v1615
      %v2526 = vpack.c.b16 %v1620, %v1618
      %v2527 = vpack.c.b16 %v1621, %v1619
      %v2528 = vpack.c.b16 %v1624, %v1622
      %v2529 = vpack.c.b16 %v1625, %v1623
      %v2530 = vpack.c.b16 %v1628, %v1626
      %v2531 = vpack.c.b16 %v1629, %v1627
      %v2532 = vpack.c.b16 %v1632, %v1630
      %v2533 = vpack.c.b16 %v1633, %v1631
      %v2534 = vpack.c.b16 %v1636, %v1634
      %v2535 = vpack.c.b16 %v1637, %v1635
      %v2536 = vpack.c.b16 %v1640, %v1638
      %v2537 = vpack.c.b16 %v1641, %v1639
      %v2538 = vpack.c.b16 %v1644, %v1642
      %v2539 = vpack.c.b16 %v1645, %v1643
      %v2540 = vpack.c.b16 %v1648, %v1646
      %v2541 = vpack.c.b16 %v1649, %v1647
      %v2542 = vpack.c.b16 %v1652, %v1650
      %v2543 = vpack.c.b16 %v1653, %v1651
      %v2544 = vpack.c.b16 %v1656, %v1654
      %v2545 = vpack.c.b16 %v1657, %v1655
      %v2546 = vpack.c.b16 %v1660, %v1658
      %v2547 = vpack.c.b16 %v1661, %v1659
      %v2548 = vpack.c.b16 %v1664, %v1662
      %v2549 = vpack.c.b16 %v1665, %v1663
      %v2550 = vpack.c.b16 %v1668, %v1666
      %v2551 = vpack.c.b16 %v1669, %v1667
      %v2552 = vpack.c.b16 %v1672, %v1670
      %v2553 = vpack.c.b16 %v1673, %v1671
      %v2554 = vpack.c.b16 %v1676, %v1674
      %v2555 = vpack.c.b16 %v1677, %v1675
      %v2556 = vpack.c.b16 %v1680, %v1678
      %v2557 = vpack.c.b16 %v1681, %v1679
      %v2558 = vpack.c.b16 %v1684, %v1682
      %v2559 = vpack.c.b16 %v1685, %v1683
      %v2560 = vpack.c.b16 %v1688, %v1686
      %v2561 = vpack.c.b16 %v1689, %v1687
      %v2562 = vpack.c.b16 %v1692, %v1690
      %v2563 = vpack.c.b16 %v1693, %v1691
      %v2564 = vpack.c.b16 %v1696, %v1694
      %v2565 = vpack.c.b16 %v1697, %v1695
      %v2566 = vpack.c.b16 %v1700, %v1698
      %v2567 = vpack.c.b16 %v1701, %v1699
      %v2568 = vpack.c.b16 %v1704, %v1702
      %v2569 = vpack.c.b16 %v1705, %v1703
      %v2570 = vpack.c.b16 %v1708, %v1706
      %v2571 = vpack.c.b16 %v1709, %v1707
      %v2572 = vpack.c.b16 %v1712, %v1710
      %v2573 = vpack.c.b16 %v1713, %v1711
      %v2574 = vpack.c.b16 %v1716, %v1714
      %v2575 = vpack.c.b16 %v1717, %v1715
      %v2576 = vpack.c.b16 %v1720, %v1718
      %v2577 = vpack.c.b16 %v1721, %v1719
      %v2578 = vpack.c.b16 %v1724, %v1722
      %v2579 = vpack.c.b16 %v1725, %v1723
      %v2580 = vpack.c.b16 %v1728, %v1726
      %v2581 = vpack.c.b16 %v1729, %v1727
      %v2582 = vpack.c.b16 %v1732, %v1730
      %v2583 = vpack.c.b16 %v1733, %v1731
      %v2584 = vpack.c.b16 %v1736, %v1734
      %v2585 = vpack.c.b16 %v1737, %v1735
      %v2586 = vpack.c.b16 %v1740, %v1738
      %v2587 = vpack.c.b16 %v1741, %v1739
      %v2588 = vpack.c.b16 %v1744, %v1742
      %v2589 = vpack.c.b16 %v1745, %v1743
      %v2590 = vpack.c.b16 %v1748, %v1746
      %v2591 = vpack.c.b16 %v1749, %v1747
      %v2592 = vpack.c.b16 %v1752, %v1750
      %v2593 = vpack.c.b16 %v1753, %v1751
      %v2594 = vpack.c.b16 %v1756, %v1754
      %v2595 = vpack.c.b16 %v1757, %v1755
      %v2596 = vpack.c.b16 %v1760, %v1758
      %v2597 = vpack.c.b16 %v1761, %v1759
      %v2598 = vpack.c.b16 %v1764, %v1762
      %v2599 = vpack.c.b16 %v1765, %v1763
      %v2600 = vpack.c.b16 %v1768, %v1766
      %v2601 = vpack.c.b16 %v1769, %v1767
      %v2602 = vpack.c.b16 %v1772, %v1770
      %v2603 = vpack.c.b16 %v1773, %v1771
      %v2604 = vpack.c.b16 %v1776, %v1774
      %v2605 = vpack.c.b16 %v1777, %v1775
      %v2606 = vpack.c.b16 %v1780, %v1778
      %v2607 = vpack.c.b16 %v1781, %v1779
      %v2608 = vpack.c.b16 %v1784, %v1782
      %v2609 = vpack.c.b16 %v1785, %v1783
      %v2610 = vpack.c.b16 %v1788, %v1786
      %v2611 = vpack.c.b16 %v1789, %v1787
      %v2612 = vpack.c.b16 %v1792, %v1790
      %v2613 = vpack.c.b16 %v1793, %v1791
      %v2614 = vpack.c.b16 %v1796, %v1794
      %v2615 = vpack.c.b16 %v1797, %v1795
      %v2616 = vpack.c.b16 %v1800, %v1798
      %v2617 = vpack.c.b16 %v1801, %v1799
      %v2618 = vpack.c.b16 %v1804, %v1802
      %v2619 = vpack.c.b16 %v1805, %v1803
      %v2620 = vpack.c.b16 %v1808, %v1806
      %v2621 = vpack.c.b16 %v1809, %v1807
      %v2622 = vpack.c.b16 %v1812, %v1810
      %v2623 = vpack.c.b16 %v1813, %v1811
      %v2624 = vpack.c.b16 %v1816, %v1814
      %v2625 = vpack.c.b16 %v1817, %v1815
      %v2626 = vpack.c.b16 %v1820, %v1818
      %v2627 = vpack.c.b16 %v1821, %v1819
      %v2628 = vpack.c.b16 %v1824, %v1822
      %v2629 = vpack.c.b16 %v1825, %v1823
      %v2630 = vpack.c.b16 %v1828, %v1826
      %v2631 = vpack.c.b16 %v1829, %v1827
      %v2632 = vpack.c.b16 %v1832, %v1830
      %v2633 = vpack.c.b16 %v1833, %v1831
      %v2634 = vpack.c.b16 %v1836, %v1834
      %v2635 = vpack.c.b16 %v1837, %v1835
      %v2636 = vpack.c.b16 %v1840, %v1838
      %v2637 = vpack.c.b16 %v1841, %v1839
      %v2638 = vpack.c.b16 %v1844, %v1842
      %v2639 = vpack.c.b16 %v1845, %v1843
      %v2640 = vpack.c.b16 %v1848, %v1846
      %v2641 = vpack.c.b16 %v1849, %v1847
      %v2642 = vpack.c.b16 %v1852, %v1850
      %v2643 = vpack.c.b16 %v1853, %v1851
      %v2644 = vpack.c.b16 %v1856, %v1854
      %v2645 = vpack.c.b16 %v1857, %v1855
      %v2646 = vpack.c.b16 %v1860, %v1858
      %v2647 = vpack.c.b16 %v1861, %v1859
      %v2648 = vpack.c.b16 %v1864, %v1862
      %v2649 = vpack.c.b16 %v1865, %v1863
      %v2650 = vpack.c.b16 %v1868, %v1866
      %v2651 = vpack.c.b16 %v1869, %v1867
      %v2652 = vpack.c.b16 %v1872, %v1870
      %v2653 = vpack.c.b16 %v1873, %v1871
      %v2654 = vpack.c.b16 %v1876, %v1874
      %v2655 = vpack.c.b16 %v1877, %v1875
      %v2656 = vpack.c.b16 %v1880, %v1878
      %v2657 = vpack.c.b16 %v1881, %v1879
      %v2658 = vpack.c.b16 %v1884, %v1882
      %v2659 = vpack.c.b16 %v1885, %v1883
      %v2660 = vpack.c.b16 %v1888, %v1886
      %v2661 = vpack.c.b16 %v1889, %v1887
      %v2662 = vpack.c.b16 %v1892, %v1890
      %v2663 = vpack.c.b16 %v1893, %v1891
      %v2664 = vpack.c.b16 %v1896, %v1894
      %v2665 = vpack.c.b16 %v1897, %v1895
      %v2666 = vpack.c.b16 %v1900, %v1898
      %v2667 = vpack.c.b16 %v1901, %v1899
      %v2668 = vpack.c.b16 %v1904, %v1902
      %v2669 = vpack.c.b16 %v1905, %v1903
      %v2670 = vpack.c.b16 %v1908, %v1906
      %v2671 = vpack.c.b16 %v1909, %v1907
      %v2672 = vpack.c.b16 %v1912, %v1910
      %v2673 = vpack.c.b16 %v1913, %v1911
      %v2674 = vpack.c.b16 %v1916, %v1914
      %v2675 = vpack.c.b16 %v1917, %v1915
      %v2676 = vpack.c.b16 %v1920, %v1918
      %v2677 = vpack.c.b16 %v1921, %v1919
      %v2678 = vpack.c.b16 %v1924, %v1922
      %v2679 = vpack.c.b16 %v1925, %v1923
      %v2680 = vpack.c.b16 %v1928, %v1926
      %v2681 = vpack.c.b16 %v1929, %v1927
      %v2682 = vpack.c.b16 %v1932, %v1930
      %v2683 = vpack.c.b16 %v1933, %v1931
      %v2684 = vpack.c.b16 %v1936, %v1934
      %v2685 = vpack.c.b16 %v1937, %v1935
      %v2686 = vpack.c.b16 %v1940, %v1938
      %v2687 = vpack.c.b16 %v1941, %v1939
      %v2688 = vpack.c.b16 %v1944, %v1942
      %v2689 = vpack.c.b16 %v1945, %v1943
      %v2690 = vpack.c.b16 %v1948, %v1946
      %v2691 = vpack.c.b16 %v1949, %v1947
      %v2692 = vpack.c.b16 %v1952, %v1950
      %v2693 = vpack.c.b16 %v1953, %v1951
      %v2694 = vpack.c.b16 %v1956, %v1954
      %v2695 = vpack.c.b16 %v1957, %v1955
      %v2696 = vpack.c.b16 %v1960, %v1958
      %v2697 = vpack.c.b16 %v1961, %v1959
      %v2698 = vpack.c.b16 %v1964, %v1962
      %v2699 = vpack.c.b16 %v1965, %v1963
      %v2700 = vpack.c.b16 %v1968, %v1966
      %v2701 = vpack.c.b16 %v1969, %v1967
      %v2702 = vpack.c.b16 %v1972, %v1970
      %v2703 = vpack.c.b16 %v1973, %v1971
      %v2704 = vpack.c.b16 %v1976, %v1974
      %v2705 = vpack.c.b16 %v1977, %v1975
      %v2706 = vpack.c.b16 %v1980, %v1978
      %v2707 = vpack.c.b16 %v1981, %v1979
      %v2708 = vpack.c.b16 %v1984, %v1982
      %v2709 = vpack.c.b16 %v1985, %v1983
      %v2710 = vpack.c.b16 %v1988, %v1986
      %v2711 = vpack.c.b16 %v1989, %v1987
      %v2712 = vpack.c.b16 %v1992, %v1990
      %v2713 = vpack.c.b16 %v1993, %v1991
      %v2714 = vpack.c.b16 %v1996, %v1994
      %v2715 = vpack.c.b16 %v1997, %v1995
      %v2716 = vpack.c.b16 %v2000, %v1998
      %v2717 = vpack.c.b16 %v2001, %v1999
      %v2718 = vpack.c.b16 %v2004, %v2002
      %v2719 = vpack.c.b16 %v2005, %v2003
      %v2720 = vpack.c.b16 %v2008, %v2006
      %v2721 = vpack.c.b16 %v2009, %v2007
      %v2722 = vpack.c.b16 %v2012, %v2010
      %v2723 = vpack.c.b16 %v2013, %v2011
      %v2724 = vpack.c.b16 %v2016, %v2014
      %v2725 = vpack.c.b16 %v2017, %v2015
      %v2726 = vpack.c.b16 %v2020, %v2018
      %v2727 = vpack.c.b16 %v2021, %v2019
      %v2728 = vpack.c.b16 %v2024, %v2022
      %v2729 = vpack.c.b16 %v2025, %v2023
      %v2730 = vpack.c.b16 %v2028, %v2026
      %v2731 = vpack.c.b16 %v2029, %v2027
      %v2732 = vpack.c.b16 %v2032, %v2030
      %v2733 = vpack.c.b16 %v2033, %v2031
      %v2734 = vpack.c.b16 %v2036, %v2034
      %v2735 = vpack.c.b16 %v2037, %v2035
      %v2736 = vpack.c.b16 %v2040, %v2038
      %v2737 = vpack.c.b16 %v2041, %v2039
      %v2738 = vpack.c.b16 %v2044, %v2042
      %v2739 = vpack.c.b16 %v2045, %v2043
      %v2740 = vpack.c.b16 %v2048, %v2046
      %v2741 = vpack.c.b16 %v2049, %v2047
      %v2742 = vpack.c.b16 %v2052, %v2050
      %v2743 = vpack.c.b16 %v2053, %v2051
      %v2744 = vpack.c.b16 %v2056, %v2054
      %v2745 = vpack.c.b16 %v2057, %v2055
      %v2746 = vpack.c.b16 %v2060, %v2058
      %v2747 = vpack.c.b16 %v2061, %v2059
      %v2748 = vpack.c.b16 %v2064, %v2062
      %v2749 = vpack.c.b16 %v2065, %v2063
      %v2750 = vpack.c.b16 %v2068, %v2066
      %v2751 = vpack.c.b16 %v2069, %v2067
      %v2752 = vpack.c.b16 %v2072, %v2070
      %v2753 = vpack.c.b16 %v2073, %v2071
      %v2754 = vpack.c.b16 %v2076, %v2074
      %v2755 = vpack.c.b16 %v2077, %v2075
      %v2756 = vpack.c.b16 %v2080, %v2078
      %v2757 = vpack.c.b16 %v2081, %v2079
      %v2758 = vpack.c.b16 %v2084, %v2082
      %v2759 = vpack.c.b16 %v2085, %v2083
      %v2760 = vpack.c.b16 %v2088, %v2086
      %v2761 = vpack.c.b16 %v2089, %v2087
      %v2762 = vpack.c.b16 %v2092, %v2090
      %v2763 = vpack.c.b16 %v2093, %v2091
      %v2764 = vpack.c.b16 %v2096, %v2094
      %v2765 = vpack.c.b16 %v2097, %v2095
      %v2766 = vpack.c.b16 %v2100, %v2098
      %v2767 = vpack.c.b16 %v2101, %v2099
      %v2768 = vpack.c.b16 %v2104, %v2102
      %v2769 = vpack.c.b16 %v2105, %v2103
      %v2770 = vpack.c.b16 %v2108, %v2106
      %v2771 = vpack.c.b16 %v2109, %v2107
      %v2772 = vpack.c.b16 %v2112, %v2110
      %v2773 = vpack.c.b16 %v2113, %v2111
      %v2774 = vpack.c.b16 %v2116, %v2114
      %v2775 = vpack.c.b16 %v2117, %v2115
      %v2776 = vpack.c.b16 %v2120, %v2118
      %v2777 = vpack.c.b16 %v2121, %v2119
      %v2778 = vpack.c.b16 %v2124, %v2122
      %v2779 = vpack.c.b16 %v2125, %v2123
      %v2780 = vpack.c.b16 %v2128, %v2126
      %v2781 = vpack.c.b16 %v2129, %v2127
      %v2782 = vpack.c.b16 %v2132, %v2130
      %v2783 = vpack.c.b16 %v2133, %v2131
      %v2784 = vpack.c.b16 %v2136, %v2134
      %v2785 = vpack.c.b16 %v2137, %v2135
      %v2786 = vpack.c.b16 %v2140, %v2138
      %v2787 = vpack.c.b16 %v2141, %v2139
      %v2788 = vpack.c.b16 %v2144, %v2142
      %v2789 = vpack.c.b16 %v2145, %v2143
      %v2790 = vpack.c.b16 %v2148, %v2146
      %v2791 = vpack.c.b16 %v2149, %v2147
      %v2792 = vpack.c.b16 %v2152, %v2150
      %v2793 = vpack.c.b16 %v2153, %v2151
      %v2794 = vpack.c.b16 %v2156, %v2154
      %v2795 = vpack.c.b16 %v2157, %v2155
      %v2796 = vpack.c.b16 %v2160, %v2158
      %v2797 = vpack.c.b16 %v2161, %v2159
      %v2798 = vpack.c.b16 %v2164, %v2162
      %v2799 = vpack.c.b16 %v2165, %v2163
      %v2800 = vpack.c.b16 %v2168, %v2166
      %v2801 = vpack.c.b16 %v2169, %v2167
      %v2802 = vpack.c.b16 %v2172, %v2170
      %v2803 = vpack.c.b16 %v2173, %v2171
      %v2804 = vpack.c.b16 %v2176, %v2174
      %v2805 = vpack.c.b16 %v2177, %v2175
      %v2806 = vpack.c.b16 %v2180, %v2178
      %v2807 = vpack.c.b16 %v2181, %v2179
      %v2808 = vpack.c.b16 %v2184, %v2182
      %v2809 = vpack.c.b16 %v2185, %v2183
      %v2810 = vpack.c.b16 %v2188, %v2186
      %v2811 = vpack.c.b16 %v2189, %v2187
      %v2812 = vpack.c.b16 %v2192, %v2190
      %v2813 = vpack.c.b16 %v2193, %v2191
      %v2814 = vpack.c.b16 %v2196, %v2194
      %v2815 = vpack.c.b16 %v2197, %v2195
      %v2816 = vpack.c.b16 %v2200, %v2198
      %v2817 = vpack.c.b16 %v2201, %v2199
      %v2818 = vpack.c.b16 %v2204, %v2202
      %v2819 = vpack.c.b16 %v2205, %v2203
      %v2820 = vpack.c.b16 %v2208, %v2206
      %v2821 = vpack.c.b16 %v2209, %v2207
      %v2822 = vpack.c.b16 %v2212, %v2210
      %v2823 = vpack.c.b16 %v2213, %v2211
      %v2824 = vpack.c.b16 %v2216, %v2214
      %v2825 = vpack.c.b16 %v2217, %v2215
      %v2826 = vpack.c.b16 %v2220, %v2218
      %v2827 = vpack.c.b16 %v2221, %v2219
      %v2828 = vpack.c.b16 %v2224, %v2222
      %v2829 = vpack.c.b16 %v2225, %v2223
      %v2830 = vpack.c.b16 %v2228, %v2226
      %v2831 = vpack.c.b16 %v2229, %v2227
      %v2832 = vpack.c.b16 %v2232, %v2230
      %v2833 = vpack.c.b16 %v2233, %v2231
      %v2834 = vpack.c.b16 %v2236, %v2234
      %v2835 = vpack.c.b16 %v2237, %v2235
      %v2836 = vpack.c.b16 %v2240, %v2238
      %v2837 = vpack.c.b16 %v2241, %v2239
      %v2838 = vpack.c.b16 %v2244, %v2242
      %v2839 = vpack.c.b16 %v2245, %v2243
      %v2840 = vpack.c.b16 %v2248, %v2246
      %v2841 = vpack.c.b16 %v2249, %v2247
      %v2842 = vpack.c.b16 %v2252, %v2250
      %v2843 = vpack.c.b16 %v2253, %v2251
      %v2844 = vpack.c.b16 %v2256, %v2254
      %v2845 = vpack.c.b16 %v2257, %v2255
      %v2846 = vpack.c.b16 %v2260, %v2258
      %v2847 = vpack.c.b16 %v2261, %v2259
      %v2848 = vpack.c.b16 %v2264, %v2262
      %v2849 = vpack.c.b16 %v2265, %v2263
      %v2850 = vpack.c.b16 %v2268, %v2266
      %v2851 = vpack.c.b16 %v2269, %v2267
      %v2852 = vpack.c.b16 %v2272, %v2270
      %v2853 = vpack.c.b16 %v2273, %v2271
      %v2854 = vpack.c.b16 %v2276, %v2274
      %v2855 = vpack.c.b16 %v2277, %v2275
      %v2856 = vpack.c.b16 %v2280, %v2278
      %v2857 = vpack.c.b16 %v2281, %v2279
      %v2858 = vpack.c.b16 %v2284, %v2282
      %v2859 = vpack.c.b16 %v2285, %v2283
      %v2860 = vpack.c.b16 %v2288, %v2286
      %v2861 = vpack.c.b16 %v2289, %v2287
      %v2862 = vpack.c.b16 %v2292, %v2290
      %v2863 = vpack.c.b16 %v2293, %v2291
      %v2864 = vpack.c.b16 %v2296, %v2294
      %v2865 = vpack.c.b16 %v2297, %v2295
      %v2866 = vpack.c.b16 %v2300, %v2298
      %v2867 = vpack.c.b16 %v2301, %v2299
      %v2868 = vpack.c.b16 %v2304, %v2302
      %v2869 = vpack.c.b16 %v2305, %v2303
      %v2870 = vpack.c.b16 %v2308, %v2306
      %v2871 = vpack.c.b16 %v2309, %v2307
      %v2872 = vpack.c.b16 %v2312, %v2310
      %v2873 = vpack.c.b16 %v2313, %v2311
      %v2874 = vpack.c.b16 %v2316, %v2314
      %v2875 = vpack.c.b16 %v2317, %v2315
      %v2876 = vpack.c.b16 %v2320, %v2318
      %v2877 = vpack.c.b16 %v2321, %v2319
      %v2878 = vpack.c.b16 %v2324, %v2322
      %v2879 = vpack.c.b16 %v2325, %v2323
      %v2880 = vpack.c.b16 %v2328, %v2326
      %v2881 = vpack.c.b16 %v2329, %v2327
      %v2882 = vpack.c.b16 %v2332, %v2330
      %v2883 = vpack.c.b16 %v2333, %v2331
      %v2884 = vpack.c.b16 %v2336, %v2334
      %v2885 = vpack.c.b16 %v2337, %v2335
      %v2886 = vpack.c.b16 %v2340, %v2338
      %v2887 = vpack.c.b16 %v2341, %v2339
      %v2888 = vpack.c.b16 %v2344, %v2342
      %v2889 = vpack.c.b16 %v2345, %v2343
      %v2890 = vpack.c.b16 %v2348, %v2346
      %v2891 = vpack.c.b16 %v2349, %v2347
      %v2892 = vpack.c.b16 %v2352, %v2350
      %v2893 = vpack.c.b16 %v2353, %v2351
      %v2894 = vpack.c.b16 %v2356, %v2354
      %v2895 = vpack.c.b16 %v2357, %v2355
      %v2896 = vpack.c.b16 %v2360, %v2358
      %v2897 = vpack.c.b16 %v2361, %v2359
      %v2898 = vpack.c.b16 %v2364, %v2362
      %v2899 = vpack.c.b16 %v2365, %v2363
      %v2900 = vpack.c.b16 %v2368, %v2366
      %v2901 = vpack.c.b16 %v2369, %v2367
      %v2902 = vpack.c.b16 %v2372, %v2370
      %v2903 = vpack.c.b16 %v2373, %v2371
      %v2904 = vpack.c.b16 %v2376, %v2374
      %v2905 = vpack.c.b16 %v2377, %v2375
      %v2906 = vpack.c.b16 %v2380, %v2378
      %v2907 = vpack.c.b16 %v2381, %v2379
      %v2908 = vpack.c.b16 %v2384, %v2382
      %v2909 = vpack.c.b16 %v2385, %v2383
      %v2910 = vpack.c.b16 %v2388, %v2386
      %v2911 = vpack.c.b16 %v2389, %v2387
      %v2912 = vpack.c.b16 %v2392, %v2390
      %v2913 = vpack.c.b16 %v2393, %v2391
      %v2914 = vpack.c.b16 %v2396, %v2394
      %v2915 = vpack.c.b16 %v2397, %v2395
      %v2916 = vpack.c.b16 %v2400, %v2398
      %v2917 = vpack.c.b16 %v2401, %v2399
      %v2918 = vpack.c.b16 %v2404, %v2402
      %v2919 = vpack.c.b16 %v2405, %v2403
      %v2920 = vpack.c.b16 %v2408, %v2406
      %v2921 = vpack.c.b16 %v2409, %v2407
      %v2922 = vpack.c.b16 %v2412, %v2410
      %v2923 = vpack.c.b16 %v2413, %v2411
      %v2924 = vpack.c.b16 %v2416, %v2414
      %v2925 = vpack.c.b16 %v2417, %v2415
      %v2926 = vpack.c.b16 %v2420, %v2418
      %v2927 = vpack.c.b16 %v2421, %v2419
      %v2928 = vpack.c.b16 %v2424, %v2422
      %v2929 = vpack.c.b16 %v2425, %v2423
      %v2930 = vpack.c.b16 %v2428, %v2426
      %v2931 = vpack.c.b16 %v2429, %v2427
      %v2932 = vpack.c.b16 %v2432, %v2430
      %v2933 = vpack.c.b16 %v2433, %v2431
      %vm3434 = vcmask 261120
      %v3436 = vsel %vm3434, %v902, 0
      %3438 = vmatpush.bf16.msra.mxu0 %v2448
      %3439 = vmatpush.bf16.msra.mxu0 %v2446
      %3440 = vmatpush.bf16.msra.mxu0 %v2444
      %3441 = vmatpush.bf16.msra.mxu0 %v2442
      %3442 = vmatpush.bf16.msra.mxu0 %v2440
      %3443 = vmatpush.bf16.msra.mxu0 %v2438
      %3444 = vmatpush.bf16.msra.mxu0 %v2436
      %3445 = vmatpush.bf16.msra.mxu0 %v2434
      %3446 = vmatmul.bf16.gmra.mxu0 %v871
      %v3447 = vpop.f32.mrf.mxu0
      %v3448 = vadd.f32 %v771, %v3447
      %v3449 = vpop.f32.mrf.mxu0
      %v3450 = vadd.f32 %v771, %v3449
      %3451 = vdwg.mxu0
      %3452 = vmatpush.bf16.msra.mxu0 %v2464
      %3453 = vmatpush.bf16.msra.mxu0 %v2462
      %3454 = vmatpush.bf16.msra.mxu0 %v2460
      %3455 = vmatpush.bf16.msra.mxu0 %v2458
      %3456 = vmatpush.bf16.msra.mxu0 %v2456
      %3457 = vmatpush.bf16.msra.mxu0 %v2454
      %3458 = vmatpush.bf16.msra.mxu0 %v2452
      %3459 = vmatpush.bf16.msra.mxu0 %v2450
      %3460 = vmatmul.bf16.gmra.mxu0 %v872
      %v3461 = vpop.f32.mrf.mxu0
      %v3462 = vadd.f32 %v3448, %v3461
      %v3463 = vpop.f32.mrf.mxu0
      %v3464 = vadd.f32 %v3450, %v3463
      %3465 = vdwg.mxu0
      %3466 = vmatpush.bf16.msra.mxu0 %v2480
      %3467 = vmatpush.bf16.msra.mxu0 %v2478
      %3468 = vmatpush.bf16.msra.mxu0 %v2476
      %3469 = vmatpush.bf16.msra.mxu0 %v2474
      %3470 = vmatpush.bf16.msra.mxu0 %v2472
      %3471 = vmatpush.bf16.msra.mxu0 %v2470
      %3472 = vmatpush.bf16.msra.mxu0 %v2468
      %3473 = vmatpush.bf16.msra.mxu0 %v2466
      %3474 = vmatmul.bf16.gmra.mxu0 %v873
      %v3475 = vpop.f32.mrf.mxu0
      %v3476 = vadd.f32 %v3462, %v3475
      %v3477 = vpop.f32.mrf.mxu0
      %v3478 = vadd.f32 %v3464, %v3477
      %3479 = vdwg.mxu0
      %3480 = vmatpush.bf16.msra.mxu0 %v2496
      %3481 = vmatpush.bf16.msra.mxu0 %v2494
      %3482 = vmatpush.bf16.msra.mxu0 %v2492
      %3483 = vmatpush.bf16.msra.mxu0 %v2490
      %3484 = vmatpush.bf16.msra.mxu0 %v2488
      %3485 = vmatpush.bf16.msra.mxu0 %v2486
      %3486 = vmatpush.bf16.msra.mxu0 %v2484
      %3487 = vmatpush.bf16.msra.mxu0 %v2482
      %3488 = vmatmul.bf16.gmra.mxu0 %v874
      %v3489 = vpop.f32.mrf.mxu0
      %v3490 = vadd.f32 %v3476, %v3489
      %v3491 = vpop.f32.mrf.mxu0
      %v3492 = vadd.f32 %v3478, %v3491
      %3493 = vdwg.mxu0
      %3494 = vmatpush.bf16.msra.mxu0 %v2512
      %3495 = vmatpush.bf16.msra.mxu0 %v2510
      %3496 = vmatpush.bf16.msra.mxu0 %v2508
      %3497 = vmatpush.bf16.msra.mxu0 %v2506
      %3498 = vmatpush.bf16.msra.mxu0 %v2504
      %3499 = vmatpush.bf16.msra.mxu0 %v2502
      %3500 = vmatpush.bf16.msra.mxu0 %v2500
      %3501 = vmatpush.bf16.msra.mxu0 %v2498
      %3502 = vmatmul.bf16.gmra.mxu0 %v875
      %v3503 = vpop.f32.mrf.mxu0
      %v3504 = vadd.f32 %v3490, %v3503
      %v3505 = vpop.f32.mrf.mxu0
      %v3506 = vadd.f32 %v3492, %v3505
      %3507 = vdwg.mxu0
      %3508 = vmatpush.bf16.msra.mxu0 %v2528
      %3509 = vmatpush.bf16.msra.mxu0 %v2526
      %3510 = vmatpush.bf16.msra.mxu0 %v2524
      %3511 = vmatpush.bf16.msra.mxu0 %v2522
      %3512 = vmatpush.bf16.msra.mxu0 %v2520
      %3513 = vmatpush.bf16.msra.mxu0 %v2518
      %3514 = vmatpush.bf16.msra.mxu0 %v2516
      %3515 = vmatpush.bf16.msra.mxu0 %v2514
      %3516 = vmatmul.bf16.gmra.mxu0 %v876
      %v3517 = vpop.f32.mrf.mxu0
      %v3518 = vadd.f32 %v3504, %v3517
      %v3519 = vpop.f32.mrf.mxu0
      %v3520 = vadd.f32 %v3506, %v3519
      %3521 = vdwg.mxu0
      %3522 = vmatpush.bf16.msra.mxu0 %v2544
      %3523 = vmatpush.bf16.msra.mxu0 %v2542
      %3524 = vmatpush.bf16.msra.mxu0 %v2540
      %3525 = vmatpush.bf16.msra.mxu0 %v2538
      %3526 = vmatpush.bf16.msra.mxu0 %v2536
      %3527 = vmatpush.bf16.msra.mxu0 %v2534
      %3528 = vmatpush.bf16.msra.mxu0 %v2532
      %3529 = vmatpush.bf16.msra.mxu0 %v2530
      %3530 = vmatmul.bf16.gmra.mxu0 %v877
      %v3531 = vpop.f32.mrf.mxu0
      %v3532 = vadd.f32 %v3518, %v3531
      %v3533 = vpop.f32.mrf.mxu0
      %v3534 = vadd.f32 %v3520, %v3533
      %3535 = vdwg.mxu0
      %3536 = vmatpush.bf16.msra.mxu0 %v2560
      %3537 = vmatpush.bf16.msra.mxu0 %v2558
      %3538 = vmatpush.bf16.msra.mxu0 %v2556
      %3539 = vmatpush.bf16.msra.mxu0 %v2554
      %3540 = vmatpush.bf16.msra.mxu0 %v2552
      %3541 = vmatpush.bf16.msra.mxu0 %v2550
      %3542 = vmatpush.bf16.msra.mxu0 %v2548
      %3543 = vmatpush.bf16.msra.mxu0 %v2546
      %3544 = vmatmul.bf16.gmra.mxu0 %v878
      %v3545 = vpop.f32.mrf.mxu0
      %v3546 = vadd.f32 %v3532, %v3545
      %v3547 = vpop.f32.mrf.mxu0
      %v3548 = vadd.f32 %v3534, %v3547
      %3549 = vdwg.mxu0
      %3550 = vmatpush.bf16.msra.mxu0 %v2576
      %3551 = vmatpush.bf16.msra.mxu0 %v2574
      %3552 = vmatpush.bf16.msra.mxu0 %v2572
      %3553 = vmatpush.bf16.msra.mxu0 %v2570
      %3554 = vmatpush.bf16.msra.mxu0 %v2568
      %3555 = vmatpush.bf16.msra.mxu0 %v2566
      %3556 = vmatpush.bf16.msra.mxu0 %v2564
      %3557 = vmatpush.bf16.msra.mxu0 %v2562
      %3558 = vmatmul.bf16.gmra.mxu0 %v879
      %v3559 = vpop.f32.mrf.mxu0
      %v3560 = vadd.f32 %v3546, %v3559
      %v3561 = vpop.f32.mrf.mxu0
      %v3562 = vadd.f32 %v3548, %v3561
      %3563 = vdwg.mxu0
      %3564 = vmatpush.bf16.msra.mxu0 %v2592
      %3565 = vmatpush.bf16.msra.mxu0 %v2590
      %3566 = vmatpush.bf16.msra.mxu0 %v2588
      %3567 = vmatpush.bf16.msra.mxu0 %v2586
      %3568 = vmatpush.bf16.msra.mxu0 %v2584
      %3569 = vmatpush.bf16.msra.mxu0 %v2582
      %3570 = vmatpush.bf16.msra.mxu0 %v2580
      %3571 = vmatpush.bf16.msra.mxu0 %v2578
      %3572 = vmatmul.bf16.gmra.mxu0 %v880
      %v3573 = vpop.f32.mrf.mxu0
      %v3574 = vadd.f32 %v3560, %v3573
      %v3575 = vpop.f32.mrf.mxu0
      %v3576 = vadd.f32 %v3562, %v3575
      %3577 = vdwg.mxu0
      %3578 = vmatpush.bf16.msra.mxu0 %v2608
      %3579 = vmatpush.bf16.msra.mxu0 %v2606
      %3580 = vmatpush.bf16.msra.mxu0 %v2604
      %3581 = vmatpush.bf16.msra.mxu0 %v2602
      %3582 = vmatpush.bf16.msra.mxu0 %v2600
      %3583 = vmatpush.bf16.msra.mxu0 %v2598
      %3584 = vmatpush.bf16.msra.mxu0 %v2596
      %3585 = vmatpush.bf16.msra.mxu0 %v2594
      %3586 = vmatmul.bf16.gmra.mxu0 %v881
      %v3587 = vpop.f32.mrf.mxu0
      %v3588 = vadd.f32 %v3574, %v3587
      %v3589 = vpop.f32.mrf.mxu0
      %v3590 = vadd.f32 %v3576, %v3589
      %3591 = vdwg.mxu0
      %3592 = vmatpush.bf16.msra.mxu0 %v2624
      %3593 = vmatpush.bf16.msra.mxu0 %v2622
      %3594 = vmatpush.bf16.msra.mxu0 %v2620
      %3595 = vmatpush.bf16.msra.mxu0 %v2618
      %3596 = vmatpush.bf16.msra.mxu0 %v2616
      %3597 = vmatpush.bf16.msra.mxu0 %v2614
      %3598 = vmatpush.bf16.msra.mxu0 %v2612
      %3599 = vmatpush.bf16.msra.mxu0 %v2610
      %3600 = vmatmul.bf16.gmra.mxu0 %v882
      %v3601 = vpop.f32.mrf.mxu0
      %v3602 = vadd.f32 %v3588, %v3601
      %v3603 = vpop.f32.mrf.mxu0
      %v3604 = vadd.f32 %v3590, %v3603
      %3605 = vdwg.mxu0
      %3606 = vmatpush.bf16.msra.mxu0 %v2640
      %3607 = vmatpush.bf16.msra.mxu0 %v2638
      %3608 = vmatpush.bf16.msra.mxu0 %v2636
      %3609 = vmatpush.bf16.msra.mxu0 %v2634
      %3610 = vmatpush.bf16.msra.mxu0 %v2632
      %3611 = vmatpush.bf16.msra.mxu0 %v2630
      %3612 = vmatpush.bf16.msra.mxu0 %v2628
      %3613 = vmatpush.bf16.msra.mxu0 %v2626
      %3614 = vmatmul.bf16.gmra.mxu0 %v883
      %v3615 = vpop.f32.mrf.mxu0
      %v3616 = vadd.f32 %v3602, %v3615
      %v3617 = vpop.f32.mrf.mxu0
      %v3618 = vadd.f32 %v3604, %v3617
      %3619 = vdwg.mxu0
      %3620 = vmatpush.bf16.msra.mxu0 %v2656
      %3621 = vmatpush.bf16.msra.mxu0 %v2654
      %3622 = vmatpush.bf16.msra.mxu0 %v2652
      %3623 = vmatpush.bf16.msra.mxu0 %v2650
      %3624 = vmatpush.bf16.msra.mxu0 %v2648
      %3625 = vmatpush.bf16.msra.mxu0 %v2646
      %3626 = vmatpush.bf16.msra.mxu0 %v2644
      %3627 = vmatpush.bf16.msra.mxu0 %v2642
      %3628 = vmatmul.bf16.gmra.mxu0 %v884
      %v3629 = vpop.f32.mrf.mxu0
      %v3630 = vadd.f32 %v3616, %v3629
      %v3631 = vpop.f32.mrf.mxu0
      %v3632 = vadd.f32 %v3618, %v3631
      %3633 = vdwg.mxu0
      %3634 = vmatpush.bf16.msra.mxu0 %v2672
      %3635 = vmatpush.bf16.msra.mxu0 %v2670
      %3636 = vmatpush.bf16.msra.mxu0 %v2668
      %3637 = vmatpush.bf16.msra.mxu0 %v2666
      %3638 = vmatpush.bf16.msra.mxu0 %v2664
      %3639 = vmatpush.bf16.msra.mxu0 %v2662
      %3640 = vmatpush.bf16.msra.mxu0 %v2660
      %3641 = vmatpush.bf16.msra.mxu0 %v2658
      %3642 = vmatmul.bf16.gmra.mxu0 %v885
      %v3643 = vpop.f32.mrf.mxu0
      %v3644 = vadd.f32 %v3630, %v3643
      %v3645 = vpop.f32.mrf.mxu0
      %v3646 = vadd.f32 %v3632, %v3645
      %3647 = vdwg.mxu0
      %3648 = vmatpush.bf16.msra.mxu0 %v2688
      %3649 = vmatpush.bf16.msra.mxu0 %v2686
      %3650 = vmatpush.bf16.msra.mxu0 %v2684
      %3651 = vmatpush.bf16.msra.mxu0 %v2682
      %3652 = vmatpush.bf16.msra.mxu0 %v2680
      %3653 = vmatpush.bf16.msra.mxu0 %v2678
      %3654 = vmatpush.bf16.msra.mxu0 %v2676
      %3655 = vmatpush.bf16.msra.mxu0 %v2674
      %3656 = vmatmul.bf16.gmra.mxu0 %v886
      %v3657 = vpop.f32.mrf.mxu0
      %v3658 = vadd.f32 %v3644, %v3657
      %v3659 = vpop.f32.mrf.mxu0
      %v3660 = vadd.f32 %v3646, %v3659
      %3661 = vdwg.mxu0
      %3662 = vmatpush.bf16.msra.mxu0 %v2704
      %3663 = vmatpush.bf16.msra.mxu0 %v2702
      %3664 = vmatpush.bf16.msra.mxu0 %v2700
      %3665 = vmatpush.bf16.msra.mxu0 %v2698
      %3666 = vmatpush.bf16.msra.mxu0 %v2696
      %3667 = vmatpush.bf16.msra.mxu0 %v2694
      %3668 = vmatpush.bf16.msra.mxu0 %v2692
      %3669 = vmatpush.bf16.msra.mxu0 %v2690
      %3670 = vmatmul.bf16.gmra.mxu0 %v887
      %v3671 = vpop.f32.mrf.mxu0
      %v3672 = vadd.f32 %v3658, %v3671
      %v3673 = vpop.f32.mrf.mxu0
      %v3674 = vadd.f32 %v3660, %v3673
      %3675 = vdwg.mxu0
      %3676 = vmatpush.bf16.msra.mxu0 %v2720
      %3677 = vmatpush.bf16.msra.mxu0 %v2718
      %3678 = vmatpush.bf16.msra.mxu0 %v2716
      %3679 = vmatpush.bf16.msra.mxu0 %v2714
      %3680 = vmatpush.bf16.msra.mxu0 %v2712
      %3681 = vmatpush.bf16.msra.mxu0 %v2710
      %3682 = vmatpush.bf16.msra.mxu0 %v2708
      %3683 = vmatpush.bf16.msra.mxu0 %v2706
      %3684 = vmatmul.bf16.gmra.mxu0 %v888
      %v3685 = vpop.f32.mrf.mxu0
      %v3686 = vadd.f32 %v3672, %v3685
      %v3687 = vpop.f32.mrf.mxu0
      %v3688 = vadd.f32 %v3674, %v3687
      %3689 = vdwg.mxu0
      %3690 = vmatpush.bf16.msra.mxu0 %v2736
      %3691 = vmatpush.bf16.msra.mxu0 %v2734
      %3692 = vmatpush.bf16.msra.mxu0 %v2732
      %3693 = vmatpush.bf16.msra.mxu0 %v2730
      %3694 = vmatpush.bf16.msra.mxu0 %v2728
      %3695 = vmatpush.bf16.msra.mxu0 %v2726
      %3696 = vmatpush.bf16.msra.mxu0 %v2724
      %3697 = vmatpush.bf16.msra.mxu0 %v2722
      %3698 = vmatmul.bf16.gmra.mxu0 %v889
      %v3699 = vpop.f32.mrf.mxu0
      %v3700 = vadd.f32 %v3686, %v3699
      %v3701 = vpop.f32.mrf.mxu0
      %v3702 = vadd.f32 %v3688, %v3701
      %3703 = vdwg.mxu0
      %3704 = vmatpush.bf16.msra.mxu0 %v2752
      %3705 = vmatpush.bf16.msra.mxu0 %v2750
      %3706 = vmatpush.bf16.msra.mxu0 %v2748
      %3707 = vmatpush.bf16.msra.mxu0 %v2746
      %3708 = vmatpush.bf16.msra.mxu0 %v2744
      %3709 = vmatpush.bf16.msra.mxu0 %v2742
      %3710 = vmatpush.bf16.msra.mxu0 %v2740
      %3711 = vmatpush.bf16.msra.mxu0 %v2738
      %3712 = vmatmul.bf16.gmra.mxu0 %v890
      %v3713 = vpop.f32.mrf.mxu0
      %v3714 = vadd.f32 %v3700, %v3713
      %v3715 = vpop.f32.mrf.mxu0
      %v3716 = vadd.f32 %v3702, %v3715
      %3717 = vdwg.mxu0
      %3718 = vmatpush.bf16.msra.mxu0 %v2768
      %3719 = vmatpush.bf16.msra.mxu0 %v2766
      %3720 = vmatpush.bf16.msra.mxu0 %v2764
      %3721 = vmatpush.bf16.msra.mxu0 %v2762
      %3722 = vmatpush.bf16.msra.mxu0 %v2760
      %3723 = vmatpush.bf16.msra.mxu0 %v2758
      %3724 = vmatpush.bf16.msra.mxu0 %v2756
      %3725 = vmatpush.bf16.msra.mxu0 %v2754
      %3726 = vmatmul.bf16.gmra.mxu0 %v891
      %v3727 = vpop.f32.mrf.mxu0
      %v3728 = vadd.f32 %v3714, %v3727
      %v3729 = vpop.f32.mrf.mxu0
      %v3730 = vadd.f32 %v3716, %v3729
      %3731 = vdwg.mxu0
      %3732 = vmatpush.bf16.msra.mxu0 %v2784
      %3733 = vmatpush.bf16.msra.mxu0 %v2782
      %3734 = vmatpush.bf16.msra.mxu0 %v2780
      %3735 = vmatpush.bf16.msra.mxu0 %v2778
      %3736 = vmatpush.bf16.msra.mxu0 %v2776
      %3737 = vmatpush.bf16.msra.mxu0 %v2774
      %3738 = vmatpush.bf16.msra.mxu0 %v2772
      %3739 = vmatpush.bf16.msra.mxu0 %v2770
      %3740 = vmatmul.bf16.gmra.mxu0 %v892
      %v3741 = vpop.f32.mrf.mxu0
      %v3742 = vadd.f32 %v3728, %v3741
      %v3743 = vpop.f32.mrf.mxu0
      %v3744 = vadd.f32 %v3730, %v3743
      %3745 = vdwg.mxu0
      %3746 = vmatpush.bf16.msra.mxu0 %v2800
      %3747 = vmatpush.bf16.msra.mxu0 %v2798
      %3748 = vmatpush.bf16.msra.mxu0 %v2796
      %3749 = vmatpush.bf16.msra.mxu0 %v2794
      %3750 = vmatpush.bf16.msra.mxu0 %v2792
      %3751 = vmatpush.bf16.msra.mxu0 %v2790
      %3752 = vmatpush.bf16.msra.mxu0 %v2788
      %3753 = vmatpush.bf16.msra.mxu0 %v2786
      %3754 = vmatmul.bf16.gmra.mxu0 %v893
      %v3755 = vpop.f32.mrf.mxu0
      %v3756 = vadd.f32 %v3742, %v3755
      %v3757 = vpop.f32.mrf.mxu0
      %v3758 = vadd.f32 %v3744, %v3757
      %3759 = vdwg.mxu0
      %3760 = vmatpush.bf16.msra.mxu0 %v2816
      %3761 = vmatpush.bf16.msra.mxu0 %v2814
      %3762 = vmatpush.bf16.msra.mxu0 %v2812
      %3763 = vmatpush.bf16.msra.mxu0 %v2810
      %3764 = vmatpush.bf16.msra.mxu0 %v2808
      %3765 = vmatpush.bf16.msra.mxu0 %v2806
      %3766 = vmatpush.bf16.msra.mxu0 %v2804
      %3767 = vmatpush.bf16.msra.mxu0 %v2802
      %3768 = vmatmul.bf16.gmra.mxu0 %v894
      %v3769 = vpop.f32.mrf.mxu0
      %v3770 = vadd.f32 %v3756, %v3769
      %v3771 = vpop.f32.mrf.mxu0
      %v3772 = vadd.f32 %v3758, %v3771
      %3773 = vdwg.mxu0
      %3774 = vmatpush.bf16.msra.mxu0 %v2832
      %3775 = vmatpush.bf16.msra.mxu0 %v2830
      %3776 = vmatpush.bf16.msra.mxu0 %v2828
      %3777 = vmatpush.bf16.msra.mxu0 %v2826
      %3778 = vmatpush.bf16.msra.mxu0 %v2824
      %3779 = vmatpush.bf16.msra.mxu0 %v2822
      %3780 = vmatpush.bf16.msra.mxu0 %v2820
      %3781 = vmatpush.bf16.msra.mxu0 %v2818
      %3782 = vmatmul.bf16.gmra.mxu0 %v895
      %v3783 = vpop.f32.mrf.mxu0
      %v3784 = vadd.f32 %v3770, %v3783
      %v3785 = vpop.f32.mrf.mxu0
      %v3786 = vadd.f32 %v3772, %v3785
      %3787 = vdwg.mxu0
      %3788 = vmatpush.bf16.msra.mxu0 %v2848
      %3789 = vmatpush.bf16.msra.mxu0 %v2846
      %3790 = vmatpush.bf16.msra.mxu0 %v2844
      %3791 = vmatpush.bf16.msra.mxu0 %v2842
      %3792 = vmatpush.bf16.msra.mxu0 %v2840
      %3793 = vmatpush.bf16.msra.mxu0 %v2838
      %3794 = vmatpush.bf16.msra.mxu0 %v2836
      %3795 = vmatpush.bf16.msra.mxu0 %v2834
      %3796 = vmatmul.bf16.gmra.mxu0 %v896
      %v3797 = vpop.f32.mrf.mxu0
      %v3798 = vadd.f32 %v3784, %v3797
      %v3799 = vpop.f32.mrf.mxu0
      %v3800 = vadd.f32 %v3786, %v3799
      %3801 = vdwg.mxu0
      %3802 = vmatpush.bf16.msra.mxu0 %v2864
      %3803 = vmatpush.bf16.msra.mxu0 %v2862
      %3804 = vmatpush.bf16.msra.mxu0 %v2860
      %3805 = vmatpush.bf16.msra.mxu0 %v2858
      %3806 = vmatpush.bf16.msra.mxu0 %v2856
      %3807 = vmatpush.bf16.msra.mxu0 %v2854
      %3808 = vmatpush.bf16.msra.mxu0 %v2852
      %3809 = vmatpush.bf16.msra.mxu0 %v2850
      %3810 = vmatmul.bf16.gmra.mxu0 %v897
      %v3811 = vpop.f32.mrf.mxu0
      %v3812 = vadd.f32 %v3798, %v3811
      %v3813 = vpop.f32.mrf.mxu0
      %v3814 = vadd.f32 %v3800, %v3813
      %3815 = vdwg.mxu0
      %3816 = vmatpush.bf16.msra.mxu0 %v2880
      %3817 = vmatpush.bf16.msra.mxu0 %v2878
      %3818 = vmatpush.bf16.msra.mxu0 %v2876
      %3819 = vmatpush.bf16.msra.mxu0 %v2874
      %3820 = vmatpush.bf16.msra.mxu0 %v2872
      %3821 = vmatpush.bf16.msra.mxu0 %v2870
      %3822 = vmatpush.bf16.msra.mxu0 %v2868
      %3823 = vmatpush.bf16.msra.mxu0 %v2866
      %3824 = vmatmul.bf16.gmra.mxu0 %v898
      %v3825 = vpop.f32.mrf.mxu0
      %v3826 = vadd.f32 %v3812, %v3825
      %v3827 = vpop.f32.mrf.mxu0
      %v3828 = vadd.f32 %v3814, %v3827
      %3829 = vdwg.mxu0
      %3830 = vmatpush.bf16.msra.mxu0 %v2896
      %3831 = vmatpush.bf16.msra.mxu0 %v2894
      %3832 = vmatpush.bf16.msra.mxu0 %v2892
      %3833 = vmatpush.bf16.msra.mxu0 %v2890
      %3834 = vmatpush.bf16.msra.mxu0 %v2888
      %3835 = vmatpush.bf16.msra.mxu0 %v2886
      %3836 = vmatpush.bf16.msra.mxu0 %v2884
      %3837 = vmatpush.bf16.msra.mxu0 %v2882
      %3838 = vmatmul.bf16.gmra.mxu0 %v899
      %v3839 = vpop.f32.mrf.mxu0
      %v3840 = vadd.f32 %v3826, %v3839
      %v3841 = vpop.f32.mrf.mxu0
      %v3842 = vadd.f32 %v3828, %v3841
      %3843 = vdwg.mxu0
      %3844 = vmatpush.bf16.msra.mxu0 %v2912
      %3845 = vmatpush.bf16.msra.mxu0 %v2910
      %3846 = vmatpush.bf16.msra.mxu0 %v2908
      %3847 = vmatpush.bf16.msra.mxu0 %v2906
      %3848 = vmatpush.bf16.msra.mxu0 %v2904
      %3849 = vmatpush.bf16.msra.mxu0 %v2902
      %3850 = vmatpush.bf16.msra.mxu0 %v2900
      %3851 = vmatpush.bf16.msra.mxu0 %v2898
      %3852 = vmatmul.bf16.gmra.mxu0 %v900
      %v3853 = vpop.f32.mrf.mxu0
      %v3854 = vadd.f32 %v3840, %v3853
      %v3855 = vpop.f32.mrf.mxu0
      %v3856 = vadd.f32 %v3842, %v3855
      %3857 = vdwg.mxu0
      %3858 = vmatpush.bf16.msra.mxu0 %v2928
      %3859 = vmatpush.bf16.msra.mxu0 %v2926
      %3860 = vmatpush.bf16.msra.mxu0 %v2924
      %3861 = vmatpush.bf16.msra.mxu0 %v2922
      %3862 = vmatpush.bf16.msra.mxu0 %v2920
      %3863 = vmatpush.bf16.msra.mxu0 %v2918
      %3864 = vmatpush.bf16.msra.mxu0 %v2916
      %3865 = vmatpush.bf16.msra.mxu0 %v2914
      %3866 = vmatmul.bf16.gmra.mxu0 %v901
      %v3867 = vpop.f32.mrf.mxu0
      %v3868 = vadd.f32 %v3854, %v3867
      %v3869 = vpop.f32.mrf.mxu0
      %v3870 = vadd.f32 %v3856, %v3869
      %3871 = vdwg.mxu0
      %3872 = vmatpush.bf16.msra.mxu0 0
      %3873 = vmatpush.bf16.msra.mxu0 0
      %3874 = vmatpush.bf16.msra.mxu0 0
      %3875 = vmatpush.bf16.msra.mxu0 0
      %3876 = vmatpush.bf16.msra.mxu0 0
      %3877 = vmatpush.bf16.msra.mxu0 0
      %3878 = vmatpush.bf16.msra.mxu0 %v2932
      %3879 = vmatpush.bf16.msra.mxu0 %v2930
      %3880 = vmatmul.bf16.gmra.mxu0 %v3436
      %v3881 = vpop.f32.mrf.mxu0
      %v3882 = vadd.f32 %v3868, %v3881
      %v3883 = vpop.f32.mrf.mxu0
      %v3884 = vadd.f32 %v3870, %v3883
      %3885 = vdwg.mxu0
      %3886 = vmatpush.bf16.msra.mxu0 %v2449
      %3887 = vmatpush.bf16.msra.mxu0 %v2447
      %3888 = vmatpush.bf16.msra.mxu0 %v2445
      %3889 = vmatpush.bf16.msra.mxu0 %v2443
      %3890 = vmatpush.bf16.msra.mxu0 %v2441
      %3891 = vmatpush.bf16.msra.mxu0 %v2439
      %3892 = vmatpush.bf16.msra.mxu0 %v2437
      %3893 = vmatpush.bf16.msra.mxu0 %v2435
      %3894 = vmatmul.bf16.gmra.mxu0 %v871
      %v3895 = vpop.f32.mrf.mxu0
      %v3896 = vadd.f32 %v772, %v3895
      %v3897 = vpop.f32.mrf.mxu0
      %v3898 = vadd.f32 %v772, %v3897
      %3899 = vdwg.mxu0
      %3900 = vmatpush.bf16.msra.mxu0 %v2465
      %3901 = vmatpush.bf16.msra.mxu0 %v2463
      %3902 = vmatpush.bf16.msra.mxu0 %v2461
      %3903 = vmatpush.bf16.msra.mxu0 %v2459
      %3904 = vmatpush.bf16.msra.mxu0 %v2457
      %3905 = vmatpush.bf16.msra.mxu0 %v2455
      %3906 = vmatpush.bf16.msra.mxu0 %v2453
      %3907 = vmatpush.bf16.msra.mxu0 %v2451
      %3908 = vmatmul.bf16.gmra.mxu0 %v872
      %v3909 = vpop.f32.mrf.mxu0
      %v3910 = vadd.f32 %v3896, %v3909
      %v3911 = vpop.f32.mrf.mxu0
      %v3912 = vadd.f32 %v3898, %v3911
      %3913 = vdwg.mxu0
      %3914 = vmatpush.bf16.msra.mxu0 %v2481
      %3915 = vmatpush.bf16.msra.mxu0 %v2479
      %3916 = vmatpush.bf16.msra.mxu0 %v2477
      %3917 = vmatpush.bf16.msra.mxu0 %v2475
      %3918 = vmatpush.bf16.msra.mxu0 %v2473
      %3919 = vmatpush.bf16.msra.mxu0 %v2471
      %3920 = vmatpush.bf16.msra.mxu0 %v2469
      %3921 = vmatpush.bf16.msra.mxu0 %v2467
      %3922 = vmatmul.bf16.gmra.mxu0 %v873
      %v3923 = vpop.f32.mrf.mxu0
      %v3924 = vadd.f32 %v3910, %v3923
      %v3925 = vpop.f32.mrf.mxu0
      %v3926 = vadd.f32 %v3912, %v3925
      %3927 = vdwg.mxu0
      %3928 = vmatpush.bf16.msra.mxu0 %v2497
      %3929 = vmatpush.bf16.msra.mxu0 %v2495
      %3930 = vmatpush.bf16.msra.mxu0 %v2493
      %3931 = vmatpush.bf16.msra.mxu0 %v2491
      %3932 = vmatpush.bf16.msra.mxu0 %v2489
      %3933 = vmatpush.bf16.msra.mxu0 %v2487
      %3934 = vmatpush.bf16.msra.mxu0 %v2485
      %3935 = vmatpush.bf16.msra.mxu0 %v2483
      %3936 = vmatmul.bf16.gmra.mxu0 %v874
      %v3937 = vpop.f32.mrf.mxu0
      %v3938 = vadd.f32 %v3924, %v3937
      %v3939 = vpop.f32.mrf.mxu0
      %v3940 = vadd.f32 %v3926, %v3939
      %3941 = vdwg.mxu0
      %3942 = vmatpush.bf16.msra.mxu0 %v2513
      %3943 = vmatpush.bf16.msra.mxu0 %v2511
      %3944 = vmatpush.bf16.msra.mxu0 %v2509
      %3945 = vmatpush.bf16.msra.mxu0 %v2507
      %3946 = vmatpush.bf16.msra.mxu0 %v2505
      %3947 = vmatpush.bf16.msra.mxu0 %v2503
      %3948 = vmatpush.bf16.msra.mxu0 %v2501
      %3949 = vmatpush.bf16.msra.mxu0 %v2499
      %3950 = vmatmul.bf16.gmra.mxu0 %v875
      %v3951 = vpop.f32.mrf.mxu0
      %v3952 = vadd.f32 %v3938, %v3951
      %v3953 = vpop.f32.mrf.mxu0
      %v3954 = vadd.f32 %v3940, %v3953
      %3955 = vdwg.mxu0
      %3956 = vmatpush.bf16.msra.mxu0 %v2529
      %3957 = vmatpush.bf16.msra.mxu0 %v2527
      %3958 = vmatpush.bf16.msra.mxu0 %v2525
      %3959 = vmatpush.bf16.msra.mxu0 %v2523
      %3960 = vmatpush.bf16.msra.mxu0 %v2521
      %3961 = vmatpush.bf16.msra.mxu0 %v2519
      %3962 = vmatpush.bf16.msra.mxu0 %v2517
      %3963 = vmatpush.bf16.msra.mxu0 %v2515
      %3964 = vmatmul.bf16.gmra.mxu0 %v876
      %v3965 = vpop.f32.mrf.mxu0
      %v3966 = vadd.f32 %v3952, %v3965
      %v3967 = vpop.f32.mrf.mxu0
      %v3968 = vadd.f32 %v3954, %v3967
      %3969 = vdwg.mxu0
      %3970 = vmatpush.bf16.msra.mxu0 %v2545
      %3971 = vmatpush.bf16.msra.mxu0 %v2543
      %3972 = vmatpush.bf16.msra.mxu0 %v2541
      %3973 = vmatpush.bf16.msra.mxu0 %v2539
      %3974 = vmatpush.bf16.msra.mxu0 %v2537
      %3975 = vmatpush.bf16.msra.mxu0 %v2535
      %3976 = vmatpush.bf16.msra.mxu0 %v2533
      %3977 = vmatpush.bf16.msra.mxu0 %v2531
      %3978 = vmatmul.bf16.gmra.mxu0 %v877
      %v3979 = vpop.f32.mrf.mxu0
      %v3980 = vadd.f32 %v3966, %v3979
      %v3981 = vpop.f32.mrf.mxu0
      %v3982 = vadd.f32 %v3968, %v3981
      %3983 = vdwg.mxu0
      %3984 = vmatpush.bf16.msra.mxu0 %v2561
      %3985 = vmatpush.bf16.msra.mxu0 %v2559
      %3986 = vmatpush.bf16.msra.mxu0 %v2557
      %3987 = vmatpush.bf16.msra.mxu0 %v2555
      %3988 = vmatpush.bf16.msra.mxu0 %v2553
      %3989 = vmatpush.bf16.msra.mxu0 %v2551
      %3990 = vmatpush.bf16.msra.mxu0 %v2549
      %3991 = vmatpush.bf16.msra.mxu0 %v2547
      %3992 = vmatmul.bf16.gmra.mxu0 %v878
      %v3993 = vpop.f32.mrf.mxu0
      %v3994 = vadd.f32 %v3980, %v3993
      %v3995 = vpop.f32.mrf.mxu0
      %v3996 = vadd.f32 %v3982, %v3995
      %3997 = vdwg.mxu0
      %3998 = vmatpush.bf16.msra.mxu0 %v2577
      %3999 = vmatpush.bf16.msra.mxu0 %v2575
      %4000 = vmatpush.bf16.msra.mxu0 %v2573
      %4001 = vmatpush.bf16.msra.mxu0 %v2571
      %4002 = vmatpush.bf16.msra.mxu0 %v2569
      %4003 = vmatpush.bf16.msra.mxu0 %v2567
      %4004 = vmatpush.bf16.msra.mxu0 %v2565
      %4005 = vmatpush.bf16.msra.mxu0 %v2563
      %4006 = vmatmul.bf16.gmra.mxu0 %v879
      %v4007 = vpop.f32.mrf.mxu0
      %v4008 = vadd.f32 %v3994, %v4007
      %v4009 = vpop.f32.mrf.mxu0
      %v4010 = vadd.f32 %v3996, %v4009
      %4011 = vdwg.mxu0
      %4012 = vmatpush.bf16.msra.mxu0 %v2593
      %4013 = vmatpush.bf16.msra.mxu0 %v2591
      %4014 = vmatpush.bf16.msra.mxu0 %v2589
      %4015 = vmatpush.bf16.msra.mxu0 %v2587
      %4016 = vmatpush.bf16.msra.mxu0 %v2585
      %4017 = vmatpush.bf16.msra.mxu0 %v2583
      %4018 = vmatpush.bf16.msra.mxu0 %v2581
      %4019 = vmatpush.bf16.msra.mxu0 %v2579
      %4020 = vmatmul.bf16.gmra.mxu0 %v880
      %v4021 = vpop.f32.mrf.mxu0
      %v4022 = vadd.f32 %v4008, %v4021
      %v4023 = vpop.f32.mrf.mxu0
      %v4024 = vadd.f32 %v4010, %v4023
      %4025 = vdwg.mxu0
      %4026 = vmatpush.bf16.msra.mxu0 %v2609
      %4027 = vmatpush.bf16.msra.mxu0 %v2607
      %4028 = vmatpush.bf16.msra.mxu0 %v2605
      %4029 = vmatpush.bf16.msra.mxu0 %v2603
      %4030 = vmatpush.bf16.msra.mxu0 %v2601
      %4031 = vmatpush.bf16.msra.mxu0 %v2599
      %4032 = vmatpush.bf16.msra.mxu0 %v2597
      %4033 = vmatpush.bf16.msra.mxu0 %v2595
      %4034 = vmatmul.bf16.gmra.mxu0 %v881
      %v4035 = vpop.f32.mrf.mxu0
      %v4036 = vadd.f32 %v4022, %v4035
      %v4037 = vpop.f32.mrf.mxu0
      %v4038 = vadd.f32 %v4024, %v4037
      %4039 = vdwg.mxu0
      %4040 = vmatpush.bf16.msra.mxu0 %v2625
      %4041 = vmatpush.bf16.msra.mxu0 %v2623
      %4042 = vmatpush.bf16.msra.mxu0 %v2621
      %4043 = vmatpush.bf16.msra.mxu0 %v2619
      %4044 = vmatpush.bf16.msra.mxu0 %v2617
      %4045 = vmatpush.bf16.msra.mxu0 %v2615
      %4046 = vmatpush.bf16.msra.mxu0 %v2613
      %4047 = vmatpush.bf16.msra.mxu0 %v2611
      %4048 = vmatmul.bf16.gmra.mxu0 %v882
      %v4049 = vpop.f32.mrf.mxu0
      %v4050 = vadd.f32 %v4036, %v4049
      %v4051 = vpop.f32.mrf.mxu0
      %v4052 = vadd.f32 %v4038, %v4051
      %4053 = vdwg.mxu0
      %4054 = vmatpush.bf16.msra.mxu0 %v2641
      %4055 = vmatpush.bf16.msra.mxu0 %v2639
      %4056 = vmatpush.bf16.msra.mxu0 %v2637
      %4057 = vmatpush.bf16.msra.mxu0 %v2635
      %4058 = vmatpush.bf16.msra.mxu0 %v2633
      %4059 = vmatpush.bf16.msra.mxu0 %v2631
      %4060 = vmatpush.bf16.msra.mxu0 %v2629
      %4061 = vmatpush.bf16.msra.mxu0 %v2627
      %4062 = vmatmul.bf16.gmra.mxu0 %v883
      %v4063 = vpop.f32.mrf.mxu0
      %v4064 = vadd.f32 %v4050, %v4063
      %v4065 = vpop.f32.mrf.mxu0
      %v4066 = vadd.f32 %v4052, %v4065
      %4067 = vdwg.mxu0
      %4068 = vmatpush.bf16.msra.mxu0 %v2657
      %4069 = vmatpush.bf16.msra.mxu0 %v2655
      %4070 = vmatpush.bf16.msra.mxu0 %v2653
      %4071 = vmatpush.bf16.msra.mxu0 %v2651
      %4072 = vmatpush.bf16.msra.mxu0 %v2649
      %4073 = vmatpush.bf16.msra.mxu0 %v2647
      %4074 = vmatpush.bf16.msra.mxu0 %v2645
      %4075 = vmatpush.bf16.msra.mxu0 %v2643
      %4076 = vmatmul.bf16.gmra.mxu0 %v884
      %v4077 = vpop.f32.mrf.mxu0
      %v4078 = vadd.f32 %v4064, %v4077
      %v4079 = vpop.f32.mrf.mxu0
      %v4080 = vadd.f32 %v4066, %v4079
      %4081 = vdwg.mxu0
      %4082 = vmatpush.bf16.msra.mxu0 %v2673
      %4083 = vmatpush.bf16.msra.mxu0 %v2671
      %4084 = vmatpush.bf16.msra.mxu0 %v2669
      %4085 = vmatpush.bf16.msra.mxu0 %v2667
      %4086 = vmatpush.bf16.msra.mxu0 %v2665
      %4087 = vmatpush.bf16.msra.mxu0 %v2663
      %4088 = vmatpush.bf16.msra.mxu0 %v2661
      %4089 = vmatpush.bf16.msra.mxu0 %v2659
      %4090 = vmatmul.bf16.gmra.mxu0 %v885
      %v4091 = vpop.f32.mrf.mxu0
      %v4092 = vadd.f32 %v4078, %v4091
      %v4093 = vpop.f32.mrf.mxu0
      %v4094 = vadd.f32 %v4080, %v4093
      %4095 = vdwg.mxu0
      %4096 = vmatpush.bf16.msra.mxu0 %v2689
      %4097 = vmatpush.bf16.msra.mxu0 %v2687
      %4098 = vmatpush.bf16.msra.mxu0 %v2685
      %4099 = vmatpush.bf16.msra.mxu0 %v2683
      %4100 = vmatpush.bf16.msra.mxu0 %v2681
      %4101 = vmatpush.bf16.msra.mxu0 %v2679
      %4102 = vmatpush.bf16.msra.mxu0 %v2677
      %4103 = vmatpush.bf16.msra.mxu0 %v2675
      %4104 = vmatmul.bf16.gmra.mxu0 %v886
      %v4105 = vpop.f32.mrf.mxu0
      %v4106 = vadd.f32 %v4092, %v4105
      %v4107 = vpop.f32.mrf.mxu0
      %v4108 = vadd.f32 %v4094, %v4107
      %4109 = vdwg.mxu0
      %4110 = vmatpush.bf16.msra.mxu0 %v2705
      %4111 = vmatpush.bf16.msra.mxu0 %v2703
      %4112 = vmatpush.bf16.msra.mxu0 %v2701
      %4113 = vmatpush.bf16.msra.mxu0 %v2699
      %4114 = vmatpush.bf16.msra.mxu0 %v2697
      %4115 = vmatpush.bf16.msra.mxu0 %v2695
      %4116 = vmatpush.bf16.msra.mxu0 %v2693
      %4117 = vmatpush.bf16.msra.mxu0 %v2691
      %4118 = vmatmul.bf16.gmra.mxu0 %v887
      %v4119 = vpop.f32.mrf.mxu0
      %v4120 = vadd.f32 %v4106, %v4119
      %v4121 = vpop.f32.mrf.mxu0
      %v4122 = vadd.f32 %v4108, %v4121
      %4123 = vdwg.mxu0
      %4124 = vmatpush.bf16.msra.mxu0 %v2721
      %4125 = vmatpush.bf16.msra.mxu0 %v2719
      %4126 = vmatpush.bf16.msra.mxu0 %v2717
      %4127 = vmatpush.bf16.msra.mxu0 %v2715
      %4128 = vmatpush.bf16.msra.mxu0 %v2713
      %4129 = vmatpush.bf16.msra.mxu0 %v2711
      %4130 = vmatpush.bf16.msra.mxu0 %v2709
      %4131 = vmatpush.bf16.msra.mxu0 %v2707
      %4132 = vmatmul.bf16.gmra.mxu0 %v888
      %v4133 = vpop.f32.mrf.mxu0
      %v4134 = vadd.f32 %v4120, %v4133
      %v4135 = vpop.f32.mrf.mxu0
      %v4136 = vadd.f32 %v4122, %v4135
      %4137 = vdwg.mxu0
      %4138 = vmatpush.bf16.msra.mxu0 %v2737
      %4139 = vmatpush.bf16.msra.mxu0 %v2735
      %4140 = vmatpush.bf16.msra.mxu0 %v2733
      %4141 = vmatpush.bf16.msra.mxu0 %v2731
      %4142 = vmatpush.bf16.msra.mxu0 %v2729
      %4143 = vmatpush.bf16.msra.mxu0 %v2727
      %4144 = vmatpush.bf16.msra.mxu0 %v2725
      %4145 = vmatpush.bf16.msra.mxu0 %v2723
      %4146 = vmatmul.bf16.gmra.mxu0 %v889
      %v4147 = vpop.f32.mrf.mxu0
      %v4148 = vadd.f32 %v4134, %v4147
      %v4149 = vpop.f32.mrf.mxu0
      %v4150 = vadd.f32 %v4136, %v4149
      %4151 = vdwg.mxu0
      %4152 = vmatpush.bf16.msra.mxu0 %v2753
      %4153 = vmatpush.bf16.msra.mxu0 %v2751
      %4154 = vmatpush.bf16.msra.mxu0 %v2749
      %4155 = vmatpush.bf16.msra.mxu0 %v2747
      %4156 = vmatpush.bf16.msra.mxu0 %v2745
      %4157 = vmatpush.bf16.msra.mxu0 %v2743
      %4158 = vmatpush.bf16.msra.mxu0 %v2741
      %4159 = vmatpush.bf16.msra.mxu0 %v2739
      %4160 = vmatmul.bf16.gmra.mxu0 %v890
      %v4161 = vpop.f32.mrf.mxu0
      %v4162 = vadd.f32 %v4148, %v4161
      %v4163 = vpop.f32.mrf.mxu0
      %v4164 = vadd.f32 %v4150, %v4163
      %4165 = vdwg.mxu0
      %4166 = vmatpush.bf16.msra.mxu0 %v2769
      %4167 = vmatpush.bf16.msra.mxu0 %v2767
      %4168 = vmatpush.bf16.msra.mxu0 %v2765
      %4169 = vmatpush.bf16.msra.mxu0 %v2763
      %4170 = vmatpush.bf16.msra.mxu0 %v2761
      %4171 = vmatpush.bf16.msra.mxu0 %v2759
      %4172 = vmatpush.bf16.msra.mxu0 %v2757
      %4173 = vmatpush.bf16.msra.mxu0 %v2755
      %4174 = vmatmul.bf16.gmra.mxu0 %v891
      %v4175 = vpop.f32.mrf.mxu0
      %v4176 = vadd.f32 %v4162, %v4175
      %v4177 = vpop.f32.mrf.mxu0
      %v4178 = vadd.f32 %v4164, %v4177
      %4179 = vdwg.mxu0
      %4180 = vmatpush.bf16.msra.mxu0 %v2785
      %4181 = vmatpush.bf16.msra.mxu0 %v2783
      %4182 = vmatpush.bf16.msra.mxu0 %v2781
      %4183 = vmatpush.bf16.msra.mxu0 %v2779
      %4184 = vmatpush.bf16.msra.mxu0 %v2777
      %4185 = vmatpush.bf16.msra.mxu0 %v2775
      %4186 = vmatpush.bf16.msra.mxu0 %v2773
      %4187 = vmatpush.bf16.msra.mxu0 %v2771
      %4188 = vmatmul.bf16.gmra.mxu0 %v892
      %v4189 = vpop.f32.mrf.mxu0
      %v4190 = vadd.f32 %v4176, %v4189
      %v4191 = vpop.f32.mrf.mxu0
      %v4192 = vadd.f32 %v4178, %v4191
      %4193 = vdwg.mxu0
      %4194 = vmatpush.bf16.msra.mxu0 %v2801
      %4195 = vmatpush.bf16.msra.mxu0 %v2799
      %4196 = vmatpush.bf16.msra.mxu0 %v2797
      %4197 = vmatpush.bf16.msra.mxu0 %v2795
      %4198 = vmatpush.bf16.msra.mxu0 %v2793
      %4199 = vmatpush.bf16.msra.mxu0 %v2791
      %4200 = vmatpush.bf16.msra.mxu0 %v2789
      %4201 = vmatpush.bf16.msra.mxu0 %v2787
      %4202 = vmatmul.bf16.gmra.mxu0 %v893
      %v4203 = vpop.f32.mrf.mxu0
      %v4204 = vadd.f32 %v4190, %v4203
      %v4205 = vpop.f32.mrf.mxu0
      %v4206 = vadd.f32 %v4192, %v4205
      %4207 = vdwg.mxu0
      %4208 = vmatpush.bf16.msra.mxu0 %v2817
      %4209 = vmatpush.bf16.msra.mxu0 %v2815
      %4210 = vmatpush.bf16.msra.mxu0 %v2813
      %4211 = vmatpush.bf16.msra.mxu0 %v2811
      %4212 = vmatpush.bf16.msra.mxu0 %v2809
      %4213 = vmatpush.bf16.msra.mxu0 %v2807
      %4214 = vmatpush.bf16.msra.mxu0 %v2805
      %4215 = vmatpush.bf16.msra.mxu0 %v2803
      %4216 = vmatmul.bf16.gmra.mxu0 %v894
      %v4217 = vpop.f32.mrf.mxu0
      %v4218 = vadd.f32 %v4204, %v4217
      %v4219 = vpop.f32.mrf.mxu0
      %v4220 = vadd.f32 %v4206, %v4219
      %4221 = vdwg.mxu0
      %4222 = vmatpush.bf16.msra.mxu0 %v2833
      %4223 = vmatpush.bf16.msra.mxu0 %v2831
      %4224 = vmatpush.bf16.msra.mxu0 %v2829
      %4225 = vmatpush.bf16.msra.mxu0 %v2827
      %4226 = vmatpush.bf16.msra.mxu0 %v2825
      %4227 = vmatpush.bf16.msra.mxu0 %v2823
      %4228 = vmatpush.bf16.msra.mxu0 %v2821
      %4229 = vmatpush.bf16.msra.mxu0 %v2819
      %4230 = vmatmul.bf16.gmra.mxu0 %v895
      %v4231 = vpop.f32.mrf.mxu0
      %v4232 = vadd.f32 %v4218, %v4231
      %v4233 = vpop.f32.mrf.mxu0
      %v4234 = vadd.f32 %v4220, %v4233
      %4235 = vdwg.mxu0
      %4236 = vmatpush.bf16.msra.mxu0 %v2849
      %4237 = vmatpush.bf16.msra.mxu0 %v2847
      %4238 = vmatpush.bf16.msra.mxu0 %v2845
      %4239 = vmatpush.bf16.msra.mxu0 %v2843
      %4240 = vmatpush.bf16.msra.mxu0 %v2841
      %4241 = vmatpush.bf16.msra.mxu0 %v2839
      %4242 = vmatpush.bf16.msra.mxu0 %v2837
      %4243 = vmatpush.bf16.msra.mxu0 %v2835
      %4244 = vmatmul.bf16.gmra.mxu0 %v896
      %v4245 = vpop.f32.mrf.mxu0
      %v4246 = vadd.f32 %v4232, %v4245
      %v4247 = vpop.f32.mrf.mxu0
      %v4248 = vadd.f32 %v4234, %v4247
      %4249 = vdwg.mxu0
      %4250 = vmatpush.bf16.msra.mxu0 %v2865
      %4251 = vmatpush.bf16.msra.mxu0 %v2863
      %4252 = vmatpush.bf16.msra.mxu0 %v2861
      %4253 = vmatpush.bf16.msra.mxu0 %v2859
      %4254 = vmatpush.bf16.msra.mxu0 %v2857
      %4255 = vmatpush.bf16.msra.mxu0 %v2855
      %4256 = vmatpush.bf16.msra.mxu0 %v2853
      %4257 = vmatpush.bf16.msra.mxu0 %v2851
      %4258 = vmatmul.bf16.gmra.mxu0 %v897
      %v4259 = vpop.f32.mrf.mxu0
      %v4260 = vadd.f32 %v4246, %v4259
      %v4261 = vpop.f32.mrf.mxu0
      %v4262 = vadd.f32 %v4248, %v4261
      %4263 = vdwg.mxu0
      %4264 = vmatpush.bf16.msra.mxu0 %v2881
      %4265 = vmatpush.bf16.msra.mxu0 %v2879
      %4266 = vmatpush.bf16.msra.mxu0 %v2877
      %4267 = vmatpush.bf16.msra.mxu0 %v2875
      %4268 = vmatpush.bf16.msra.mxu0 %v2873
      %4269 = vmatpush.bf16.msra.mxu0 %v2871
      %4270 = vmatpush.bf16.msra.mxu0 %v2869
      %4271 = vmatpush.bf16.msra.mxu0 %v2867
      %4272 = vmatmul.bf16.gmra.mxu0 %v898
      %v4273 = vpop.f32.mrf.mxu0
      %v4274 = vadd.f32 %v4260, %v4273
      %v4275 = vpop.f32.mrf.mxu0
      %v4276 = vadd.f32 %v4262, %v4275
      %4277 = vdwg.mxu0
      %4278 = vmatpush.bf16.msra.mxu0 %v2897
      %4279 = vmatpush.bf16.msra.mxu0 %v2895
      %4280 = vmatpush.bf16.msra.mxu0 %v2893
      %4281 = vmatpush.bf16.msra.mxu0 %v2891
      %4282 = vmatpush.bf16.msra.mxu0 %v2889
      %4283 = vmatpush.bf16.msra.mxu0 %v2887
      %4284 = vmatpush.bf16.msra.mxu0 %v2885
      %4285 = vmatpush.bf16.msra.mxu0 %v2883
      %4286 = vmatmul.bf16.gmra.mxu0 %v899
      %v4287 = vpop.f32.mrf.mxu0
      %v4288 = vadd.f32 %v4274, %v4287
      %v4289 = vpop.f32.mrf.mxu0
      %v4290 = vadd.f32 %v4276, %v4289
      %4291 = vdwg.mxu0
      %4292 = vmatpush.bf16.msra.mxu0 %v2913
      %4293 = vmatpush.bf16.msra.mxu0 %v2911
      %4294 = vmatpush.bf16.msra.mxu0 %v2909
      %4295 = vmatpush.bf16.msra.mxu0 %v2907
      %4296 = vmatpush.bf16.msra.mxu0 %v2905
      %4297 = vmatpush.bf16.msra.mxu0 %v2903
      %4298 = vmatpush.bf16.msra.mxu0 %v2901
      %4299 = vmatpush.bf16.msra.mxu0 %v2899
      %4300 = vmatmul.bf16.gmra.mxu0 %v900
      %v4301 = vpop.f32.mrf.mxu0
      %v4302 = vadd.f32 %v4288, %v4301
      %v4303 = vpop.f32.mrf.mxu0
      %v4304 = vadd.f32 %v4290, %v4303
      %4305 = vdwg.mxu0
      %4306 = vmatpush.bf16.msra.mxu0 %v2929
      %4307 = vmatpush.bf16.msra.mxu0 %v2927
      %4308 = vmatpush.bf16.msra.mxu0 %v2925
      %4309 = vmatpush.bf16.msra.mxu0 %v2923
      %4310 = vmatpush.bf16.msra.mxu0 %v2921
      %4311 = vmatpush.bf16.msra.mxu0 %v2919
      %4312 = vmatpush.bf16.msra.mxu0 %v2917
      %4313 = vmatpush.bf16.msra.mxu0 %v2915
      %4314 = vmatmul.bf16.gmra.mxu0 %v901
      %v4315 = vpop.f32.mrf.mxu0
      %v4316 = vadd.f32 %v4302, %v4315
      %v4317 = vpop.f32.mrf.mxu0
      %v4318 = vadd.f32 %v4304, %v4317
      %4319 = vdwg.mxu0
      %4320 = vmatpush.bf16.msra.mxu0 0
      %4321 = vmatpush.bf16.msra.mxu0 0
      %4322 = vmatpush.bf16.msra.mxu0 0
      %4323 = vmatpush.bf16.msra.mxu0 0
      %4324 = vmatpush.bf16.msra.mxu0 0
      %4325 = vmatpush.bf16.msra.mxu0 0
      %4326 = vmatpush.bf16.msra.mxu0 %v2933
      %4327 = vmatpush.bf16.msra.mxu0 %v2931
      %4328 = vmatmul.bf16.gmra.mxu0 %v3436
      %v4329 = vpop.f32.mrf.mxu0
      %v4330 = vadd.f32 %v4316, %v4329
      %v4331 = vpop.f32.mrf.mxu0
      %v4332 = vadd.f32 %v4318, %v4331
      %4333 = vdwg.mxu0
      %v4334 = vxor.u32 %v4330, 2147483648
      %v4335 = vxor.u32 %v4332, 2147483648
      %v4336 = vmul.f32 %v4334, 1.442695
      %v4337 = vpow.pop %v4336
      %v4338 = vmul.f32 %v4335, 1.442695
      %v4339 = vpow.pop %v4338
      %v4340 = vadd.f32 %v4337, 1.0
      %v4341 = vadd.f32 %v4339, 1.0
      %v4342 = vrcp.pop %v4340
      %v4343 = vmul.f32 %v4340, %v4342
      %v4344 = vsub.f32 1.0, %v4343
      %v4345 = vmul.f32 %v4342, %v4344
      %v4346 = vadd.f32 %v4342, %v4345
      %vm4347 = vweird.f32 %v4340
      %vm4348 = vweird.f32 %v4342
      %vm4349 = vmor %vm4347, %vm4348
      %v4350 = vsel %vm4349, %v4342, %v4346
      %v4351 = vand.u32 2147483647, %v4340
      %vm4352 = vcmp.eq.f32.partialorder %v4351, 8.507059e+37
      %v4353 = vand.u32 %v4340, 2147483648
      %v4354 = vor.u32 1.1754944e-38, %v4353
      %v4355 = vsel %vm4352, %v4354, %v4350
      %v4356 = vmul.f32 1.0, %v4355
      %v4357 = vrcp.pop %v4341
      %v4358 = vmul.f32 %v4341, %v4357
      %v4359 = vsub.f32 1.0, %v4358
      %v4360 = vmul.f32 %v4357, %v4359
      %v4361 = vadd.f32 %v4357, %v4360
      %vm4362 = vweird.f32 %v4341
      %vm4363 = vweird.f32 %v4357
      %vm4364 = vmor %vm4362, %vm4363
      %v4365 = vsel %vm4364, %v4357, %v4361
      %v4366 = vand.u32 2147483647, %v4341
      %vm4367 = vcmp.eq.f32.partialorder %v4366, 8.507059e+37
      %v4368 = vand.u32 %v4341, 2147483648
      %v4369 = vor.u32 1.1754944e-38, %v4368
      %v4370 = vsel %vm4367, %v4369, %v4365
      %v4371 = vmul.f32 1.0, %v4370
      %v4372 = vmul.f32 %v3882, %v4356
      %v4373 = vmul.f32 %v3884, %v4371
      %v4374 = vld [vmem:[#allocation2] sm:$0xff]
      %v4375 = vmax.f32 %v4372, %v4373
      %v4376 = vmax.f32 %v4374, %v4375
      %4377 = vst [vmem:[#allocation2] sm:$0xff] %v4376
      %p4378 = scmp.eq.s32.totalorder %s21, 1
      // Predicated region
      $region37: #{malconv_forward.2} parent=31 // pred_check
        %p4379 = pneg %p4378
      $region38: #{malconv_forward.2} parent=31 // pred_check_branch
        %4381 = sbr.rel (%p4379) target = $region40
      $region39: #{malconv_forward.2} parent=31 // pred_region
        %v4382 = vld [vmem:[#allocation2] sm:$0xff]
        %4383 = vst [vmem:[%s230] sm:$0xff] %v4382
      $region40: #{malconv_forward.2} parent=31 // pred_fallthru
        _
      %p4384 = scmp.lt.s32.totalorder %s19, 1
      %s4385 = scalar_select %p4384, %s19, 1
      %p4386 = scmp.lt.s32.totalorder %s20, 1
      %s4387 = scalar_select %p4386, %s20, 1
      %s4388 = smul.addr %s4385, 2
      %s4389 = sadd.s32 %s4387, %s4388
      %s4390 = smul.addr %s4389, 8
      %s4391 = scalar_lea.vmem %s3, %s4390
      // Predicated region
      $region41: #{malconv_forward.2} parent=31 // pred_check
        %p4392 = pneg %p127
      $region42: #{malconv_forward.2} parent=31 // pred_check_branch
        %4394 = sbr.rel (%p4392) target = $region44
      $region43: #{malconv_forward.2} parent=31 // pred_region
        _
      $region44: #{malconv_forward.2} parent=31 // pred_fallthru
        _
    $region32: #{malconv_forward.2} parent=5 // pred_fallthru
      _
    %p4395 = scmp.le.s32.totalorder 2, %s9
    // Predicated region
    $region45: #{malconv_forward.2} parent=5 // pred_check
      %p4396 = pneg %p4395
    $region46: #{malconv_forward.2} parent=5 // pred_check_branch
      %4398 = sbr.rel (%p4396) target = $region48
    $region47: #{malconv_forward.2} parent=5 // pred_region
      %s4399 = ssub.s32 %s9, 2
      // Predicated region
      $region49: #{malconv_forward.2} parent=47 // pred_check
        %p4400 = pneg %p133
      $region50: #{malconv_forward.2} parent=47 // pred_check_branch
        %4402 = sbr.rel (%p4400) target = $region52
      $region51: #{malconv_forward.2} parent=47 // pred_region
        %p4403 = scmp.lt.s32.totalorder %s22, 1
        %s4404 = scalar_select %p4403, %s22, 1
        %p4405 = scmp.lt.s32.totalorder %s23, 1
        %s4406 = scalar_select %p4405, %s23, 1
        %s4407 = smul.addr %s4404, 2
        %s4408 = sadd.s32 %s4406, %s4407
        %s4409 = smul.addr %s4408, 8
        %s4410 = scalar_lea.vmem %s3, %s4409
      $region52: #{malconv_forward.2} parent=47 // pred_fallthru
        _
    $region48: #{malconv_forward.2} parent=5 // pred_fallthru
      _
  $region6: #{malconv_forward.2} parent=0 // loop_footer
    %s13 = sadd.s32 1, %s9
  $region7: #{malconv_forward.2} parent=0 // loop_footer_branch
    %8 = sbr.rel target = $region3
  $region8: #{malconv_forward.2} parent=0 // loop_exit
    _

</llo_original>
